<compile_context>
chip_gen: v5e
topology: v5e:2x2
jax: 0.10.0
libtpu: 0.0.40
codegen_flags: <defaults>
</compile_context>

<pallas_src>
import jax
import jax.numpy as jnp
from jax.experimental import pallas as pl
from jax.experimental.pallas import tpu as pltpu


# ----------------------------------------------------------------------------
# Pallas kernels
# ----------------------------------------------------------------------------
def _gemm_bias_kernel(w_ref, x_ref, b_ref, o_ref):
    # (P, K) @ (K, bm) on the MXU with f32 accumulation; bias (P, 1)
    # broadcasts along the lane-dense M dimension; output cast to bf16/f32.
    o_ref[...] = (
        jnp.dot(w_ref[...], x_ref[...], preferred_element_type=jnp.float32)
        + b_ref[...]
    ).astype(o_ref.dtype)


def _gemm_bias_maxq_relu_kernel(w_ref, x_ref, b_ref, o_ref, acc_ref):
    # Fused conv GEMM + 2x2 max-pool + ReLU.  The trailing grid axis q runs
    # over the four 2x2-window quadrants; the output block index depends only
    # on the leading M axis, so acc_ref max-accumulates across q and the
    # pooled, ReLU'd tile is written once at the last quadrant.
    q = pl.program_id(1)
    r = (
        jnp.dot(w_ref[...], x_ref[...], preferred_element_type=jnp.float32)
        + b_ref[...]
    )

    @pl.when(q == 0)
    def _():
        acc_ref[...] = r

    @pl.when(q > 0)
    def _():
        acc_ref[...] = jnp.maximum(acc_ref[...], r)

    @pl.when(q == pl.num_programs(1) - 1)
    def _():
        o_ref[...] = jnp.maximum(acc_ref[...], 0.0).astype(o_ref.dtype)


# ----------------------------------------------------------------------------
# GEMM wrappers (lane-dense M, bf16 operands / f32 accumulate)
# ----------------------------------------------------------------------------
def _pick_block_m(M, cap=512):
    """Largest 128-multiple divisor of M that is <= cap and yields >= 2 grid
    steps (so both v7x TensorCores get work); otherwise one whole-M block.
    cap=512 keeps the per-step (K, bm) working set far below the scoped-VMEM
    defaults (16 MiB v5e / 32 MiB v6e,v7x)."""
    if M >= 256:
        c = min(cap, M // 2)
        c = (c // 128) * 128
        while c >= 128:
            if M % c == 0:
                return c
            c -= 128
    return M


def matmul_bias(wm, x, b, out_dtype=jnp.bfloat16):
    """wm: (P, K) bf16, x: (K, M) bf16, b: (P, 1) f32 -> (P, M) out_dtype."""
    P, K = wm.shape
    K2, M = x.shape
    assert K == K2
    bm = _pick_block_m(M)
    grid_m = M // bm
    return pl.pallas_call(
        _gemm_bias_kernel,
        out_shape=jax.ShapeDtypeStruct((P, M), out_dtype),
        grid=(grid_m,),
        in_specs=[
            pl.BlockSpec((P, K), lambda i: (0, 0)),
            pl.BlockSpec((K, bm), lambda i: (0, i)),
            pl.BlockSpec((P, 1), lambda i: (0, 0)),
        ],
        out_specs=pl.BlockSpec((P, bm), lambda i: (0, i)),
        compiler_params=pltpu.CompilerParams(
            dimension_semantics=("parallel",)
        ),
    )(wm, x, b)


def matmul_bias_maxpool_relu(wm, patches_q, b):
    """wm: (P, K) bf16, patches_q: (4, K, Mq) bf16 quadrant-ordered im2col,
    b: (P, 1) f32 -> relu(max_pool2d(conv, 2)) as (P, Mq) bf16."""
    P, K = wm.shape
    Q, K2, Mq = patches_q.shape
    assert K == K2 and Q == 4
    bm = _pick_block_m(Mq)
    grid_m = Mq // bm
    return pl.pallas_call(
        _gemm_bias_maxq_relu_kernel,
        out_shape=jax.ShapeDtypeStruct((P, Mq), jnp.bfloat16),
        grid=(grid_m, Q),
        in_specs=[
            pl.BlockSpec((P, K), lambda i, q: (0, 0)),
            pl.BlockSpec((None, K, bm), lambda i, q: (q, 0, i)),
            pl.BlockSpec((P, 1), lambda i, q: (0, 0)),
        ],
        out_specs=pl.BlockSpec((P, bm), lambda i, q: (0, i)),
        scratch_shapes=[pltpu.VMEM((P, bm), jnp.float32)],
        compiler_params=pltpu.CompilerParams(
            dimension_semantics=("parallel", "arbitrary")
        ),
    )(wm, patches_q, b)


# ----------------------------------------------------------------------------
# Conv-as-GEMM glue (channel-major, bf16 patches, 2-D activations)
# ----------------------------------------------------------------------------
def _im2col(x4, kh, kw, pad):
    """(C, N, H, W) -> (kh*kw*C, N*Ho*Wo) patch matrix (dtype preserved)."""
    C, N, H, W = x4.shape
    xp = jnp.pad(x4, ((0, 0), (0, 0), (pad, pad), (pad, pad)))
    Ho = H + 2 * pad - kh + 1
    Wo = W + 2 * pad - kw + 1
    views = [xp[:, :, i:i + Ho, j:j + Wo] for i in range(kh) for j in range(kw)]
    p = jnp.stack(views, axis=0)                        # (T, C, N, Ho, Wo)
    return p.reshape(kh * kw * C, N * Ho * Wo), Ho, Wo


def _im2col_pool_quadrants(x4, kh, kw, pad):
    """(C, N, H, W) -> (4, kh*kw*C, N*(Ho//2)*(Wo//2)) quadrant-ordered
    patches: column m of quadrant (qh, qw) feeds conv output pixel
    (2*oh+qh, 2*ow+qw), so max over the quadrant axis == max_pool2d(conv, 2)."""
    C, N, H, W = x4.shape
    xp = jnp.pad(x4, ((0, 0), (0, 0), (pad, pad), (pad, pad)))
    Ho = H + 2 * pad - kh + 1
    Wo = W + 2 * pad - kw + 1
    assert Ho % 2 == 0 and Wo % 2 == 0, "2x2 max-pool needs even conv output"
    Ho2, Wo2 = Ho // 2, Wo // 2
    views = [xp[:, :, i:i + Ho, j:j + Wo] for i in range(kh) for j in range(kw)]
    p = jnp.stack(views, axis=0)                        # (T, C, N, Ho, Wo)
    p = p.reshape(kh * kw, C, N, Ho2, 2, Wo2, 2)
    p = p.transpose(4, 6, 0, 1, 2, 3, 5)                # (qh, qw, T, C, N, Ho2, Wo2)
    return p.reshape(4, kh * kw * C, N * Ho2 * Wo2), Ho2, Wo2


def conv_t(x2d, nhw, wm, b, kh, kw, pad, out_dtype=jnp.bfloat16):
    """x2d: (C_in, N*H*W) bf16 -> (C_out, N*Ho*Wo) via transposed-im2col GEMM."""
    N, H, W = nhw
    C_in = x2d.shape[0]
    patches, Ho, Wo = _im2col(x2d.reshape(C_in, N, H, W), kh, kw, pad)
    return matmul_bias(wm, patches, b, out_dtype), (N, Ho, Wo)


def conv_pool_relu_t(x2d, nhw, wm, b, kh, kw, pad=0):
    """relu(max_pool2d(conv(x), 2)) fused into a single pallas_call."""
    N, H, W = nhw
    C_in = x2d.shape[0]
    patches_q, Ho2, Wo2 = _im2col_pool_quadrants(
        x2d.reshape(C_in, N, H, W), kh, kw, pad)
    return matmul_bias_maxpool_relu(wm, patches_q, b), (N, Ho2, Wo2)


# ----------------------------------------------------------------------------
# Model definition (raw params + init-time GEMM-ready prep)
# ----------------------------------------------------------------------------
def _init_conv(key, c_out, c_in, kh, kw):
    kw_, kb_ = jax.random.split(key)
    w = 0.05 * jax.random.normal(kw_, (c_out, c_in, kh, kw), jnp.float32)
    b = 0.05 * jax.random.normal(kb_, (c_out,), jnp.float32)
    return w, b


def _init_inception(key, c_in):
    ks = jax.random.split(key, 7)
    p = {}
    p["b1_2_w"], p["b1_2_b"] = _init_conv(ks[0], 24, c_in, 1, 1)
    p["b2_w"], p["b2_b"] = _init_conv(ks[1], 16, c_in, 1, 1)
    p["b3_1_w"], p["b3_1_b"] = _init_conv(ks[2], 16, c_in, 1, 1)
    p["b3_2_w"], p["b3_2_b"] = _init_conv(ks[3], 24, 16, 5, 5)
    p["b4_1_w"], p["b4_1_b"] = _init_conv(ks[4], 16, c_in, 1, 1)
    p["b4_2_w"], p["b4_2_b"] = _init_conv(ks[5], 24, 16, 3, 3)
    p["b4_3_w"], p["b4_3_b"] = _init_conv(ks[6], 24, 24, 3, 3)
    return p


def init_raw_params(key):
    k1, k2, k3, k4, k5 = jax.random.split(key, 5)
    params = {}
    params["conv1_w"], params["conv1_b"] = _init_conv(k1, 10, 1, 5, 5)
    params["conv2_w"], params["conv2_b"] = _init_conv(k2, 20, 88, 5, 5)
    params["incep1"] = _init_inception(k3, 10)
    params["incep2"] = _init_inception(k4, 20)
    kfw, kfb = jax.random.split(k5)
    # Stored as (10, 1408): exactly the orientation the transposed GEMM wants.
    params["fc_w"] = 0.05 * jax.random.normal(kfw, (10, 1408), jnp.float32)
    params["fc_b"] = 0.05 * jax.random.normal(kfb, (10,), jnp.float32)
    return params


def _prep_conv(w, b):
    """(C_out, C_in, kh, kw) -> ((C_out, kh*kw*C_in) bf16, (C_out, 1) f32)."""
    c_out, c_in, kh, kw = w.shape
    wm = w.transpose(0, 2, 3, 1).reshape(c_out, kh * kw * c_in)
    return wm.astype(jnp.bfloat16), b.reshape(c_out, 1).astype(jnp.float32)


def _prep_inception(p, c_in):
    # branch1 = conv1x1(avg_pool2d(x, 3, s=1, p=1)) == conv3x3(x, w1x1/9)
    # because F.avg_pool2d defaults to count_include_pad=True; branches
    # 2 / 3_1 / 4_1 are 1x1 convs == center-only 3x3 convs.  All four share
    # ONE fused 72-channel GEMM over a single shared im2col.
    w_b1 = jnp.broadcast_to(p["b1_2_w"] / 9.0, (24, c_in, 3, 3))
    w_1x1 = jnp.concatenate([p["b2_w"], p["b3_1_w"], p["b4_1_w"]], axis=0)
    w_1x1 = jnp.pad(w_1x1, ((0, 0), (0, 0), (1, 1), (1, 1)))   # center of 3x3
    w_fused = jnp.concatenate([w_b1, w_1x1], axis=0)           # (72, c_in, 3, 3)
    b_fused = jnp.concatenate(
        [p["b1_2_b"], p["b2_b"], p["b3_1_b"], p["b4_1_b"]])    # (72,)
    out = {}
    out["fused_w"], out["fused_b"] = _prep_conv(w_fused, b_fused)
    out["b3_2_w"], out["b3_2_b"] = _prep_conv(p["b3_2_w"], p["b3_2_b"])
    out["b4_2_w"], out["b4_2_b"] = _prep_conv(p["b4_2_w"], p["b4_2_b"])
    out["b4_3_w"], out["b4_3_b"] = _prep_conv(p["b4_3_w"], p["b4_3_b"])
    return out


def prepare_params(raw):
    """One-time init-side weight prep (fusion, GEMM layout, bf16 casts)."""
    pp = {}
    pp["conv1_w"], pp["conv1_b"] = _prep_conv(raw["conv1_w"], raw["conv1_b"])
    pp["conv2_w"], pp["conv2_b"] = _prep_conv(raw["conv2_w"], raw["conv2_b"])
    pp["incep1"] = _prep_inception(raw["incep1"], 10)
    pp["incep2"] = _prep_inception(raw["incep2"], 20)
    pp["fc_w"] = raw["fc_w"].astype(jnp.bfloat16)
    pp["fc_b"] = raw["fc_b"].reshape(10, 1).astype(jnp.float32)
    return pp


# ----------------------------------------------------------------------------
# Forward pass
# ----------------------------------------------------------------------------
def inception_forward(x2d, nhw, ip):
    """(C_in, M) -> (88, M); concat order [branch1, branch2, branch3, branch4]
    exactly as in the PyTorch reference."""
    fused, nhw = conv_t(x2d, nhw, ip["fused_w"], ip["fused_b"], 3, 3, 1)
    b1 = fused[0:24]      # avg_pool + 1x1 (folded into /9-scaled 3x3)
    b2 = fused[24:40]     # 1x1
    b3 = fused[40:56]     # 1x1 feeding the 5x5
    b4 = fused[56:72]     # 1x1 feeding the double 3x3
    b3, _ = conv_t(b3, nhw, ip["b3_2_w"], ip["b3_2_b"], 5, 5, 2)
    b4, _ = conv_t(b4, nhw, ip["b4_2_w"], ip["b4_2_b"], 3, 3, 1)
    b4, _ = conv_t(b4, nhw, ip["b4_3_w"], ip["b4_3_b"], 3, 3, 1)
    return jnp.concatenate([b1, b2, b3, b4], axis=0), nhw      # (88, M)


def net_forward(x, pp):
    """x: (N, 1, 28, 28) NCHW (PyTorch convention) -> (N, 10) f32 logits."""
    N = x.shape[0]
    h = jnp.transpose(x.astype(jnp.bfloat16), (1, 0, 2, 3)).reshape(1, N * 28 * 28)
    h, nhw = conv_pool_relu_t(h, (N, 28, 28),
                              pp["conv1_w"], pp["conv1_b"], 5, 5)   # (10, N*144)
    h, nhw = inception_forward(h, nhw, pp["incep1"])                # (88, N*144)
    h, nhw = conv_pool_relu_t(h, nhw,
                              pp["conv2_w"], pp["conv2_b"], 5, 5)   # (20, N*16)
    h, nhw = inception_forward(h, nhw, pp["incep2"])                # (88, N*16)
    Nn, Hn, Wn = nhw
    # PyTorch's x.view(N, -1) flattens (C, H, W) per sample -> build (1408, N)
    # for the transposed fc GEMM (fc weight already stored as (10, 1408) bf16).
    feats_t = h.reshape(88, Nn, Hn * Wn).transpose(0, 2, 1).reshape(
        88 * Hn * Wn, Nn)
    out_t = matmul_bias(pp["fc_w"], feats_t, pp["fc_b"], jnp.float32)  # (10, N)
    return out_t.T                                                     # (N, 10)


# ----------------------------------------------------------------------------
if __name__ == "__main__":
    key = jax.random.PRNGKey(0)
    kx, kp = jax.random.split(key)
    # MNIST-shaped input (the fc layer requires 28x28 -> 1408 features).
    x = jax.random.normal(kx, (2, 1, 28, 28), jnp.float32)
    params = prepare_params(init_raw_params(kp))

    fwd = jax.jit(net_forward)
    out = jax.block_until_ready(fwd(x, params))
    assert out.shape == (2, 10), out.shape
    assert bool(jnp.all(jnp.isfinite(out)))
    print("KERNEL_OK")
</pallas_src>

<mosaic_0001>
module attributes {stable_mosaic.version = 11 : i64} {
  func.func @_gemm_bias_maxq_relu_kernel(%arg0: i32, %arg1: i32, %arg2: memref<10x25xbf16, #tpu.memory_space<vmem>>, %arg3: memref<1x25x288xbf16, #tpu.memory_space<vmem>>, %arg4: memref<10x1xf32, #tpu.memory_space<vmem>>, %arg5: memref<10x288xbf16, #tpu.memory_space<vmem>>, %arg6: memref<10x288xf32, #tpu.memory_space<vmem>>) attributes {dimension_semantics = [#tpu.dimension_semantics<parallel>, #tpu.dimension_semantics<arbitrary>], iteration_bounds = array<i64: 1, 4>, scalar_prefetch = 0 : i64, scratch_operands = 1 : i64, tpu.core_type = #tpu.core_type<tc>, window_params = [{pipeline_mode = #tpu.pipeline_mode<synchronous>, transform_indices = @transform_0, window_bounds = array<i64: 10, 25>}, {transform_indices = @transform_1, window_bounds = array<i64: 1, 25, 288>}, {pipeline_mode = #tpu.pipeline_mode<synchronous>, transform_indices = @transform_2, window_bounds = array<i64: 10, 1>}, {transform_indices = @transform_3, window_bounds = array<i64: 10, 288>}]} {
    %c0 = arith.constant 0 : index
    %c0_0 = arith.constant 0 : index
    %0 = vector.load %arg2[%c0, %c0_0] : memref<10x25xbf16, #tpu.memory_space<vmem>>, vector<10x25xbf16>
    %c0_1 = arith.constant 0 : index
    %c0_2 = arith.constant 0 : index
    %c0_3 = arith.constant 0 : index
    %1 = vector.load %arg3[%c0_1, %c0_2, %c0_3] : memref<1x25x288xbf16, #tpu.memory_space<vmem>>, vector<1x25x288xbf16>
    %2 = vector.shape_cast %1 : vector<1x25x288xbf16> to vector<25x288xbf16>
    %cst = arith.constant dense<0.000000e+00> : vector<10x288xf32>
    %3 = tpu.matmul %0, %2, %cst {dimension_numbers = #tpu.dot_dimension_numbers<[1], [0], [0], [1], [0, 0, 1, 1], [], []>} : vector<10x25xbf16>, vector<25x288xbf16>, vector<10x288xf32> -> vector<10x288xf32>
    %c0_4 = arith.constant 0 : index
    %c0_5 = arith.constant 0 : index
    %4 = vector.load %arg4[%c0_4, %c0_5] : memref<10x1xf32, #tpu.memory_space<vmem>>, vector<10x1xf32>
    %5 = vector.broadcast %4 : vector<10x1xf32> to vector<10x288xf32>
    %6 = arith.addf %3, %5 : vector<10x288xf32>
    %c0_i32 = arith.constant 0 : i32
    %7 = arith.cmpi eq, %arg1, %c0_i32 : i32
    %8 = arith.extui %7 : i1 to i32
    %c0_i32_6 = arith.constant 0 : i32
    %9 = arith.cmpi ne, %8, %c0_i32_6 : i32
    scf.if %9 {
      %c0_10 = arith.constant 0 : index
      %c0_11 = arith.constant 0 : index
      %16 = vector.load %arg6[%c0_10, %c0_11] : memref<10x288xf32, #tpu.memory_space<vmem>>, vector<10x288xf32>
      tpu.vector_store %arg6[%c0_10, %c0_11], %6 {strides = array<i32>} : memref<10x288xf32, #tpu.memory_space<vmem>>, vector<10x288xf32>,
    } else {
    }
    %c0_i32_7 = arith.constant 0 : i32
    %10 = arith.cmpi sgt, %arg1, %c0_i32_7 : i32
    %11 = arith.extui %10 : i1 to i32
    %c0_i32_8 = arith.constant 0 : i32
    %12 = arith.cmpi ne, %11, %c0_i32_8 : i32
    scf.if %12 {
      %c0_10 = arith.constant 0 : index
      %c0_11 = arith.constant 0 : index
      %16 = vector.load %arg6[%c0_10, %c0_11] : memref<10x288xf32, #tpu.memory_space<vmem>>, vector<10x288xf32>
      %17 = arith.maximumf %16, %6 : vector<10x288xf32>
      %c0_12 = arith.constant 0 : index
      %c0_13 = arith.constant 0 : index
      %18 = vector.load %arg6[%c0_12, %c0_13] : memref<10x288xf32, #tpu.memory_space<vmem>>, vector<10x288xf32>
      tpu.vector_store %arg6[%c0_12, %c0_13], %17 {strides = array<i32>} : memref<10x288xf32, #tpu.memory_space<vmem>>, vector<10x288xf32>,
    } else {
    }
    %c3_i32 = arith.constant 3 : i32
    %13 = arith.cmpi eq, %arg1, %c3_i32 : i32
    %14 = arith.extui %13 : i1 to i32
    %c0_i32_9 = arith.constant 0 : i32
    %15 = arith.cmpi ne, %14, %c0_i32_9 : i32
    scf.if %15 {
      %c0_10 = arith.constant 0 : index
      %c0_11 = arith.constant 0 : index
      %16 = vector.load %arg6[%c0_10, %c0_11] : memref<10x288xf32, #tpu.memory_space<vmem>>, vector<10x288xf32>
      %cst_12 = arith.constant 0.000000e+00 : f32
      %17 = vector.broadcast %cst_12 : f32 to vector<10x288xf32>
      %18 = arith.maximumf %16, %17 : vector<10x288xf32>
      %19 = arith.truncf %18 : vector<10x288xf32> to vector<10x288xbf16>
      %c0_13 = arith.constant 0 : index
      %c0_14 = arith.constant 0 : index
      %20 = vector.load %arg5[%c0_13, %c0_14] : memref<10x288xbf16, #tpu.memory_space<vmem>>, vector<10x288xbf16>
      tpu.vector_store %arg5[%c0_13, %c0_14], %19 {strides = array<i32>} : memref<10x288xbf16, #tpu.memory_space<vmem>>, vector<10x288xbf16>,
    } else {
    }
    return
  }
  func.func @transform_0(%arg0: i32, %arg1: i32) -> (i32, i32) {
    %c0_i32 = arith.constant 0 : i32
    %c0_i32_0 = arith.constant 0 : i32
    %c0_i32_1 = arith.constant 0 : i32
    return %c0_i32, %c0_i32_0 : i32, i32
  }
  func.func @transform_1(%arg0: i32, %arg1: i32) -> (i32, i32, i32) {
    %c0_i32 = arith.constant 0 : i32
    %c0_i32_0 = arith.constant 0 : i32
    return %arg1, %c0_i32, %arg0 : i32, i32, i32
  }
  func.func @transform_2(%arg0: i32, %arg1: i32) -> (i32, i32) {
    %c0_i32 = arith.constant 0 : i32
    %c0_i32_0 = arith.constant 0 : i32
    %c0_i32_1 = arith.constant 0 : i32
    return %c0_i32, %c0_i32_0 : i32, i32
  }
  func.func @transform_3(%arg0: i32, %arg1: i32) -> (i32, i32) {
    %c0_i32 = arith.constant 0 : i32
    %c0_i32_0 = arith.constant 0 : i32
    return %c0_i32, %arg0 : i32, i32
  }
}

module attributes {stable_mosaic.version = 11 : i64} {
  func.func @_gemm_bias_kernel(%arg0: i32, %arg1: memref<72x90xbf16, #tpu.memory_space<vmem>>, %arg2: memref<90x288xbf16, #tpu.memory_space<vmem>>, %arg3: memref<72x1xf32, #tpu.memory_space<vmem>>, %arg4: memref<72x288xbf16, #tpu.memory_space<vmem>>) attributes {dimension_semantics = [#tpu.dimension_semantics<parallel>], iteration_bounds = array<i64: 1>, scalar_prefetch = 0 : i64, scratch_operands = 0 : i64, tpu.core_type = #tpu.core_type<tc>, window_params = [{pipeline_mode = #tpu.pipeline_mode<synchronous>, transform_indices = @transform_0, window_bounds = array<i64: 72, 90>}, {transform_indices = @transform_1, window_bounds = array<i64: 90, 288>}, {pipeline_mode = #tpu.pipeline_mode<synchronous>, transform_indices = @transform_2, window_bounds = array<i64: 72, 1>}, {transform_indices = @transform_3, window_bounds = array<i64: 72, 288>}]} {
    %c0 = arith.constant 0 : index
    %c0_0 = arith.constant 0 : index
    %0 = vector.load %arg1[%c0, %c0_0] : memref<72x90xbf16, #tpu.memory_space<vmem>>, vector<72x90xbf16>
    %c0_1 = arith.constant 0 : index
    %c0_2 = arith.constant 0 : index
    %1 = vector.load %arg2[%c0_1, %c0_2] : memref<90x288xbf16, #tpu.memory_space<vmem>>, vector<90x288xbf16>
    %cst = arith.constant dense<0.000000e+00> : vector<72x288xf32>
    %2 = tpu.matmul %0, %1, %cst {dimension_numbers = #tpu.dot_dimension_numbers<[1], [0], [0], [1], [0, 0, 1, 1], [], []>} : vector<72x90xbf16>, vector<90x288xbf16>, vector<72x288xf32> -> vector<72x288xf32>
    %c0_3 = arith.constant 0 : index
    %c0_4 = arith.constant 0 : index
    %3 = vector.load %arg3[%c0_3, %c0_4] : memref<72x1xf32, #tpu.memory_space<vmem>>, vector<72x1xf32>
    %4 = vector.broadcast %3 : vector<72x1xf32> to vector<72x288xf32>
    %5 = arith.addf %2, %4 : vector<72x288xf32>
    %6 = arith.truncf %5 : vector<72x288xf32> to vector<72x288xbf16>
    %c0_5 = arith.constant 0 : index
    %c0_6 = arith.constant 0 : index
    %7 = vector.load %arg4[%c0_5, %c0_6] : memref<72x288xbf16, #tpu.memory_space<vmem>>, vector<72x288xbf16>
    tpu.vector_store %arg4[%c0_5, %c0_6], %6 {strides = array<i32>} : memref<72x288xbf16, #tpu.memory_space<vmem>>, vector<72x288xbf16>,
    return
  }
  func.func @transform_0(%arg0: i32) -> (i32, i32) {
    %c0_i32 = arith.constant 0 : i32
    %c0_i32_0 = arith.constant 0 : i32
    %c0_i32_1 = arith.constant 0 : i32
    return %c0_i32, %c0_i32_0 : i32, i32
  }
  func.func @transform_1(%arg0: i32) -> (i32, i32) {
    %c0_i32 = arith.constant 0 : i32
    %c0_i32_0 = arith.constant 0 : i32
    return %c0_i32, %arg0 : i32, i32
  }
  func.func @transform_2(%arg0: i32) -> (i32, i32) {
    %c0_i32 = arith.constant 0 : i32
    %c0_i32_0 = arith.constant 0 : i32
    %c0_i32_1 = arith.constant 0 : i32
    return %c0_i32, %c0_i32_0 : i32, i32
  }
  func.func @transform_3(%arg0: i32) -> (i32, i32) {
    %c0_i32 = arith.constant 0 : i32
    %c0_i32_0 = arith.constant 0 : i32
    return %c0_i32, %arg0 : i32, i32
  }
}

module attributes {stable_mosaic.version = 11 : i64} {
  func.func @_gemm_bias_kernel(%arg0: i32, %arg1: memref<24x400xbf16, #tpu.memory_space<vmem>>, %arg2: memref<400x288xbf16, #tpu.memory_space<vmem>>, %arg3: memref<24x1xf32, #tpu.memory_space<vmem>>, %arg4: memref<24x288xbf16, #tpu.memory_space<vmem>>) attributes {dimension_semantics = [#tpu.dimension_semantics<parallel>], iteration_bounds = array<i64: 1>, scalar_prefetch = 0 : i64, scratch_operands = 0 : i64, tpu.core_type = #tpu.core_type<tc>, window_params = [{pipeline_mode = #tpu.pipeline_mode<synchronous>, transform_indices = @transform_0, window_bounds = array<i64: 24, 400>}, {transform_indices = @transform_1, window_bounds = array<i64: 400, 288>}, {pipeline_mode = #tpu.pipeline_mode<synchronous>, transform_indices = @transform_2, window_bounds = array<i64: 24, 1>}, {transform_indices = @transform_3, window_bounds = array<i64: 24, 288>}]} {
    %c0 = arith.constant 0 : index
    %c0_0 = arith.constant 0 : index
    %0 = vector.load %arg1[%c0, %c0_0] : memref<24x400xbf16, #tpu.memory_space<vmem>>, vector<24x400xbf16>
    %c0_1 = arith.constant 0 : index
    %c0_2 = arith.constant 0 : index
    %1 = vector.load %arg2[%c0_1, %c0_2] : memref<400x288xbf16, #tpu.memory_space<vmem>>, vector<400x288xbf16>
    %cst = arith.constant dense<0.000000e+00> : vector<24x288xf32>
    %2 = tpu.matmul %0, %1, %cst {dimension_numbers = #tpu.dot_dimension_numbers<[1], [0], [0], [1], [0, 0, 1, 1], [], []>} : vector<24x400xbf16>, vector<400x288xbf16>, vector<24x288xf32> -> vector<24x288xf32>
    %c0_3 = arith.constant 0 : index
    %c0_4 = arith.constant 0 : index
    %3 = vector.load %arg3[%c0_3, %c0_4] : memref<24x1xf32, #tpu.memory_space<vmem>>, vector<24x1xf32>
    %4 = vector.broadcast %3 : vector<24x1xf32> to vector<24x288xf32>
    %5 = arith.addf %2, %4 : vector<24x288xf32>
    %6 = arith.truncf %5 : vector<24x288xf32> to vector<24x288xbf16>
    %c0_5 = arith.constant 0 : index
    %c0_6 = arith.constant 0 : index
    %7 = vector.load %arg4[%c0_5, %c0_6] : memref<24x288xbf16, #tpu.memory_space<vmem>>, vector<24x288xbf16>
    tpu.vector_store %arg4[%c0_5, %c0_6], %6 {strides = array<i32>} : memref<24x288xbf16, #tpu.memory_space<vmem>>, vector<24x288xbf16>,
    return
  }
  func.func @transform_0(%arg0: i32) -> (i32, i32) {
    %c0_i32 = arith.constant 0 : i32
    %c0_i32_0 = arith.constant 0 : i32
    %c0_i32_1 = arith.constant 0 : i32
    return %c0_i32, %c0_i32_0 : i32, i32
  }
  func.func @transform_1(%arg0: i32) -> (i32, i32) {
    %c0_i32 = arith.constant 0 : i32
    %c0_i32_0 = arith.constant 0 : i32
    return %c0_i32, %arg0 : i32, i32
  }
  func.func @transform_2(%arg0: i32) -> (i32, i32) {
    %c0_i32 = arith.constant 0 : i32
    %c0_i32_0 = arith.constant 0 : i32
    %c0_i32_1 = arith.constant 0 : i32
    return %c0_i32, %c0_i32_0 : i32, i32
  }
  func.func @transform_3(%arg0: i32) -> (i32, i32) {
    %c0_i32 = arith.constant 0 : i32
    %c0_i32_0 = arith.constant 0 : i32
    return %c0_i32, %arg0 : i32, i32
  }
}

module attributes {stable_mosaic.version = 11 : i64} {
  func.func @_gemm_bias_kernel(%arg0: i32, %arg1: memref<24x144xbf16, #tpu.memory_space<vmem>>, %arg2: memref<144x288xbf16, #tpu.memory_space<vmem>>, %arg3: memref<24x1xf32, #tpu.memory_space<vmem>>, %arg4: memref<24x288xbf16, #tpu.memory_space<vmem>>) attributes {dimension_semantics = [#tpu.dimension_semantics<parallel>], iteration_bounds = array<i64: 1>, scalar_prefetch = 0 : i64, scratch_operands = 0 : i64, tpu.core_type = #tpu.core_type<tc>, window_params = [{pipeline_mode = #tpu.pipeline_mode<synchronous>, transform_indices = @transform_0, window_bounds = array<i64: 24, 144>}, {transform_indices = @transform_1, window_bounds = array<i64: 144, 288>}, {pipeline_mode = #tpu.pipeline_mode<synchronous>, transform_indices = @transform_2, window_bounds = array<i64: 24, 1>}, {transform_indices = @transform_3, window_bounds = array<i64: 24, 288>}]} {
    %c0 = arith.constant 0 : index
    %c0_0 = arith.constant 0 : index
    %0 = vector.load %arg1[%c0, %c0_0] : memref<24x144xbf16, #tpu.memory_space<vmem>>, vector<24x144xbf16>
    %c0_1 = arith.constant 0 : index
    %c0_2 = arith.constant 0 : index
    %1 = vector.load %arg2[%c0_1, %c0_2] : memref<144x288xbf16, #tpu.memory_space<vmem>>, vector<144x288xbf16>
    %cst = arith.constant dense<0.000000e+00> : vector<24x288xf32>
    %2 = tpu.matmul %0, %1, %cst {dimension_numbers = #tpu.dot_dimension_numbers<[1], [0], [0], [1], [0, 0, 1, 1], [], []>} : vector<24x144xbf16>, vector<144x288xbf16>, vector<24x288xf32> -> vector<24x288xf32>
    %c0_3 = arith.constant 0 : index
    %c0_4 = arith.constant 0 : index
    %3 = vector.load %arg3[%c0_3, %c0_4] : memref<24x1xf32, #tpu.memory_space<vmem>>, vector<24x1xf32>
    %4 = vector.broadcast %3 : vector<24x1xf32> to vector<24x288xf32>
    %5 = arith.addf %2, %4 : vector<24x288xf32>
    %6 = arith.truncf %5 : vector<24x288xf32> to vector<24x288xbf16>
    %c0_5 = arith.constant 0 : index
    %c0_6 = arith.constant 0 : index
    %7 = vector.load %arg4[%c0_5, %c0_6] : memref<24x288xbf16, #tpu.memory_space<vmem>>, vector<24x288xbf16>
    tpu.vector_store %arg4[%c0_5, %c0_6], %6 {strides = array<i32>} : memref<24x288xbf16, #tpu.memory_space<vmem>>, vector<24x288xbf16>,
    return
  }
  func.func @transform_0(%arg0: i32) -> (i32, i32) {
    %c0_i32 = arith.constant 0 : i32
    %c0_i32_0 = arith.constant 0 : i32
    %c0_i32_1 = arith.constant 0 : i32
    return %c0_i32, %c0_i32_0 : i32, i32
  }
  func.func @transform_1(%arg0: i32) -> (i32, i32) {
    %c0_i32 = arith.constant 0 : i32
    %c0_i32_0 = arith.constant 0 : i32
    return %c0_i32, %arg0 : i32, i32
  }
  func.func @transform_2(%arg0: i32) -> (i32, i32) {
    %c0_i32 = arith.constant 0 : i32
    %c0_i32_0 = arith.constant 0 : i32
    %c0_i32_1 = arith.constant 0 : i32
    return %c0_i32, %c0_i32_0 : i32, i32
  }
  func.func @transform_3(%arg0: i32) -> (i32, i32) {
    %c0_i32 = arith.constant 0 : i32
    %c0_i32_0 = arith.constant 0 : i32
    return %c0_i32, %arg0 : i32, i32
  }
}

module attributes {stable_mosaic.version = 11 : i64} {
  func.func @_gemm_bias_kernel(%arg0: i32, %arg1: memref<24x216xbf16, #tpu.memory_space<vmem>>, %arg2: memref<216x288xbf16, #tpu.memory_space<vmem>>, %arg3: memref<24x1xf32, #tpu.memory_space<vmem>>, %arg4: memref<24x288xbf16, #tpu.memory_space<vmem>>) attributes {dimension_semantics = [#tpu.dimension_semantics<parallel>], iteration_bounds = array<i64: 1>, scalar_prefetch = 0 : i64, scratch_operands = 0 : i64, tpu.core_type = #tpu.core_type<tc>, window_params = [{pipeline_mode = #tpu.pipeline_mode<synchronous>, transform_indices = @transform_0, window_bounds = array<i64: 24, 216>}, {transform_indices = @transform_1, window_bounds = array<i64: 216, 288>}, {pipeline_mode = #tpu.pipeline_mode<synchronous>, transform_indices = @transform_2, window_bounds = array<i64: 24, 1>}, {transform_indices = @transform_3, window_bounds = array<i64: 24, 288>}]} {
    %c0 = arith.constant 0 : index
    %c0_0 = arith.constant 0 : index
    %0 = vector.load %arg1[%c0, %c0_0] : memref<24x216xbf16, #tpu.memory_space<vmem>>, vector<24x216xbf16>
    %c0_1 = arith.constant 0 : index
    %c0_2 = arith.constant 0 : index
    %1 = vector.load %arg2[%c0_1, %c0_2] : memref<216x288xbf16, #tpu.memory_space<vmem>>, vector<216x288xbf16>
    %cst = arith.constant dense<0.000000e+00> : vector<24x288xf32>
    %2 = tpu.matmul %0, %1, %cst {dimension_numbers = #tpu.dot_dimension_numbers<[1], [0], [0], [1], [0, 0, 1, 1], [], []>} : vector<24x216xbf16>, vector<216x288xbf16>, vector<24x288xf32> -> vector<24x288xf32>
    %c0_3 = arith.constant 0 : index
    %c0_4 = arith.constant 0 : index
    %3 = vector.load %arg3[%c0_3, %c0_4] : memref<24x1xf32, #tpu.memory_space<vmem>>, vector<24x1xf32>
    %4 = vector.broadcast %3 : vector<24x1xf32> to vector<24x288xf32>
    %5 = arith.addf %2, %4 : vector<24x288xf32>
    %6 = arith.truncf %5 : vector<24x288xf32> to vector<24x288xbf16>
    %c0_5 = arith.constant 0 : index
    %c0_6 = arith.constant 0 : index
    %7 = vector.load %arg4[%c0_5, %c0_6] : memref<24x288xbf16, #tpu.memory_space<vmem>>, vector<24x288xbf16>
    tpu.vector_store %arg4[%c0_5, %c0_6], %6 {strides = array<i32>} : memref<24x288xbf16, #tpu.memory_space<vmem>>, vector<24x288xbf16>,
    return
  }
  func.func @transform_0(%arg0: i32) -> (i32, i32) {
    %c0_i32 = arith.constant 0 : i32
    %c0_i32_0 = arith.constant 0 : i32
    %c0_i32_1 = arith.constant 0 : i32
    return %c0_i32, %c0_i32_0 : i32, i32
  }
  func.func @transform_1(%arg0: i32) -> (i32, i32) {
    %c0_i32 = arith.constant 0 : i32
    %c0_i32_0 = arith.constant 0 : i32
    return %c0_i32, %arg0 : i32, i32
  }
  func.func @transform_2(%arg0: i32) -> (i32, i32) {
    %c0_i32 = arith.constant 0 : i32
    %c0_i32_0 = arith.constant 0 : i32
    %c0_i32_1 = arith.constant 0 : i32
    return %c0_i32, %c0_i32_0 : i32, i32
  }
  func.func @transform_3(%arg0: i32) -> (i32, i32) {
    %c0_i32 = arith.constant 0 : i32
    %c0_i32_0 = arith.constant 0 : i32
    return %c0_i32, %arg0 : i32, i32
  }
}

module attributes {stable_mosaic.version = 11 : i64} {
  func.func @_gemm_bias_maxq_relu_kernel(%arg0: i32, %arg1: i32, %arg2: memref<20x2200xbf16, #tpu.memory_space<vmem>>, %arg3: memref<1x2200x32xbf16, #tpu.memory_space<vmem>>, %arg4: memref<20x1xf32, #tpu.memory_space<vmem>>, %arg5: memref<20x32xbf16, #tpu.memory_space<vmem>>, %arg6: memref<20x32xf32, #tpu.memory_space<vmem>>) attributes {dimension_semantics = [#tpu.dimension_semantics<parallel>, #tpu.dimension_semantics<arbitrary>], iteration_bounds = array<i64: 1, 4>, scalar_prefetch = 0 : i64, scratch_operands = 1 : i64, tpu.core_type = #tpu.core_type<tc>, window_params = [{pipeline_mode = #tpu.pipeline_mode<synchronous>, transform_indices = @transform_0, window_bounds = array<i64: 20, 2200>}, {transform_indices = @transform_1, window_bounds = array<i64: 1, 2200, 32>}, {pipeline_mode = #tpu.pipeline_mode<synchronous>, transform_indices = @transform_2, window_bounds = array<i64: 20, 1>}, {transform_indices = @transform_3, window_bounds = array<i64: 20, 32>}]} {
    %c0 = arith.constant 0 : index
    %c0_0 = arith.constant 0 : index
    %0 = vector.load %arg2[%c0, %c0_0] : memref<20x2200xbf16, #tpu.memory_space<vmem>>, vector<20x2200xbf16>
    %c0_1 = arith.constant 0 : index
    %c0_2 = arith.constant 0 : index
    %c0_3 = arith.constant 0 : index
    %1 = vector.load %arg3[%c0_1, %c0_2, %c0_3] : memref<1x2200x32xbf16, #tpu.memory_space<vmem>>, vector<1x2200x32xbf16>
    %2 = vector.shape_cast %1 : vector<1x2200x32xbf16> to vector<2200x32xbf16>
    %cst = arith.constant dense<0.000000e+00> : vector<20x32xf32>
    %3 = tpu.matmul %0, %2, %cst {dimension_numbers = #tpu.dot_dimension_numbers<[1], [0], [0], [1], [0, 0, 1, 1], [], []>} : vector<20x2200xbf16>, vector<2200x32xbf16>, vector<20x32xf32> -> vector<20x32xf32>
    %c0_4 = arith.constant 0 : index
    %c0_5 = arith.constant 0 : index
    %4 = vector.load %arg4[%c0_4, %c0_5] : memref<20x1xf32, #tpu.memory_space<vmem>>, vector<20x1xf32>
    %5 = vector.broadcast %4 : vector<20x1xf32> to vector<20x32xf32>
    %6 = arith.addf %3, %5 : vector<20x32xf32>
    %c0_i32 = arith.constant 0 : i32
    %7 = arith.cmpi eq, %arg1, %c0_i32 : i32
    %8 = arith.extui %7 : i1 to i32
    %c0_i32_6 = arith.constant 0 : i32
    %9 = arith.cmpi ne, %8, %c0_i32_6 : i32
    scf.if %9 {
      %c0_10 = arith.constant 0 : index
      %c0_11 = arith.constant 0 : index
      %16 = vector.load %arg6[%c0_10, %c0_11] : memref<20x32xf32, #tpu.memory_space<vmem>>, vector<20x32xf32>
      tpu.vector_store %arg6[%c0_10, %c0_11], %6 {strides = array<i32>} : memref<20x32xf32, #tpu.memory_space<vmem>>, vector<20x32xf32>,
    } else {
    }
    %c0_i32_7 = arith.constant 0 : i32
    %10 = arith.cmpi sgt, %arg1, %c0_i32_7 : i32
    %11 = arith.extui %10 : i1 to i32
    %c0_i32_8 = arith.constant 0 : i32
    %12 = arith.cmpi ne, %11, %c0_i32_8 : i32
    scf.if %12 {
      %c0_10 = arith.constant 0 : index
      %c0_11 = arith.constant 0 : index
      %16 = vector.load %arg6[%c0_10, %c0_11] : memref<20x32xf32, #tpu.memory_space<vmem>>, vector<20x32xf32>
      %17 = arith.maximumf %16, %6 : vector<20x32xf32>
      %c0_12 = arith.constant 0 : index
      %c0_13 = arith.constant 0 : index
      %18 = vector.load %arg6[%c0_12, %c0_13] : memref<20x32xf32, #tpu.memory_space<vmem>>, vector<20x32xf32>
      tpu.vector_store %arg6[%c0_12, %c0_13], %17 {strides = array<i32>} : memref<20x32xf32, #tpu.memory_space<vmem>>, vector<20x32xf32>,
    } else {
    }
    %c3_i32 = arith.constant 3 : i32
    %13 = arith.cmpi eq, %arg1, %c3_i32 : i32
    %14 = arith.extui %13 : i1 to i32
    %c0_i32_9 = arith.constant 0 : i32
    %15 = arith.cmpi ne, %14, %c0_i32_9 : i32
    scf.if %15 {
      %c0_10 = arith.constant 0 : index
      %c0_11 = arith.constant 0 : index
      %16 = vector.load %arg6[%c0_10, %c0_11] : memref<20x32xf32, #tpu.memory_space<vmem>>, vector<20x32xf32>
      %cst_12 = arith.constant 0.000000e+00 : f32
      %17 = vector.broadcast %cst_12 : f32 to vector<20x32xf32>
      %18 = arith.maximumf %16, %17 : vector<20x32xf32>
      %19 = arith.truncf %18 : vector<20x32xf32> to vector<20x32xbf16>
      %c0_13 = arith.constant 0 : index
      %c0_14 = arith.constant 0 : index
      %20 = vector.load %arg5[%c0_13, %c0_14] : memref<20x32xbf16, #tpu.memory_space<vmem>>, vector<20x32xbf16>
      tpu.vector_store %arg5[%c0_13, %c0_14], %19 {strides = array<i32>} : memref<20x32xbf16, #tpu.memory_space<vmem>>, vector<20x32xbf16>,
    } else {
    }
    return
  }
  func.func @transform_0(%arg0: i32, %arg1: i32) -> (i32, i32) {
    %c0_i32 = arith.constant 0 : i32
    %c0_i32_0 = arith.constant 0 : i32
    %c0_i32_1 = arith.constant 0 : i32
    return %c0_i32, %c0_i32_0 : i32, i32
  }
  func.func @transform_1(%arg0: i32, %arg1: i32) -> (i32, i32, i32) {
    %c0_i32 = arith.constant 0 : i32
    %c0_i32_0 = arith.constant 0 : i32
    return %arg1, %c0_i32, %arg0 : i32, i32, i32
  }
  func.func @transform_2(%arg0: i32, %arg1: i32) -> (i32, i32) {
    %c0_i32 = arith.constant 0 : i32
    %c0_i32_0 = arith.constant 0 : i32
    %c0_i32_1 = arith.constant 0 : i32
    return %c0_i32, %c0_i32_0 : i32, i32
  }
  func.func @transform_3(%arg0: i32, %arg1: i32) -> (i32, i32) {
    %c0_i32 = arith.constant 0 : i32
    %c0_i32_0 = arith.constant 0 : i32
    return %c0_i32, %arg0 : i32, i32
  }
}

module attributes {stable_mosaic.version = 11 : i64} {
  func.func @_gemm_bias_kernel(%arg0: i32, %arg1: memref<72x180xbf16, #tpu.memory_space<vmem>>, %arg2: memref<180x32xbf16, #tpu.memory_space<vmem>>, %arg3: memref<72x1xf32, #tpu.memory_space<vmem>>, %arg4: memref<72x32xbf16, #tpu.memory_space<vmem>>) attributes {dimension_semantics = [#tpu.dimension_semantics<parallel>], iteration_bounds = array<i64: 1>, scalar_prefetch = 0 : i64, scratch_operands = 0 : i64, tpu.core_type = #tpu.core_type<tc>, window_params = [{pipeline_mode = #tpu.pipeline_mode<synchronous>, transform_indices = @transform_0, window_bounds = array<i64: 72, 180>}, {transform_indices = @transform_1, window_bounds = array<i64: 180, 32>}, {pipeline_mode = #tpu.pipeline_mode<synchronous>, transform_indices = @transform_2, window_bounds = array<i64: 72, 1>}, {transform_indices = @transform_3, window_bounds = array<i64: 72, 32>}]} {
    %c0 = arith.constant 0 : index
    %c0_0 = arith.constant 0 : index
    %0 = vector.load %arg1[%c0, %c0_0] : memref<72x180xbf16, #tpu.memory_space<vmem>>, vector<72x180xbf16>
    %c0_1 = arith.constant 0 : index
    %c0_2 = arith.constant 0 : index
    %1 = vector.load %arg2[%c0_1, %c0_2] : memref<180x32xbf16, #tpu.memory_space<vmem>>, vector<180x32xbf16>
    %cst = arith.constant dense<0.000000e+00> : vector<72x32xf32>
    %2 = tpu.matmul %0, %1, %cst {dimension_numbers = #tpu.dot_dimension_numbers<[1], [0], [0], [1], [0, 0, 1, 1], [], []>} : vector<72x180xbf16>, vector<180x32xbf16>, vector<72x32xf32> -> vector<72x32xf32>
    %c0_3 = arith.constant 0 : index
    %c0_4 = arith.constant 0 : index
    %3 = vector.load %arg3[%c0_3, %c0_4] : memref<72x1xf32, #tpu.memory_space<vmem>>, vector<72x1xf32>
    %4 = vector.broadcast %3 : vector<72x1xf32> to vector<72x32xf32>
    %5 = arith.addf %2, %4 : vector<72x32xf32>
    %6 = arith.truncf %5 : vector<72x32xf32> to vector<72x32xbf16>
    %c0_5 = arith.constant 0 : index
    %c0_6 = arith.constant 0 : index
    %7 = vector.load %arg4[%c0_5, %c0_6] : memref<72x32xbf16, #tpu.memory_space<vmem>>, vector<72x32xbf16>
    tpu.vector_store %arg4[%c0_5, %c0_6], %6 {strides = array<i32>} : memref<72x32xbf16, #tpu.memory_space<vmem>>, vector<72x32xbf16>,
    return
  }
  func.func @transform_0(%arg0: i32) -> (i32, i32) {
    %c0_i32 = arith.constant 0 : i32
    %c0_i32_0 = arith.constant 0 : i32
    %c0_i32_1 = arith.constant 0 : i32
    return %c0_i32, %c0_i32_0 : i32, i32
  }
  func.func @transform_1(%arg0: i32) -> (i32, i32) {
    %c0_i32 = arith.constant 0 : i32
    %c0_i32_0 = arith.constant 0 : i32
    return %c0_i32, %arg0 : i32, i32
  }
  func.func @transform_2(%arg0: i32) -> (i32, i32) {
    %c0_i32 = arith.constant 0 : i32
    %c0_i32_0 = arith.constant 0 : i32
    %c0_i32_1 = arith.constant 0 : i32
    return %c0_i32, %c0_i32_0 : i32, i32
  }
  func.func @transform_3(%arg0: i32) -> (i32, i32) {
    %c0_i32 = arith.constant 0 : i32
    %c0_i32_0 = arith.constant 0 : i32
    return %c0_i32, %arg0 : i32, i32
  }
}

module attributes {stable_mosaic.version = 11 : i64} {
  func.func @_gemm_bias_kernel(%arg0: i32, %arg1: memref<24x400xbf16, #tpu.memory_space<vmem>>, %arg2: memref<400x32xbf16, #tpu.memory_space<vmem>>, %arg3: memref<24x1xf32, #tpu.memory_space<vmem>>, %arg4: memref<24x32xbf16, #tpu.memory_space<vmem>>) attributes {dimension_semantics = [#tpu.dimension_semantics<parallel>], iteration_bounds = array<i64: 1>, scalar_prefetch = 0 : i64, scratch_operands = 0 : i64, tpu.core_type = #tpu.core_type<tc>, window_params = [{pipeline_mode = #tpu.pipeline_mode<synchronous>, transform_indices = @transform_0, window_bounds = array<i64: 24, 400>}, {transform_indices = @transform_1, window_bounds = array<i64: 400, 32>}, {pipeline_mode = #tpu.pipeline_mode<synchronous>, transform_indices = @transform_2, window_bounds = array<i64: 24, 1>}, {transform_indices = @transform_3, window_bounds = array<i64: 24, 32>}]} {
    %c0 = arith.constant 0 : index
    %c0_0 = arith.constant 0 : index
    %0 = vector.load %arg1[%c0, %c0_0] : memref<24x400xbf16, #tpu.memory_space<vmem>>, vector<24x400xbf16>
    %c0_1 = arith.constant 0 : index
    %c0_2 = arith.constant 0 : index
    %1 = vector.load %arg2[%c0_1, %c0_2] : memref<400x32xbf16, #tpu.memory_space<vmem>>, vector<400x32xbf16>
    %cst = arith.constant dense<0.000000e+00> : vector<24x32xf32>
    %2 = tpu.matmul %0, %1, %cst {dimension_numbers = #tpu.dot_dimension_numbers<[1], [0], [0], [1], [0, 0, 1, 1], [], []>} : vector<24x400xbf16>, vector<400x32xbf16>, vector<24x32xf32> -> vector<24x32xf32>
    %c0_3 = arith.constant 0 : index
    %c0_4 = arith.constant 0 : index
    %3 = vector.load %arg3[%c0_3, %c0_4] : memref<24x1xf32, #tpu.memory_space<vmem>>, vector<24x1xf32>
    %4 = vector.broadcast %3 : vector<24x1xf32> to vector<24x32xf32>
    %5 = arith.addf %2, %4 : vector<24x32xf32>
    %6 = arith.truncf %5 : vector<24x32xf32> to vector<24x32xbf16>
    %c0_5 = arith.constant 0 : index
    %c0_6 = arith.constant 0 : index
    %7 = vector.load %arg4[%c0_5, %c0_6] : memref<24x32xbf16, #tpu.memory_space<vmem>>, vector<24x32xbf16>
    tpu.vector_store %arg4[%c0_5, %c0_6], %6 {strides = array<i32>} : memref<24x32xbf16, #tpu.memory_space<vmem>>, vector<24x32xbf16>,
    return
  }
  func.func @transform_0(%arg0: i32) -> (i32, i32) {
    %c0_i32 = arith.constant 0 : i32
    %c0_i32_0 = arith.constant 0 : i32
    %c0_i32_1 = arith.constant 0 : i32
    return %c0_i32, %c0_i32_0 : i32, i32
  }
  func.func @transform_1(%arg0: i32) -> (i32, i32) {
    %c0_i32 = arith.constant 0 : i32
    %c0_i32_0 = arith.constant 0 : i32
    return %c0_i32, %arg0 : i32, i32
  }
  func.func @transform_2(%arg0: i32) -> (i32, i32) {
    %c0_i32 = arith.constant 0 : i32
    %c0_i32_0 = arith.constant 0 : i32
    %c0_i32_1 = arith.constant 0 : i32
    return %c0_i32, %c0_i32_0 : i32, i32
  }
  func.func @transform_3(%arg0: i32) -> (i32, i32) {
    %c0_i32 = arith.constant 0 : i32
    %c0_i32_0 = arith.constant 0 : i32
    return %c0_i32, %arg0 : i32, i32
  }
}

module attributes {stable_mosaic.version = 11 : i64} {
  func.func @_gemm_bias_kernel(%arg0: i32, %arg1: memref<24x144xbf16, #tpu.memory_space<vmem>>, %arg2: memref<144x32xbf16, #tpu.memory_space<vmem>>, %arg3: memref<24x1xf32, #tpu.memory_space<vmem>>, %arg4: memref<24x32xbf16, #tpu.memory_space<vmem>>) attributes {dimension_semantics = [#tpu.dimension_semantics<parallel>], iteration_bounds = array<i64: 1>, scalar_prefetch = 0 : i64, scratch_operands = 0 : i64, tpu.core_type = #tpu.core_type<tc>, window_params = [{pipeline_mode = #tpu.pipeline_mode<synchronous>, transform_indices = @transform_0, window_bounds = array<i64: 24, 144>}, {transform_indices = @transform_1, window_bounds = array<i64: 144, 32>}, {pipeline_mode = #tpu.pipeline_mode<synchronous>, transform_indices = @transform_2, window_bounds = array<i64: 24, 1>}, {transform_indices = @transform_3, window_bounds = array<i64: 24, 32>}]} {
    %c0 = arith.constant 0 : index
    %c0_0 = arith.constant 0 : index
    %0 = vector.load %arg1[%c0, %c0_0] : memref<24x144xbf16, #tpu.memory_space<vmem>>, vector<24x144xbf16>
    %c0_1 = arith.constant 0 : index
    %c0_2 = arith.constant 0 : index
    %1 = vector.load %arg2[%c0_1, %c0_2] : memref<144x32xbf16, #tpu.memory_space<vmem>>, vector<144x32xbf16>
    %cst = arith.constant dense<0.000000e+00> : vector<24x32xf32>
    %2 = tpu.matmul %0, %1, %cst {dimension_numbers = #tpu.dot_dimension_numbers<[1], [0], [0], [1], [0, 0, 1, 1], [], []>} : vector<24x144xbf16>, vector<144x32xbf16>, vector<24x32xf32> -> vector<24x32xf32>
    %c0_3 = arith.constant 0 : index
    %c0_4 = arith.constant 0 : index
    %3 = vector.load %arg3[%c0_3, %c0_4] : memref<24x1xf32, #tpu.memory_space<vmem>>, vector<24x1xf32>
    %4 = vector.broadcast %3 : vector<24x1xf32> to vector<24x32xf32>
    %5 = arith.addf %2, %4 : vector<24x32xf32>
    %6 = arith.truncf %5 : vector<24x32xf32> to vector<24x32xbf16>
    %c0_5 = arith.constant 0 : index
    %c0_6 = arith.constant 0 : index
    %7 = vector.load %arg4[%c0_5, %c0_6] : memref<24x32xbf16, #tpu.memory_space<vmem>>, vector<24x32xbf16>
    tpu.vector_store %arg4[%c0_5, %c0_6], %6 {strides = array<i32>} : memref<24x32xbf16, #tpu.memory_space<vmem>>, vector<24x32xbf16>,
    return
  }
  func.func @transform_0(%arg0: i32) -> (i32, i32) {
    %c0_i32 = arith.constant 0 : i32
    %c0_i32_0 = arith.constant 0 : i32
    %c0_i32_1 = arith.constant 0 : i32
    return %c0_i32, %c0_i32_0 : i32, i32
  }
  func.func @transform_1(%arg0: i32) -> (i32, i32) {
    %c0_i32 = arith.constant 0 : i32
    %c0_i32_0 = arith.constant 0 : i32
    return %c0_i32, %arg0 : i32, i32
  }
  func.func @transform_2(%arg0: i32) -> (i32, i32) {
    %c0_i32 = arith.constant 0 : i32
    %c0_i32_0 = arith.constant 0 : i32
    %c0_i32_1 = arith.constant 0 : i32
    return %c0_i32, %c0_i32_0 : i32, i32
  }
  func.func @transform_3(%arg0: i32) -> (i32, i32) {
    %c0_i32 = arith.constant 0 : i32
    %c0_i32_0 = arith.constant 0 : i32
    return %c0_i32, %arg0 : i32, i32
  }
}

module attributes {stable_mosaic.version = 11 : i64} {
  func.func @_gemm_bias_kernel(%arg0: i32, %arg1: memref<24x216xbf16, #tpu.memory_space<vmem>>, %arg2: memref<216x32xbf16, #tpu.memory_space<vmem>>, %arg3: memref<24x1xf32, #tpu.memory_space<vmem>>, %arg4: memref<24x32xbf16, #tpu.memory_space<vmem>>) attributes {dimension_semantics = [#tpu.dimension_semantics<parallel>], iteration_bounds = array<i64: 1>, scalar_prefetch = 0 : i64, scratch_operands = 0 : i64, tpu.core_type = #tpu.core_type<tc>, window_params = [{pipeline_mode = #tpu.pipeline_mode<synchronous>, transform_indices = @transform_0, window_bounds = array<i64: 24, 216>}, {transform_indices = @transform_1, window_bounds = array<i64: 216, 32>}, {pipeline_mode = #tpu.pipeline_mode<synchronous>, transform_indices = @transform_2, window_bounds = array<i64: 24, 1>}, {transform_indices = @transform_3, window_bounds = array<i64: 24, 32>}]} {
    %c0 = arith.constant 0 : index
    %c0_0 = arith.constant 0 : index
    %0 = vector.load %arg1[%c0, %c0_0] : memref<24x216xbf16, #tpu.memory_space<vmem>>, vector<24x216xbf16>
    %c0_1 = arith.constant 0 : index
    %c0_2 = arith.constant 0 : index
    %1 = vector.load %arg2[%c0_1, %c0_2] : memref<216x32xbf16, #tpu.memory_space<vmem>>, vector<216x32xbf16>
    %cst = arith.constant dense<0.000000e+00> : vector<24x32xf32>
    %2 = tpu.matmul %0, %1, %cst {dimension_numbers = #tpu.dot_dimension_numbers<[1], [0], [0], [1], [0, 0, 1, 1], [], []>} : vector<24x216xbf16>, vector<216x32xbf16>, vector<24x32xf32> -> vector<24x32xf32>
    %c0_3 = arith.constant 0 : index
    %c0_4 = arith.constant 0 : index
    %3 = vector.load %arg3[%c0_3, %c0_4] : memref<24x1xf32, #tpu.memory_space<vmem>>, vector<24x1xf32>
    %4 = vector.broadcast %3 : vector<24x1xf32> to vector<24x32xf32>
    %5 = arith.addf %2, %4 : vector<24x32xf32>
    %6 = arith.truncf %5 : vector<24x32xf32> to vector<24x32xbf16>
    %c0_5 = arith.constant 0 : index
    %c0_6 = arith.constant 0 : index
    %7 = vector.load %arg4[%c0_5, %c0_6] : memref<24x32xbf16, #tpu.memory_space<vmem>>, vector<24x32xbf16>
    tpu.vector_store %arg4[%c0_5, %c0_6], %6 {strides = array<i32>} : memref<24x32xbf16, #tpu.memory_space<vmem>>, vector<24x32xbf16>,
    return
  }
  func.func @transform_0(%arg0: i32) -> (i32, i32) {
    %c0_i32 = arith.constant 0 : i32
    %c0_i32_0 = arith.constant 0 : i32
    %c0_i32_1 = arith.constant 0 : i32
    return %c0_i32, %c0_i32_0 : i32, i32
  }
  func.func @transform_1(%arg0: i32) -> (i32, i32) {
    %c0_i32 = arith.constant 0 : i32
    %c0_i32_0 = arith.constant 0 : i32
    return %c0_i32, %arg0 : i32, i32
  }
  func.func @transform_2(%arg0: i32) -> (i32, i32) {
    %c0_i32 = arith.constant 0 : i32
    %c0_i32_0 = arith.constant 0 : i32
    %c0_i32_1 = arith.constant 0 : i32
    return %c0_i32, %c0_i32_0 : i32, i32
  }
  func.func @transform_3(%arg0: i32) -> (i32, i32) {
    %c0_i32 = arith.constant 0 : i32
    %c0_i32_0 = arith.constant 0 : i32
    return %c0_i32, %arg0 : i32, i32
  }
}

module attributes {stable_mosaic.version = 11 : i64} {
  func.func @_gemm_bias_kernel(%arg0: i32, %arg1: memref<10x1408xbf16, #tpu.memory_space<vmem>>, %arg2: memref<1408x2xbf16, #tpu.memory_space<vmem>>, %arg3: memref<10x1xf32, #tpu.memory_space<vmem>>, %arg4: memref<10x2xf32, #tpu.memory_space<vmem>>) attributes {dimension_semantics = [#tpu.dimension_semantics<parallel>], iteration_bounds = array<i64: 1>, scalar_prefetch = 0 : i64, scratch_operands = 0 : i64, tpu.core_type = #tpu.core_type<tc>, window_params = [{pipeline_mode = #tpu.pipeline_mode<synchronous>, transform_indices = @transform_0, window_bounds = array<i64: 10, 1408>}, {transform_indices = @transform_1, window_bounds = array<i64: 1408, 2>}, {pipeline_mode = #tpu.pipeline_mode<synchronous>, transform_indices = @transform_2, window_bounds = array<i64: 10, 1>}, {transform_indices = @transform_3, window_bounds = array<i64: 10, 2>}]} {
    %c0 = arith.constant 0 : index
    %c0_0 = arith.constant 0 : index
    %0 = vector.load %arg1[%c0, %c0_0] : memref<10x1408xbf16, #tpu.memory_space<vmem>>, vector<10x1408xbf16>
    %c0_1 = arith.constant 0 : index
    %c0_2 = arith.constant 0 : index
    %1 = vector.load %arg2[%c0_1, %c0_2] : memref<1408x2xbf16, #tpu.memory_space<vmem>>, vector<1408x2xbf16>
    %cst = arith.constant dense<0.000000e+00> : vector<10x2xf32>
    %2 = tpu.matmul %0, %1, %cst {dimension_numbers = #tpu.dot_dimension_numbers<[1], [0], [0], [1], [0, 0, 1, 1], [], []>} : vector<10x1408xbf16>, vector<1408x2xbf16>, vector<10x2xf32> -> vector<10x2xf32>
    %c0_3 = arith.constant 0 : index
    %c0_4 = arith.constant 0 : index
    %3 = vector.load %arg3[%c0_3, %c0_4] : memref<10x1xf32, #tpu.memory_space<vmem>>, vector<10x1xf32>
    %4 = vector.broadcast %3 : vector<10x1xf32> to vector<10x2xf32>
    %5 = arith.addf %2, %4 : vector<10x2xf32>
    %c0_5 = arith.constant 0 : index
    %c0_6 = arith.constant 0 : index
    %6 = vector.load %arg4[%c0_5, %c0_6] : memref<10x2xf32, #tpu.memory_space<vmem>>, vector<10x2xf32>
    tpu.vector_store %arg4[%c0_5, %c0_6], %5 {strides = array<i32>} : memref<10x2xf32, #tpu.memory_space<vmem>>, vector<10x2xf32>,
    return
  }
  func.func @transform_0(%arg0: i32) -> (i32, i32) {
    %c0_i32 = arith.constant 0 : i32
    %c0_i32_0 = arith.constant 0 : i32
    %c0_i32_1 = arith.constant 0 : i32
    return %c0_i32, %c0_i32_0 : i32, i32
  }
  func.func @transform_1(%arg0: i32) -> (i32, i32) {
    %c0_i32 = arith.constant 0 : i32
    %c0_i32_0 = arith.constant 0 : i32
    return %c0_i32, %arg0 : i32, i32
  }
  func.func @transform_2(%arg0: i32) -> (i32, i32) {
    %c0_i32 = arith.constant 0 : i32
    %c0_i32_0 = arith.constant 0 : i32
    %c0_i32_1 = arith.constant 0 : i32
    return %c0_i32, %c0_i32_0 : i32, i32
  }
  func.func @transform_3(%arg0: i32) -> (i32, i32) {
    %c0_i32 = arith.constant 0 : i32
    %c0_i32_0 = arith.constant 0 : i32
    return %c0_i32, %arg0 : i32, i32
  }
}

</mosaic_0001>

<llo_original>
// kernel: net_forward.11
$region0: #{net_forward.11}
  #allocation0 [shape = 'u32[]', space=smem, size = 0x4, offset = 0x4, fixed_abs, tag = 'smem constant byte address 0x4 - core index']
  #allocation1 [shape = 'u32[72,128]{1,0:T(1,128)}', space=vmem, size = 0x9000, scoped, tag = 'internal scratch']
  #allocation2 [shape = 'f32[10,288]{1,0:T(8,128)}', space=vmem, size = 0x6000, scoped, tag = 'scratch operand']
  %s0 = inlined_call_operand.vmem [shape: bf16[10,25], index: 0, kind: input, shape index: {}]
  %s1 = inlined_call_operand.vmem [shape: bf16[4,25,288], index: 1, kind: input, shape index: {}]
  %s2 = inlined_call_operand.vmem [shape: f32[10,1], index: 2, kind: input, shape index: {}]
  %s3 = inlined_call_operand.vmem [shape: bf16[10,288], index: 3, kind: output, shape index: {}]
  %s4 = sld [smem:[#allocation0]]
  $region57: #{net_forward.11} parent=0
    _
  %s6 = ssub.s32 1, %s4
  %s7 = scalar_select 0, %s6, %s4
  loop: start=0, step=1, limit=6
  $region2: #{net_forward.11} parent=0 // loop_pre_header
    _
  $region3: #{net_forward.11} parent=0 // loop_header
    %s9 = sphi 0, %s13
    %p10 = scmp.ge.s32.totalorder %s9, 6
    %s16 = sphi 0, %s28
    %s17 = sphi 0, %s24
    %s18 = sphi 0, %s16
    %s19 = sphi 0, %s17
    %s20 = sphi 0, %s18
    %s21 = sphi 0, %s19
    %s29 = sphi 0, %s29
    %s31 = sphi 0, %s29
    %s32 = sphi 0, %s31
    %s46 = sphi 0, %s32
    %s54 = sphi 0, %s56
    %s57 = sphi 0, %s54
    %s58 = sphi 0, %s57
    %s74 = sphi 0, %s58
    %s78 = sphi 0, %s78
    %s80 = sphi 0, %s78
    %s81 = sphi 0, %s80
    %s95 = sphi 0, %s81
    %s101 = sphi 0, %s103
    %s104 = sphi 0, %s101
    %s105 = sphi 0, %s104
    %s121 = sphi 0, %s105
  $region4: #{net_forward.11} parent=0 // loop_header_branch
    %12 = sbr.rel (%p10) target = $region8
  $region5: #{net_forward.11} parent=0 // loop_body
    %s14 = ssub.s32 %s9, 1
    %s15 = ssub.s32 %s9, 2
    %s22 = sadd.s32 1, %s17
    %p23 = scmp.ge.s32.totalorder %s22, 4
    %s24 = scalar_select %p23, 0, %s22
    %s25 = sadd.s32 1, %s16
    %s26 = scalar_select %p23, %s25, %s16
    %p27 = scmp.ge.s32.totalorder %s26, 1
    %s28 = scalar_select %p27, 0, %s26
    %s30 = sadd.s32 %s29, 1
    %p33 = scmp.eq.s32.totalorder %s9, 3
    %p34 = scmp.ne.s32.totalorder %s29, %s31
    %p35 = scmp.eq.s32.totalorder %s9, 0
    %p36 = por %p34, %p35
    %p37 = scmp.ne.s32.totalorder %s29, %s31
    %p38 = scmp.eq.s32.totalorder %s14, 3
    %p39 = por %p37, %p38
    %p40 = scmp.ne.s32.totalorder %s31, %s32
    %p41 = scmp.eq.s32.totalorder %s14, 0
    %p42 = por %p40, %p41
    %p43 = scmp.ne.s32.totalorder %s31, %s32
    %p44 = scmp.eq.s32.totalorder %s15, 3
    %p45 = por %p43, %p44
    %p47 = scmp.ne.s32.totalorder %s32, %s46
    %p48 = scmp.eq.s32.totalorder %s15, 0
    %p49 = por %p47, %p48
    %s50 = ssub.s32 %s17, %s24
    %s51 = ssub.s32 %s16, %s28
    %s52 = sor.u32 %s50, %s51
    %p53 = scmp.eq.s32.totalorder %s52, 0
    %s55 = sadd.s32 %s54, 1
    %s56 = scalar_select %p53, %s54, %s55
    %p59 = pneg %p53
    %p60 = scmp.eq.s32.totalorder %s9, 3
    %p61 = por %p59, %p60
    %p62 = scmp.ne.s32.totalorder %s54, %s57
    %p63 = scmp.eq.s32.totalorder %s9, 0
    %p64 = por %p62, %p63
    %p65 = scmp.ne.s32.totalorder %s54, %s57
    %p66 = scmp.eq.s32.totalorder %s14, 3
    %p67 = por %p65, %p66
    %p68 = scmp.ne.s32.totalorder %s57, %s58
    %p69 = scmp.eq.s32.totalorder %s14, 0
    %p70 = por %p68, %p69
    %p71 = scmp.ne.s32.totalorder %s57, %s58
    %p72 = scmp.eq.s32.totalorder %s15, 3
    %p73 = por %p71, %p72
    %p75 = scmp.ne.s32.totalorder %s58, %s74
    %p76 = scmp.eq.s32.totalorder %s15, 0
    %p77 = por %p75, %p76
    %s79 = sadd.s32 %s78, 1
    %p82 = scmp.eq.s32.totalorder %s9, 3
    %p83 = scmp.ne.s32.totalorder %s78, %s80
    %p84 = scmp.eq.s32.totalorder %s9, 0
    %p85 = por %p83, %p84
    %p86 = scmp.ne.s32.totalorder %s78, %s80
    %p87 = scmp.eq.s32.totalorder %s14, 3
    %p88 = por %p86, %p87
    %p89 = scmp.ne.s32.totalorder %s80, %s81
    %p90 = scmp.eq.s32.totalorder %s14, 0
    %p91 = por %p89, %p90
    %p92 = scmp.ne.s32.totalorder %s80, %s81
    %p93 = scmp.eq.s32.totalorder %s15, 3
    %p94 = por %p92, %p93
    %p96 = scmp.ne.s32.totalorder %s81, %s95
    %p97 = scmp.eq.s32.totalorder %s15, 0
    %p98 = por %p96, %p97
    %s99 = ssub.s32 %s16, %s28
    %p100 = scmp.eq.s32.totalorder %s99, 0
    %s102 = sadd.s32 %s101, 1
    %s103 = scalar_select %p100, %s101, %s102
    %p106 = pneg %p100
    %p107 = scmp.eq.s32.totalorder %s9, 3
    %p108 = por %p106, %p107
    %p109 = scmp.ne.s32.totalorder %s101, %s104
    %p110 = scmp.eq.s32.totalorder %s9, 0
    %p111 = por %p109, %p110
    %p112 = scmp.ne.s32.totalorder %s101, %s104
    %p113 = scmp.eq.s32.totalorder %s14, 3
    %p114 = por %p112, %p113
    %p115 = scmp.ne.s32.totalorder %s104, %s105
    %p116 = scmp.eq.s32.totalorder %s14, 0
    %p117 = por %p115, %p116
    %p118 = scmp.ne.s32.totalorder %s104, %s105
    %p119 = scmp.eq.s32.totalorder %s15, 3
    %p120 = por %p118, %p119
    %p122 = scmp.ne.s32.totalorder %s105, %s121
    %p123 = scmp.eq.s32.totalorder %s15, 0
    %p124 = por %p122, %p123
    %p125 = scmp.le.s32.totalorder 1, %s9
    %p126 = scmp.lt.s32.totalorder %s9, 5
    %p127 = pnand %p125, %p126
    %p128 = pneg %p127
    // Predicated region
    $region9: #{net_forward.11} parent=5 // pred_check
      _
    $region10: #{net_forward.11} parent=5 // pred_check_branch
      %130 = sbr.rel (%p127) target = $region12
    $region11: #{net_forward.11} parent=5 // pred_region
      %s131 = ssub.s32 %s9, 1
      // Predicated region
      $region13: #{net_forward.11} parent=11 // pred_check
        %p132 = pneg %p42
      $region14: #{net_forward.11} parent=11 // pred_check_branch
        %134 = sbr.rel (%p132) target = $region16
      $region15: #{net_forward.11} parent=11 // pred_region
        _
      $region16: #{net_forward.11} parent=11 // pred_fallthru
        _
      // Predicated region
      $region17: #{net_forward.11} parent=11 // pred_check
        %p135 = pneg %p91
      $region18: #{net_forward.11} parent=11 // pred_check_branch
        %137 = sbr.rel (%p135) target = $region20
      $region19: #{net_forward.11} parent=11 // pred_region
        _
      $region20: #{net_forward.11} parent=11 // pred_fallthru
        _
    $region12: #{net_forward.11} parent=5 // pred_fallthru
      _
    %p138 = scmp.lt.s32.totalorder %s9, 4
    // Predicated region
    $region21: #{net_forward.11} parent=5 // pred_check
      %p139 = pneg %p138
    $region22: #{net_forward.11} parent=5 // pred_check_branch
      %141 = sbr.rel (%p139) target = $region24
    $region23: #{net_forward.11} parent=5 // pred_region
      // Predicated region
      $region25: #{net_forward.11} parent=23 // pred_check
        %p142 = pneg %p64
      $region26: #{net_forward.11} parent=23 // pred_check_branch
        %144 = sbr.rel (%p142) target = $region28
      $region27: #{net_forward.11} parent=23 // pred_region
        %s145 = smul.u32 3, %s16
        %p146 = scmp.lt.s32.totalorder %s17, 3
        %s147 = scalar_select %p146, %s17, 3
        %p148 = scmp.lt.s32.totalorder %s145, 2
        %s149 = scalar_select %p148, %s145, 2
        %s150 = smul.addr %s147, 12
        %s151 = sadd.s32 %s149, %s150
        %s152 = smul.addr %s151, 4
        %s153 = scalar_lea.vmem %s1, %s152
        %s154 = smul.u32 3, %s16
      $region28: #{net_forward.11} parent=23 // pred_fallthru
        _
    $region24: #{net_forward.11} parent=5 // pred_fallthru
      _
    %p155 = scmp.le.s32.totalorder 1, %s9
    %p156 = scmp.lt.s32.totalorder %s9, 5
    %p157 = pnand %p155, %p156
    %p158 = pneg %p157
    // Predicated region
    $region29: #{net_forward.11} parent=5 // pred_check
      _
    $region30: #{net_forward.11} parent=5 // pred_check_branch
      %160 = sbr.rel (%p157) target = $region32
    $region31: #{net_forward.11} parent=5 // pred_region
      %s161 = ssub.s32 %s9, 1
      %p162 = pneg %p42
      %p163 = pneg %p39
      %s164 = smul.u32 3, %s18
      %p165 = scmp.lt.s32.totalorder %s19, 3
      %s166 = scalar_select %p165, %s19, 3
      %p167 = scmp.lt.s32.totalorder %s164, 2
      %s168 = scalar_select %p167, %s164, 2
      %s169 = smul.addr %s166, 12
      %s170 = sadd.s32 %s168, %s169
      %s171 = smul.addr %s170, 4
      %s172 = scalar_lea.vmem %s1, %s171
      %p173 = pneg %p70
      %p174 = pneg %p67
      %p175 = pneg %p91
      %p176 = pneg %p88
      %p177 = pneg %p117
      %p178 = pneg %p114
      %s179 = smul.u32 3, %s18
      %p180 = scmp.lt.s32.totalorder %s179, 2
      %s181 = scalar_select %p180, %s179, 2
      %s182 = smul.addr %s181, 4
      %s183 = scalar_lea.vmem %s3, %s182
      %s184 = smul.u32 3, %s18
      %p185 = scmp.lt.s32.totalorder %s19, 3
      %s186 = scalar_select %p185, %s19, 3
      %p187 = scmp.lt.s32.totalorder %s184, 2
      %s188 = scalar_select %p187, %s184, 2
      %s189 = smul.addr %s186, 12
      %s190 = sadd.s32 %s188, %s189
      %s191 = smul.addr %s190, 4
      %s192 = scalar_lea.vmem %s1, %s191
      %s193 = smul.u32 3, %s18
      %s194 = smul.u32 3, %s18
      %p195 = scmp.lt.s32.totalorder %s194, 2
      %s196 = scalar_select %p195, %s194, 2
      %s197 = smul.addr %s196, 4
      %s198 = scalar_lea.vmem %s3, %s197
      %s199 = smul.u32 3, %s18
      %v201 = vld [vmem:[%s0] sm:$0xf]
      %v202 = vld [vmem:[%s0 + $0x4] sm:$0x1]
      %v203 = vld [vmem:[%s192] sm:$0xff]
      %v204 = vld [vmem:[%s192 + $0x8] sm:$0xf]
      %v205 = vld [vmem:[%s192 + $0xc] sm:$0xff]
      %v206 = vld [vmem:[%s192 + $0x14] sm:$0xf]
      %v207 = vld [vmem:[%s192 + $0x18] sm:$0xff]
      %v208 = vld [vmem:[%s192 + $0x20] sm:$0xf]
      %v209 = vld [vmem:[%s192 + $0x24] sm:$0x11]
      %v210 = vld [vmem:[%s192 + $0x2c] sm:$0x1]
      %v211 = vld [vmem:[%s2] sm:$0xff]
      %v212 = vld [vmem:[%s2 + $0x8] sm:$0x3]
      %214 = vset.pattern.permute.xlu0 0
      %215 = vperm.xlu0 %214, %v211
      %v216 = vpop.permute.xlu0 %215
      %219 = vset.pattern.permute.xlu0 0
      %220 = vperm.xlu0 %219, %v212
      %v221 = vpop.permute.xlu0 %220
      %v225 = vunpack.c.l.b16 %v201
      %v226 = vunpack.c.l.b16 %v202
      %v227 = vpack.c.b16 %v226, %v225
      %v236 = vunpack.c.l.b16 %v203
      %v237 = vunpack.c.h.b16 %v203
      %v238 = vunpack.c.l.b16 %v204
      %v239 = vunpack.c.l.b16 %v205
      %v240 = vunpack.c.h.b16 %v205
      %v241 = vunpack.c.l.b16 %v206
      %v242 = vunpack.c.l.b16 %v207
      %v243 = vunpack.c.h.b16 %v207
      %v244 = vunpack.c.l.b16 %v208
      %v245 = vunpack.c.l.b16 %v209
      %v246 = vunpack.c.h.b16 %v209
      %v247 = vunpack.c.l.b16 %v210
      %v248 = vpack.c.b16 %v239, %v236
      %v249 = vpack.c.b16 %v240, %v237
      %v250 = vpack.c.b16 %v241, %v238
      %v251 = vpack.c.b16 %v245, %v242
      %v252 = vpack.c.b16 %v246, %v243
      %v253 = vpack.c.b16 %v247, %v244
      %vm257 = vcmask 203776
      %v259 = vsel %vm257, %v227, 0
      %vm261 = vcmask 1043456
      %vm262 = vcmask 1044480
      %v263 = vsel %vm261, 4294967295, 65535
      %v264 = vsel %vm262, %v263, 0
      %v266 = vand.u32 %v251, %v264
      %v269 = vand.u32 %v252, %v264
      %v272 = vand.u32 %v253, %v264
      %274 = vmatpush.bf16.msra.mxu0 0
      %275 = vmatpush.bf16.msra.mxu0 0
      %276 = vmatpush.bf16.msra.mxu0 0
      %277 = vmatpush.bf16.msra.mxu0 0
      %278 = vmatpush.bf16.msra.mxu0 0
      %279 = vmatpush.bf16.msra.mxu0 0
      %280 = vmatpush.bf16.msra.mxu0 %v266
      %281 = vmatpush.bf16.msra.mxu0 %v248
      %282 = vmatmul.bf16.gmra.mxu0 %v259
      %v283 = vpop.f32.mrf.mxu0
      %v284 = vadd.f32 %v216, %v283
      %v285 = vpop.f32.mrf.mxu0
      %v286 = vadd.f32 %v221, %v285
      %287 = vdwg.mxu0
      %288 = vmatpush.bf16.msra.mxu0 0
      %289 = vmatpush.bf16.msra.mxu0 0
      %290 = vmatpush.bf16.msra.mxu0 0
      %291 = vmatpush.bf16.msra.mxu0 0
      %292 = vmatpush.bf16.msra.mxu0 0
      %293 = vmatpush.bf16.msra.mxu0 0
      %294 = vmatpush.bf16.msra.mxu0 %v269
      %295 = vmatpush.bf16.msra.mxu0 %v249
      %296 = vmatmul.bf16.gmra.mxu0 %v259
      %v297 = vpop.f32.mrf.mxu0
      %v298 = vadd.f32 %v216, %v297
      %v299 = vpop.f32.mrf.mxu0
      %v300 = vadd.f32 %v221, %v299
      %301 = vdwg.mxu0
      %302 = vmatpush.bf16.msra.mxu0 0
      %303 = vmatpush.bf16.msra.mxu0 0
      %304 = vmatpush.bf16.msra.mxu0 0
      %305 = vmatpush.bf16.msra.mxu0 0
      %306 = vmatpush.bf16.msra.mxu0 0
      %307 = vmatpush.bf16.msra.mxu0 0
      %308 = vmatpush.bf16.msra.mxu0 %v272
      %309 = vmatpush.bf16.msra.mxu0 %v250
      %310 = vmatmul.bf16.gmra.mxu0 %v259
      %v311 = vpop.f32.mrf.mxu0
      %v312 = vadd.f32 %v216, %v311
      %v313 = vpop.f32.mrf.mxu0
      %v314 = vadd.f32 %v221, %v313
      %315 = vdwg.mxu0
      %p316 = scmp.eq.s32.totalorder %s19, 0
      // Predicated region
      $region33: #{net_forward.11} parent=31 // pred_check
        %p317 = pneg %p316
      $region34: #{net_forward.11} parent=31 // pred_check_branch
        %319 = sbr.rel (%p317) target = $region36
      $region35: #{net_forward.11} parent=31 // pred_region
        %320 = vst [vmem:[#allocation2] sm:$0xff] %v284
        %321 = vst [vmem:[#allocation2 + $0x8] sm:$0xff] %v298
        %vm322 = vcmask 261120
        %323 = vst.msk [vmem:[#allocation2 + $0x10] sm:$0xff] %vm322, %v312
        %324 = vst [vmem:[#allocation2 + $0x18] sm:$0x3] %v286
        %325 = vst [vmem:[#allocation2 + $0x20] sm:$0x3] %v300
        %vm326 = vcmask 254976
        %327 = vst.msk [vmem:[#allocation2 + $0x28] sm:$0x3] %vm326, %v314
      $region36: #{net_forward.11} parent=31 // pred_fallthru
        _
      %p328 = scmp.gt.s32.totalorder %s19, 0
      // Predicated region
      $region37: #{net_forward.11} parent=31 // pred_check
        %p329 = pneg %p328
      $region38: #{net_forward.11} parent=31 // pred_check_branch
        %331 = sbr.rel (%p329) target = $region40
      $region39: #{net_forward.11} parent=31 // pred_region
        %v332 = vld [vmem:[#allocation2] sm:$0xff]
        %v333 = vld [vmem:[#allocation2 + $0x8] sm:$0xff]
        %v334 = vld [vmem:[#allocation2 + $0x10] sm:$0xff]
        %v335 = vld [vmem:[#allocation2 + $0x18] sm:$0x3]
        %v336 = vld [vmem:[#allocation2 + $0x20] sm:$0x3]
        %v337 = vld [vmem:[#allocation2 + $0x28] sm:$0x3]
        %v338 = vmax.f32 %v332, %v284
        %v339 = vmax.f32 %v333, %v298
        %v340 = vmax.f32 %v334, %v312
        %v341 = vmax.f32 %v335, %v286
        %v342 = vmax.f32 %v336, %v300
        %v343 = vmax.f32 %v337, %v314
        %344 = vst [vmem:[#allocation2] sm:$0xff] %v338
        %345 = vst [vmem:[#allocation2 + $0x8] sm:$0xff] %v339
        %vm346 = vcmask 261120
        %347 = vst.msk [vmem:[#allocation2 + $0x10] sm:$0xff] %vm346, %v340
        %348 = vst [vmem:[#allocation2 + $0x18] sm:$0x3] %v341
        %349 = vst [vmem:[#allocation2 + $0x20] sm:$0x3] %v342
        %vm350 = vcmask 254976
        %351 = vst.msk [vmem:[#allocation2 + $0x28] sm:$0x3] %vm350, %v343
      $region40: #{net_forward.11} parent=31 // pred_fallthru
        _
      %p352 = scmp.eq.s32.totalorder %s19, 3
      // Predicated region
      $region41: #{net_forward.11} parent=31 // pred_check
        %p353 = pneg %p352
      $region42: #{net_forward.11} parent=31 // pred_check_branch
        %355 = sbr.rel (%p353) target = $region44
      $region43: #{net_forward.11} parent=31 // pred_region
        %v356 = vld [vmem:[#allocation2] sm:$0xff]
        %v357 = vld [vmem:[#allocation2 + $0x8] sm:$0xff]
        %v358 = vld [vmem:[#allocation2 + $0x10] sm:$0xff]
        %v359 = vld [vmem:[#allocation2 + $0x18] sm:$0x3]
        %v360 = vld [vmem:[#allocation2 + $0x20] sm:$0x3]
        %v361 = vld [vmem:[#allocation2 + $0x28] sm:$0x3]
        %v362 = vmax.f32 %v356, 0.0
        %v363 = vmax.f32 %v357, 0.0
        %v364 = vmax.f32 %v358, 0.0
        %v365 = vmax.f32 %v359, 0.0
        %v366 = vmax.f32 %v360, 0.0
        %v367 = vmax.f32 %v361, 0.0
        %v368 = vpack.c.bf16 %v363, %v362
        %v369 = vpack.c.bf16 %v364, %v364
        %v370 = vpack.c.bf16 %v366, %v365
        %v371 = vpack.c.bf16 %v367, %v367
        %372 = vst [vmem:[%s198] sm:$0xff] %v368
        %vm373 = vcmask 257024
        %374 = vst.msk [vmem:[%s198 + $0x8] sm:$0xf] %vm373, %v369
        %375 = vst [vmem:[%s198 + $0xc] sm:$0x11] %v370
        %vm376 = vcmask 253952
        %377 = vst.msk [vmem:[%s198 + $0x14] sm:$0x1] %vm376, %v371
      $region44: #{net_forward.11} parent=31 // pred_fallthru
        _
      %s378 = smul.u32 3, %s18
      %p379 = scmp.lt.s32.totalorder %s378, 2
      %s380 = scalar_select %p379, %s378, 2
      %s381 = smul.addr %s380, 4
      %s382 = scalar_lea.vmem %s3, %s381
      // Predicated region
      $region45: #{net_forward.11} parent=31 // pred_check
        %p383 = pneg %p114
      $region46: #{net_forward.11} parent=31 // pred_check_branch
        %385 = sbr.rel (%p383) target = $region48
      $region47: #{net_forward.11} parent=31 // pred_region
        %s386 = smul.u32 3, %s18
      $region48: #{net_forward.11} parent=31 // pred_fallthru
        _
      // Predicated region
      $region49: #{net_forward.11} parent=31 // pred_check
        %p387 = pneg %p114
      $region50: #{net_forward.11} parent=31 // pred_check_branch
        %389 = sbr.rel (%p387) target = $region52
      $region51: #{net_forward.11} parent=31 // pred_region
        %s390 = smul.u32 3, %s18
        %p391 = scmp.lt.s32.totalorder %s390, 2
        %s392 = scalar_select %p391, %s390, 2
        %s393 = smul.addr %s392, 4
        %s394 = scalar_lea.vmem %s3, %s393
      $region52: #{net_forward.11} parent=31 // pred_fallthru
        _
    $region32: #{net_forward.11} parent=5 // pred_fallthru
      _
    %p395 = scmp.le.s32.totalorder 2, %s9
    // Predicated region
    $region53: #{net_forward.11} parent=5 // pred_check
      %p396 = pneg %p395
    $region54: #{net_forward.11} parent=5 // pred_check_branch
      %398 = sbr.rel (%p396) target = $region56
    $region55: #{net_forward.11} parent=5 // pred_region
      %s399 = ssub.s32 %s9, 2
    $region56: #{net_forward.11} parent=5 // pred_fallthru
      _
  $region6: #{net_forward.11} parent=0 // loop_footer
    %s13 = sadd.s32 1, %s9
  $region7: #{net_forward.11} parent=0 // loop_footer_branch
    %8 = sbr.rel target = $region3
  $region8: #{net_forward.11} parent=0 // loop_exit
    _

// kernel: net_forward.12
$region0: #{net_forward.12}
  #allocation0 [shape = 'u32[]', space=smem, size = 0x4, offset = 0x4, fixed_abs, tag = 'smem constant byte address 0x4 - core index']
  #allocation1 [shape = 'u32[72,128]{1,0:T(1,128)}', space=vmem, size = 0x9000, scoped, tag = 'internal scratch']
  %s0 = inlined_call_operand.vmem [shape: bf16[72,90], index: 0, kind: input, shape index: {}]
  %s1 = inlined_call_operand.vmem [shape: bf16[90,288], index: 1, kind: input, shape index: {}]
  %s2 = inlined_call_operand.vmem [shape: f32[72,1], index: 2, kind: input, shape index: {}]
  %s3 = inlined_call_operand.vmem [shape: bf16[72,288], index: 3, kind: output, shape index: {}]
  %s4 = sld [smem:[#allocation0]]
  $region22: #{net_forward.12} parent=0
    _
  %s6 = ssub.s32 1, %s4
  %s7 = scalar_select 0, %s6, %s4
  // Predicated region
  $region2: #{net_forward.12} parent=0 // pred_check
    _
  $region3: #{net_forward.12} parent=0 // pred_check_branch
    %9 = sbr.rel (0) target = $region5
  $region4: #{net_forward.12} parent=0 // pred_region
    _
  $region5: #{net_forward.12} parent=0 // pred_fallthru
    _
  // Predicated region
  $region6: #{net_forward.12} parent=0 // pred_check
    _
  $region7: #{net_forward.12} parent=0 // pred_check_branch
    %11 = sbr.rel (0) target = $region9
  $region8: #{net_forward.12} parent=0 // pred_region
    _
  $region9: #{net_forward.12} parent=0 // pred_fallthru
    _
  // Predicated region
  $region10: #{net_forward.12} parent=0 // pred_check
    _
  $region11: #{net_forward.12} parent=0 // pred_check_branch
    %13 = sbr.rel (0) target = $region13
  $region12: #{net_forward.12} parent=0 // pred_region
    _
  $region13: #{net_forward.12} parent=0 // pred_fallthru
    _
  %v15 = vld [vmem:[%s0] sm:$0xf]
  %v16 = vld [vmem:[%s0 + $0x4] sm:$0xf]
  %v17 = vld [vmem:[%s0 + $0x8] sm:$0xf]
  %v18 = vld [vmem:[%s0 + $0xc] sm:$0xf]
  %v19 = vld [vmem:[%s0 + $0x10] sm:$0xf]
  %v20 = vld [vmem:[%s0 + $0x14] sm:$0xf]
  %v21 = vld [vmem:[%s0 + $0x18] sm:$0xf]
  %v22 = vld [vmem:[%s0 + $0x1c] sm:$0xf]
  %v23 = vld [vmem:[%s0 + $0x20] sm:$0xf]
  %v24 = vld [vmem:[%s1] sm:$0xff]
  %v25 = vld [vmem:[%s1 + $0x8] sm:$0xf]
  %v26 = vld [vmem:[%s1 + $0xc] sm:$0xff]
  %v27 = vld [vmem:[%s1 + $0x14] sm:$0xf]
  %v28 = vld [vmem:[%s1 + $0x18] sm:$0xff]
  %v29 = vld [vmem:[%s1 + $0x20] sm:$0xf]
  %v30 = vld [vmem:[%s1 + $0x24] sm:$0xff]
  %v31 = vld [vmem:[%s1 + $0x2c] sm:$0xf]
  %v32 = vld [vmem:[%s1 + $0x30] sm:$0xff]
  %v33 = vld [vmem:[%s1 + $0x38] sm:$0xf]
  %v34 = vld [vmem:[%s1 + $0x3c] sm:$0xff]
  %v35 = vld [vmem:[%s1 + $0x44] sm:$0xf]
  %v36 = vld [vmem:[%s1 + $0x48] sm:$0xff]
  %v37 = vld [vmem:[%s1 + $0x50] sm:$0xf]
  %v38 = vld [vmem:[%s1 + $0x54] sm:$0xff]
  %v39 = vld [vmem:[%s1 + $0x5c] sm:$0xf]
  %v40 = vld [vmem:[%s1 + $0x60] sm:$0xff]
  %v41 = vld [vmem:[%s1 + $0x68] sm:$0xf]
  %v42 = vld [vmem:[%s1 + $0x6c] sm:$0xff]
  %v43 = vld [vmem:[%s1 + $0x74] sm:$0xf]
  %v44 = vld [vmem:[%s1 + $0x78] sm:$0xff]
  %v45 = vld [vmem:[%s1 + $0x80] sm:$0xf]
  %v46 = vld [vmem:[%s1 + $0x84] sm:$0x11]
  %v47 = vld [vmem:[%s1 + $0x8c] sm:$0x1]
  %v48 = vld [vmem:[%s2] sm:$0xff]
  %v49 = vld [vmem:[%s2 + $0x8] sm:$0xff]
  %v50 = vld [vmem:[%s2 + $0x10] sm:$0xff]
  %v51 = vld [vmem:[%s2 + $0x18] sm:$0xff]
  %v52 = vld [vmem:[%s2 + $0x20] sm:$0xff]
  %v53 = vld [vmem:[%s2 + $0x28] sm:$0xff]
  %v54 = vld [vmem:[%s2 + $0x30] sm:$0xff]
  %v55 = vld [vmem:[%s2 + $0x38] sm:$0xff]
  %v56 = vld [vmem:[%s2 + $0x40] sm:$0xff]
  %58 = vset.pattern.permute.xlu0 0
  %59 = vperm.xlu0 %58, %v48
  %v60 = vpop.permute.xlu0 %59
  %63 = vset.pattern.permute.xlu0 0
  %64 = vperm.xlu0 %63, %v49
  %v65 = vpop.permute.xlu0 %64
  %68 = vset.pattern.permute.xlu0 0
  %69 = vperm.xlu0 %68, %v50
  %v70 = vpop.permute.xlu0 %69
  %73 = vset.pattern.permute.xlu0 0
  %74 = vperm.xlu0 %73, %v51
  %v75 = vpop.permute.xlu0 %74
  %78 = vset.pattern.permute.xlu0 0
  %79 = vperm.xlu0 %78, %v52
  %v80 = vpop.permute.xlu0 %79
  %83 = vset.pattern.permute.xlu0 0
  %84 = vperm.xlu0 %83, %v53
  %v85 = vpop.permute.xlu0 %84
  %88 = vset.pattern.permute.xlu0 0
  %89 = vperm.xlu0 %88, %v54
  %v90 = vpop.permute.xlu0 %89
  %93 = vset.pattern.permute.xlu0 0
  %94 = vperm.xlu0 %93, %v55
  %v95 = vpop.permute.xlu0 %94
  %98 = vset.pattern.permute.xlu0 0
  %99 = vperm.xlu0 %98, %v56
  %v100 = vpop.permute.xlu0 %99
  %v111 = vunpack.c.l.b16 %v15
  %v112 = vunpack.c.l.b16 %v16
  %v113 = vunpack.c.l.b16 %v17
  %v114 = vunpack.c.l.b16 %v18
  %v115 = vunpack.c.l.b16 %v19
  %v116 = vunpack.c.l.b16 %v20
  %v117 = vunpack.c.l.b16 %v21
  %v118 = vunpack.c.l.b16 %v22
  %v119 = vunpack.c.l.b16 %v23
  %v120 = vpack.c.b16 %v112, %v111
  %v121 = vpack.c.b16 %v114, %v113
  %v122 = vpack.c.b16 %v116, %v115
  %v123 = vpack.c.b16 %v118, %v117
  %v124 = vpack.c.b16 %v119, %v119
  %v149 = vunpack.c.l.b16 %v24
  %v150 = vunpack.c.h.b16 %v24
  %v151 = vunpack.c.l.b16 %v25
  %v152 = vunpack.c.l.b16 %v26
  %v153 = vunpack.c.h.b16 %v26
  %v154 = vunpack.c.l.b16 %v27
  %v155 = vunpack.c.l.b16 %v28
  %v156 = vunpack.c.h.b16 %v28
  %v157 = vunpack.c.l.b16 %v29
  %v158 = vunpack.c.l.b16 %v30
  %v159 = vunpack.c.h.b16 %v30
  %v160 = vunpack.c.l.b16 %v31
  %v161 = vunpack.c.l.b16 %v32
  %v162 = vunpack.c.h.b16 %v32
  %v163 = vunpack.c.l.b16 %v33
  %v164 = vunpack.c.l.b16 %v34
  %v165 = vunpack.c.h.b16 %v34
  %v166 = vunpack.c.l.b16 %v35
  %v167 = vunpack.c.l.b16 %v36
  %v168 = vunpack.c.h.b16 %v36
  %v169 = vunpack.c.l.b16 %v37
  %v170 = vunpack.c.l.b16 %v38
  %v171 = vunpack.c.h.b16 %v38
  %v172 = vunpack.c.l.b16 %v39
  %v173 = vunpack.c.l.b16 %v40
  %v174 = vunpack.c.h.b16 %v40
  %v175 = vunpack.c.l.b16 %v41
  %v176 = vunpack.c.l.b16 %v42
  %v177 = vunpack.c.h.b16 %v42
  %v178 = vunpack.c.l.b16 %v43
  %v179 = vunpack.c.l.b16 %v44
  %v180 = vunpack.c.h.b16 %v44
  %v181 = vunpack.c.l.b16 %v45
  %v182 = vunpack.c.l.b16 %v46
  %v183 = vunpack.c.h.b16 %v46
  %v184 = vunpack.c.l.b16 %v47
  %v185 = vpack.c.b16 %v152, %v149
  %v186 = vpack.c.b16 %v153, %v150
  %v187 = vpack.c.b16 %v154, %v151
  %v188 = vpack.c.b16 %v158, %v155
  %v189 = vpack.c.b16 %v159, %v156
  %v190 = vpack.c.b16 %v160, %v157
  %v191 = vpack.c.b16 %v164, %v161
  %v192 = vpack.c.b16 %v165, %v162
  %v193 = vpack.c.b16 %v166, %v163
  %v194 = vpack.c.b16 %v170, %v167
  %v195 = vpack.c.b16 %v171, %v168
  %v196 = vpack.c.b16 %v172, %v169
  %v197 = vpack.c.b16 %v176, %v173
  %v198 = vpack.c.b16 %v177, %v174
  %v199 = vpack.c.b16 %v178, %v175
  %v200 = vpack.c.b16 %v182, %v179
  %v201 = vpack.c.b16 %v183, %v180
  %v202 = vpack.c.b16 %v184, %v181
  %vm218 = vcmask 736256
  %v220 = vsel %vm218, %v120, 0
  %v223 = vsel %vm218, %v121, 0
  %v226 = vsel %vm218, %v122, 0
  %v229 = vsel %vm218, %v123, 0
  %v232 = vsel %vm218, %v124, 0
  %vm234 = vcmask 1044480
  %v236 = vsel %vm234, %v200, 0
  %v239 = vsel %vm234, %v201, 0
  %v242 = vsel %vm234, %v202, 0
  %244 = vmatpush.bf16.msra.mxu0 0
  %245 = vmatpush.bf16.msra.mxu0 0
  %246 = vmatpush.bf16.msra.mxu0 %v236
  %247 = vmatpush.bf16.msra.mxu0 %v197
  %248 = vmatpush.bf16.msra.mxu0 %v194
  %249 = vmatpush.bf16.msra.mxu0 %v191
  %250 = vmatpush.bf16.msra.mxu0 %v188
  %251 = vmatpush.bf16.msra.mxu0 %v185
  %252 = vmatmul.bf16.gmra.mxu0 %v220
  %v253 = vpop.f32.mrf.mxu0
  %v254 = vadd.f32 %v60, %v253
  %v255 = vpop.f32.mrf.mxu0
  %v256 = vadd.f32 %v65, %v255
  %257 = vmatmul.bf16.gmra.mxu0 %v223
  %v258 = vpop.f32.mrf.mxu0
  %v259 = vadd.f32 %v70, %v258
  %v260 = vpop.f32.mrf.mxu0
  %v261 = vadd.f32 %v75, %v260
  %262 = vmatmul.bf16.gmra.mxu0 %v226
  %v263 = vpop.f32.mrf.mxu0
  %v264 = vadd.f32 %v80, %v263
  %v265 = vpop.f32.mrf.mxu0
  %v266 = vadd.f32 %v85, %v265
  %267 = vmatmul.bf16.gmra.mxu0 %v229
  %v268 = vpop.f32.mrf.mxu0
  %v269 = vadd.f32 %v90, %v268
  %v270 = vpop.f32.mrf.mxu0
  %v271 = vadd.f32 %v95, %v270
  %272 = vmatmul.bf16.gmra.mxu0 %v232
  %v273 = vpop.f32.mrf.mxu0
  %v274 = vadd.f32 %v100, %v273
  %v275 = vpop.f32.mrf.mxu0
  %276 = vdwg.mxu0
  %277 = vmatpush.bf16.msra.mxu0 0
  %278 = vmatpush.bf16.msra.mxu0 0
  %279 = vmatpush.bf16.msra.mxu0 %v239
  %280 = vmatpush.bf16.msra.mxu0 %v198
  %281 = vmatpush.bf16.msra.mxu0 %v195
  %282 = vmatpush.bf16.msra.mxu0 %v192
  %283 = vmatpush.bf16.msra.mxu0 %v189
  %284 = vmatpush.bf16.msra.mxu0 %v186
  %285 = vmatmul.bf16.gmra.mxu0 %v220
  %v286 = vpop.f32.mrf.mxu0
  %v287 = vadd.f32 %v60, %v286
  %v288 = vpop.f32.mrf.mxu0
  %v289 = vadd.f32 %v65, %v288
  %290 = vmatmul.bf16.gmra.mxu0 %v223
  %v291 = vpop.f32.mrf.mxu0
  %v292 = vadd.f32 %v70, %v291
  %v293 = vpop.f32.mrf.mxu0
  %v294 = vadd.f32 %v75, %v293
  %295 = vmatmul.bf16.gmra.mxu0 %v226
  %v296 = vpop.f32.mrf.mxu0
  %v297 = vadd.f32 %v80, %v296
  %v298 = vpop.f32.mrf.mxu0
  %v299 = vadd.f32 %v85, %v298
  %300 = vmatmul.bf16.gmra.mxu0 %v229
  %v301 = vpop.f32.mrf.mxu0
  %v302 = vadd.f32 %v90, %v301
  %v303 = vpop.f32.mrf.mxu0
  %v304 = vadd.f32 %v95, %v303
  %305 = vmatmul.bf16.gmra.mxu0 %v232
  %v306 = vpop.f32.mrf.mxu0
  %v307 = vadd.f32 %v100, %v306
  %v308 = vpop.f32.mrf.mxu0
  %309 = vdwg.mxu0
  %310 = vmatpush.bf16.msra.mxu0 0
  %311 = vmatpush.bf16.msra.mxu0 0
  %312 = vmatpush.bf16.msra.mxu0 %v242
  %313 = vmatpush.bf16.msra.mxu0 %v199
  %314 = vmatpush.bf16.msra.mxu0 %v196
  %315 = vmatpush.bf16.msra.mxu0 %v193
  %316 = vmatpush.bf16.msra.mxu0 %v190
  %317 = vmatpush.bf16.msra.mxu0 %v187
  %318 = vmatmul.bf16.gmra.mxu0 %v220
  %v319 = vpop.f32.mrf.mxu0
  %v320 = vadd.f32 %v60, %v319
  %v321 = vpop.f32.mrf.mxu0
  %v322 = vadd.f32 %v65, %v321
  %323 = vmatmul.bf16.gmra.mxu0 %v223
  %v324 = vpop.f32.mrf.mxu0
  %v325 = vadd.f32 %v70, %v324
  %v326 = vpop.f32.mrf.mxu0
  %v327 = vadd.f32 %v75, %v326
  %328 = vmatmul.bf16.gmra.mxu0 %v226
  %v329 = vpop.f32.mrf.mxu0
  %v330 = vadd.f32 %v80, %v329
  %v331 = vpop.f32.mrf.mxu0
  %v332 = vadd.f32 %v85, %v331
  %333 = vmatmul.bf16.gmra.mxu0 %v229
  %v334 = vpop.f32.mrf.mxu0
  %v335 = vadd.f32 %v90, %v334
  %v336 = vpop.f32.mrf.mxu0
  %v337 = vadd.f32 %v95, %v336
  %338 = vmatmul.bf16.gmra.mxu0 %v232
  %v339 = vpop.f32.mrf.mxu0
  %v340 = vadd.f32 %v100, %v339
  %v341 = vpop.f32.mrf.mxu0
  %342 = vdwg.mxu0
  %v343 = vpack.c.bf16 %v287, %v254
  %v344 = vpack.c.bf16 %v320, %v320
  %v345 = vpack.c.bf16 %v289, %v256
  %v346 = vpack.c.bf16 %v322, %v322
  %v347 = vpack.c.bf16 %v292, %v259
  %v348 = vpack.c.bf16 %v325, %v325
  %v349 = vpack.c.bf16 %v294, %v261
  %v350 = vpack.c.bf16 %v327, %v327
  %v351 = vpack.c.bf16 %v297, %v264
  %v352 = vpack.c.bf16 %v330, %v330
  %v353 = vpack.c.bf16 %v299, %v266
  %v354 = vpack.c.bf16 %v332, %v332
  %v355 = vpack.c.bf16 %v302, %v269
  %v356 = vpack.c.bf16 %v335, %v335
  %v357 = vpack.c.bf16 %v304, %v271
  %v358 = vpack.c.bf16 %v337, %v337
  %v359 = vpack.c.bf16 %v307, %v274
  %v360 = vpack.c.bf16 %v340, %v340
  %361 = vst [vmem:[%s3] sm:$0xff] %v343
  %vm362 = vcmask 257024
  %363 = vst.msk [vmem:[%s3 + $0x8] sm:$0xf] %vm362, %v344
  %364 = vst [vmem:[%s3 + $0xc] sm:$0xff] %v345
  %365 = vst.msk [vmem:[%s3 + $0x14] sm:$0xf] %vm362, %v346
  %366 = vst [vmem:[%s3 + $0x18] sm:$0xff] %v347
  %367 = vst.msk [vmem:[%s3 + $0x20] sm:$0xf] %vm362, %v348
  %368 = vst [vmem:[%s3 + $0x24] sm:$0xff] %v349
  %369 = vst.msk [vmem:[%s3 + $0x2c] sm:$0xf] %vm362, %v350
  %370 = vst [vmem:[%s3 + $0x30] sm:$0xff] %v351
  %371 = vst.msk [vmem:[%s3 + $0x38] sm:$0xf] %vm362, %v352
  %372 = vst [vmem:[%s3 + $0x3c] sm:$0xff] %v353
  %373 = vst.msk [vmem:[%s3 + $0x44] sm:$0xf] %vm362, %v354
  %374 = vst [vmem:[%s3 + $0x48] sm:$0xff] %v355
  %375 = vst.msk [vmem:[%s3 + $0x50] sm:$0xf] %vm362, %v356
  %376 = vst [vmem:[%s3 + $0x54] sm:$0xff] %v357
  %377 = vst.msk [vmem:[%s3 + $0x5c] sm:$0xf] %vm362, %v358
  %378 = vst [vmem:[%s3 + $0x60] sm:$0xff] %v359
  %379 = vst.msk [vmem:[%s3 + $0x68] sm:$0xf] %vm362, %v360
  // Predicated region
  $region14: #{net_forward.12} parent=0 // pred_check
    _
  $region15: #{net_forward.12} parent=0 // pred_check_branch
    %381 = sbr.rel (0) target = $region17
  $region16: #{net_forward.12} parent=0 // pred_region
    _
  $region17: #{net_forward.12} parent=0 // pred_fallthru
    _
  // Predicated region
  $region18: #{net_forward.12} parent=0 // pred_check
    _
  $region19: #{net_forward.12} parent=0 // pred_check_branch
    %383 = sbr.rel (0) target = $region21
  $region20: #{net_forward.12} parent=0 // pred_region
    _
  $region21: #{net_forward.12} parent=0 // pred_fallthru
    _

// kernel: net_forward.13
$region0: #{net_forward.13}
  #allocation0 [shape = 'u32[]', space=smem, size = 0x4, offset = 0x4, fixed_abs, tag = 'smem constant byte address 0x4 - core index']
  #allocation1 [shape = 'u32[72,128]{1,0:T(1,128)}', space=vmem, size = 0x9000, scoped, tag = 'internal scratch']
  %s0 = inlined_call_operand.vmem [shape: bf16[24,400], index: 0, kind: input, shape index: {}]
  %s1 = inlined_call_operand.vmem [shape: bf16[400,288], index: 1, kind: input, shape index: {}]
  %s2 = inlined_call_operand.vmem [shape: f32[24,1], index: 2, kind: input, shape index: {}]
  %s3 = inlined_call_operand.vmem [shape: bf16[24,288], index: 3, kind: output, shape index: {}]
  %s4 = sld [smem:[#allocation0]]
  $region22: #{net_forward.13} parent=0
    _
  %s6 = ssub.s32 1, %s4
  %s7 = scalar_select 0, %s6, %s4
  // Predicated region
  $region2: #{net_forward.13} parent=0 // pred_check
    _
  $region3: #{net_forward.13} parent=0 // pred_check_branch
    %9 = sbr.rel (0) target = $region5
  $region4: #{net_forward.13} parent=0 // pred_region
    _
  $region5: #{net_forward.13} parent=0 // pred_fallthru
    _
  // Predicated region
  $region6: #{net_forward.13} parent=0 // pred_check
    _
  $region7: #{net_forward.13} parent=0 // pred_check_branch
    %11 = sbr.rel (0) target = $region9
  $region8: #{net_forward.13} parent=0 // pred_region
    _
  $region9: #{net_forward.13} parent=0 // pred_fallthru
    _
  // Predicated region
  $region10: #{net_forward.13} parent=0 // pred_check
    _
  $region11: #{net_forward.13} parent=0 // pred_check_branch
    %13 = sbr.rel (0) target = $region13
  $region12: #{net_forward.13} parent=0 // pred_region
    _
  $region13: #{net_forward.13} parent=0 // pred_fallthru
    _
  %v15 = vld [vmem:[%s0] sm:$0xff]
  %v16 = vld [vmem:[%s0 + $0x8] sm:$0xff]
  %v17 = vld [vmem:[%s0 + $0x10] sm:$0xff]
  %v18 = vld [vmem:[%s0 + $0x18] sm:$0xff]
  %v19 = vld [vmem:[%s0 + $0x20] sm:$0xff]
  %v20 = vld [vmem:[%s0 + $0x28] sm:$0xff]
  %v21 = vld [vmem:[%s1] sm:$0xff]
  %v22 = vld [vmem:[%s1 + $0x8] sm:$0xf]
  %v23 = vld [vmem:[%s1 + $0xc] sm:$0xff]
  %v24 = vld [vmem:[%s1 + $0x14] sm:$0xf]
  %v25 = vld [vmem:[%s1 + $0x18] sm:$0xff]
  %v26 = vld [vmem:[%s1 + $0x20] sm:$0xf]
  %v27 = vld [vmem:[%s1 + $0x24] sm:$0xff]
  %v28 = vld [vmem:[%s1 + $0x2c] sm:$0xf]
  %v29 = vld [vmem:[%s1 + $0x30] sm:$0xff]
  %v30 = vld [vmem:[%s1 + $0x38] sm:$0xf]
  %v31 = vld [vmem:[%s1 + $0x3c] sm:$0xff]
  %v32 = vld [vmem:[%s1 + $0x44] sm:$0xf]
  %v33 = vld [vmem:[%s1 + $0x48] sm:$0xff]
  %v34 = vld [vmem:[%s1 + $0x50] sm:$0xf]
  %v35 = vld [vmem:[%s1 + $0x54] sm:$0xff]
  %v36 = vld [vmem:[%s1 + $0x5c] sm:$0xf]
  %v37 = vld [vmem:[%s1 + $0x60] sm:$0xff]
  %v38 = vld [vmem:[%s1 + $0x68] sm:$0xf]
  %v39 = vld [vmem:[%s1 + $0x6c] sm:$0xff]
  %v40 = vld [vmem:[%s1 + $0x74] sm:$0xf]
  %v41 = vld [vmem:[%s1 + $0x78] sm:$0xff]
  %v42 = vld [vmem:[%s1 + $0x80] sm:$0xf]
  %v43 = vld [vmem:[%s1 + $0x84] sm:$0xff]
  %v44 = vld [vmem:[%s1 + $0x8c] sm:$0xf]
  %v45 = vld [vmem:[%s1 + $0x90] sm:$0xff]
  %v46 = vld [vmem:[%s1 + $0x98] sm:$0xf]
  %v47 = vld [vmem:[%s1 + $0x9c] sm:$0xff]
  %v48 = vld [vmem:[%s1 + $0xa4] sm:$0xf]
  %v49 = vld [vmem:[%s1 + $0xa8] sm:$0xff]
  %v50 = vld [vmem:[%s1 + $0xb0] sm:$0xf]
  %v51 = vld [vmem:[%s1 + $0xb4] sm:$0xff]
  %v52 = vld [vmem:[%s1 + $0xbc] sm:$0xf]
  %v53 = vld [vmem:[%s1 + $0xc0] sm:$0xff]
  %v54 = vld [vmem:[%s1 + $0xc8] sm:$0xf]
  %v55 = vld [vmem:[%s1 + $0xcc] sm:$0xff]
  %v56 = vld [vmem:[%s1 + $0xd4] sm:$0xf]
  %v57 = vld [vmem:[%s1 + $0xd8] sm:$0xff]
  %v58 = vld [vmem:[%s1 + $0xe0] sm:$0xf]
  %v59 = vld [vmem:[%s1 + $0xe4] sm:$0xff]
  %v60 = vld [vmem:[%s1 + $0xec] sm:$0xf]
  %v61 = vld [vmem:[%s1 + $0xf0] sm:$0xff]
  %v62 = vld [vmem:[%s1 + $0xf8] sm:$0xf]
  %v63 = vld [vmem:[%s1 + $0xfc] sm:$0xff]
  %v64 = vld [vmem:[%s1 + $0x104] sm:$0xf]
  %v65 = vld [vmem:[%s1 + $0x108] sm:$0xff]
  %v66 = vld [vmem:[%s1 + $0x110] sm:$0xf]
  %v67 = vld [vmem:[%s1 + $0x114] sm:$0xff]
  %v68 = vld [vmem:[%s1 + $0x11c] sm:$0xf]
  %v69 = vld [vmem:[%s1 + $0x120] sm:$0xff]
  %v70 = vld [vmem:[%s1 + $0x128] sm:$0xf]
  %v71 = vld [vmem:[%s1 + $0x12c] sm:$0xff]
  %v72 = vld [vmem:[%s1 + $0x134] sm:$0xf]
  %v73 = vld [vmem:[%s1 + $0x138] sm:$0xff]
  %v74 = vld [vmem:[%s1 + $0x140] sm:$0xf]
  %v75 = vld [vmem:[%s1 + $0x144] sm:$0xff]
  %v76 = vld [vmem:[%s1 + $0x14c] sm:$0xf]
  %v77 = vld [vmem:[%s1 + $0x150] sm:$0xff]
  %v78 = vld [vmem:[%s1 + $0x158] sm:$0xf]
  %v79 = vld [vmem:[%s1 + $0x15c] sm:$0xff]
  %v80 = vld [vmem:[%s1 + $0x164] sm:$0xf]
  %v81 = vld [vmem:[%s1 + $0x168] sm:$0xff]
  %v82 = vld [vmem:[%s1 + $0x170] sm:$0xf]
  %v83 = vld [vmem:[%s1 + $0x174] sm:$0xff]
  %v84 = vld [vmem:[%s1 + $0x17c] sm:$0xf]
  %v85 = vld [vmem:[%s1 + $0x180] sm:$0xff]
  %v86 = vld [vmem:[%s1 + $0x188] sm:$0xf]
  %v87 = vld [vmem:[%s1 + $0x18c] sm:$0xff]
  %v88 = vld [vmem:[%s1 + $0x194] sm:$0xf]
  %v89 = vld [vmem:[%s1 + $0x198] sm:$0xff]
  %v90 = vld [vmem:[%s1 + $0x1a0] sm:$0xf]
  %v91 = vld [vmem:[%s1 + $0x1a4] sm:$0xff]
  %v92 = vld [vmem:[%s1 + $0x1ac] sm:$0xf]
  %v93 = vld [vmem:[%s1 + $0x1b0] sm:$0xff]
  %v94 = vld [vmem:[%s1 + $0x1b8] sm:$0xf]
  %v95 = vld [vmem:[%s1 + $0x1bc] sm:$0xff]
  %v96 = vld [vmem:[%s1 + $0x1c4] sm:$0xf]
  %v97 = vld [vmem:[%s1 + $0x1c8] sm:$0xff]
  %v98 = vld [vmem:[%s1 + $0x1d0] sm:$0xf]
  %v99 = vld [vmem:[%s1 + $0x1d4] sm:$0xff]
  %v100 = vld [vmem:[%s1 + $0x1dc] sm:$0xf]
  %v101 = vld [vmem:[%s1 + $0x1e0] sm:$0xff]
  %v102 = vld [vmem:[%s1 + $0x1e8] sm:$0xf]
  %v103 = vld [vmem:[%s1 + $0x1ec] sm:$0xff]
  %v104 = vld [vmem:[%s1 + $0x1f4] sm:$0xf]
  %v105 = vld [vmem:[%s1 + $0x1f8] sm:$0xff]
  %v106 = vld [vmem:[%s1 + $0x200] sm:$0xf]
  %v107 = vld [vmem:[%s1 + $0x204] sm:$0xff]
  %v108 = vld [vmem:[%s1 + $0x20c] sm:$0xf]
  %v109 = vld [vmem:[%s1 + $0x210] sm:$0xff]
  %v110 = vld [vmem:[%s1 + $0x218] sm:$0xf]
  %v111 = vld [vmem:[%s1 + $0x21c] sm:$0xff]
  %v112 = vld [vmem:[%s1 + $0x224] sm:$0xf]
  %v113 = vld [vmem:[%s1 + $0x228] sm:$0xff]
  %v114 = vld [vmem:[%s1 + $0x230] sm:$0xf]
  %v115 = vld [vmem:[%s1 + $0x234] sm:$0xff]
  %v116 = vld [vmem:[%s1 + $0x23c] sm:$0xf]
  %v117 = vld [vmem:[%s1 + $0x240] sm:$0xff]
  %v118 = vld [vmem:[%s1 + $0x248] sm:$0xf]
  %v119 = vld [vmem:[%s1 + $0x24c] sm:$0xff]
  %v120 = vld [vmem:[%s1 + $0x254] sm:$0xf]
  %v121 = vld [vmem:[%s2] sm:$0xff]
  %v122 = vld [vmem:[%s2 + $0x8] sm:$0xff]
  %v123 = vld [vmem:[%s2 + $0x10] sm:$0xff]
  %125 = vset.pattern.permute.xlu0 0
  %126 = vperm.xlu0 %125, %v121
  %v127 = vpop.permute.xlu0 %126
  %130 = vset.pattern.permute.xlu0 0
  %131 = vperm.xlu0 %130, %v122
  %v132 = vpop.permute.xlu0 %131
  %135 = vset.pattern.permute.xlu0 0
  %136 = vperm.xlu0 %135, %v123
  %v137 = vpop.permute.xlu0 %136
  %v145 = vunpack.c.l.b16 %v15
  %v146 = vunpack.c.h.b16 %v15
  %v147 = vunpack.c.l.b16 %v16
  %v148 = vunpack.c.h.b16 %v16
  %v149 = vunpack.c.l.b16 %v17
  %v150 = vunpack.c.h.b16 %v17
  %v151 = vunpack.c.l.b16 %v18
  %v152 = vunpack.c.h.b16 %v18
  %v153 = vunpack.c.l.b16 %v19
  %v154 = vunpack.c.h.b16 %v19
  %v155 = vunpack.c.l.b16 %v20
  %v156 = vunpack.c.h.b16 %v20
  %v157 = vpack.c.b16 %v149, %v145
  %v158 = vpack.c.b16 %v150, %v146
  %v159 = vpack.c.b16 %v151, %v147
  %v160 = vpack.c.b16 %v152, %v148
  %v161 = vpack.c.b16 %v153, %v153
  %v162 = vpack.c.b16 %v154, %v154
  %v163 = vpack.c.b16 %v155, %v155
  %v164 = vpack.c.b16 %v156, %v156
  %v271 = vunpack.c.l.b16 %v21
  %v272 = vunpack.c.h.b16 %v21
  %v273 = vunpack.c.l.b16 %v22
  %v274 = vunpack.c.l.b16 %v23
  %v275 = vunpack.c.h.b16 %v23
  %v276 = vunpack.c.l.b16 %v24
  %v277 = vunpack.c.l.b16 %v25
  %v278 = vunpack.c.h.b16 %v25
  %v279 = vunpack.c.l.b16 %v26
  %v280 = vunpack.c.l.b16 %v27
  %v281 = vunpack.c.h.b16 %v27
  %v282 = vunpack.c.l.b16 %v28
  %v283 = vunpack.c.l.b16 %v29
  %v284 = vunpack.c.h.b16 %v29
  %v285 = vunpack.c.l.b16 %v30
  %v286 = vunpack.c.l.b16 %v31
  %v287 = vunpack.c.h.b16 %v31
  %v288 = vunpack.c.l.b16 %v32
  %v289 = vunpack.c.l.b16 %v33
  %v290 = vunpack.c.h.b16 %v33
  %v291 = vunpack.c.l.b16 %v34
  %v292 = vunpack.c.l.b16 %v35
  %v293 = vunpack.c.h.b16 %v35
  %v294 = vunpack.c.l.b16 %v36
  %v295 = vunpack.c.l.b16 %v37
  %v296 = vunpack.c.h.b16 %v37
  %v297 = vunpack.c.l.b16 %v38
  %v298 = vunpack.c.l.b16 %v39
  %v299 = vunpack.c.h.b16 %v39
  %v300 = vunpack.c.l.b16 %v40
  %v301 = vunpack.c.l.b16 %v41
  %v302 = vunpack.c.h.b16 %v41
  %v303 = vunpack.c.l.b16 %v42
  %v304 = vunpack.c.l.b16 %v43
  %v305 = vunpack.c.h.b16 %v43
  %v306 = vunpack.c.l.b16 %v44
  %v307 = vunpack.c.l.b16 %v45
  %v308 = vunpack.c.h.b16 %v45
  %v309 = vunpack.c.l.b16 %v46
  %v310 = vunpack.c.l.b16 %v47
  %v311 = vunpack.c.h.b16 %v47
  %v312 = vunpack.c.l.b16 %v48
  %v313 = vunpack.c.l.b16 %v49
  %v314 = vunpack.c.h.b16 %v49
  %v315 = vunpack.c.l.b16 %v50
  %v316 = vunpack.c.l.b16 %v51
  %v317 = vunpack.c.h.b16 %v51
  %v318 = vunpack.c.l.b16 %v52
  %v319 = vunpack.c.l.b16 %v53
  %v320 = vunpack.c.h.b16 %v53
  %v321 = vunpack.c.l.b16 %v54
  %v322 = vunpack.c.l.b16 %v55
  %v323 = vunpack.c.h.b16 %v55
  %v324 = vunpack.c.l.b16 %v56
  %v325 = vunpack.c.l.b16 %v57
  %v326 = vunpack.c.h.b16 %v57
  %v327 = vunpack.c.l.b16 %v58
  %v328 = vunpack.c.l.b16 %v59
  %v329 = vunpack.c.h.b16 %v59
  %v330 = vunpack.c.l.b16 %v60
  %v331 = vunpack.c.l.b16 %v61
  %v332 = vunpack.c.h.b16 %v61
  %v333 = vunpack.c.l.b16 %v62
  %v334 = vunpack.c.l.b16 %v63
  %v335 = vunpack.c.h.b16 %v63
  %v336 = vunpack.c.l.b16 %v64
  %v337 = vunpack.c.l.b16 %v65
  %v338 = vunpack.c.h.b16 %v65
  %v339 = vunpack.c.l.b16 %v66
  %v340 = vunpack.c.l.b16 %v67
  %v341 = vunpack.c.h.b16 %v67
  %v342 = vunpack.c.l.b16 %v68
  %v343 = vunpack.c.l.b16 %v69
  %v344 = vunpack.c.h.b16 %v69
  %v345 = vunpack.c.l.b16 %v70
  %v346 = vunpack.c.l.b16 %v71
  %v347 = vunpack.c.h.b16 %v71
  %v348 = vunpack.c.l.b16 %v72
  %v349 = vunpack.c.l.b16 %v73
  %v350 = vunpack.c.h.b16 %v73
  %v351 = vunpack.c.l.b16 %v74
  %v352 = vunpack.c.l.b16 %v75
  %v353 = vunpack.c.h.b16 %v75
  %v354 = vunpack.c.l.b16 %v76
  %v355 = vunpack.c.l.b16 %v77
  %v356 = vunpack.c.h.b16 %v77
  %v357 = vunpack.c.l.b16 %v78
  %v358 = vunpack.c.l.b16 %v79
  %v359 = vunpack.c.h.b16 %v79
  %v360 = vunpack.c.l.b16 %v80
  %v361 = vunpack.c.l.b16 %v81
  %v362 = vunpack.c.h.b16 %v81
  %v363 = vunpack.c.l.b16 %v82
  %v364 = vunpack.c.l.b16 %v83
  %v365 = vunpack.c.h.b16 %v83
  %v366 = vunpack.c.l.b16 %v84
  %v367 = vunpack.c.l.b16 %v85
  %v368 = vunpack.c.h.b16 %v85
  %v369 = vunpack.c.l.b16 %v86
  %v370 = vunpack.c.l.b16 %v87
  %v371 = vunpack.c.h.b16 %v87
  %v372 = vunpack.c.l.b16 %v88
  %v373 = vunpack.c.l.b16 %v89
  %v374 = vunpack.c.h.b16 %v89
  %v375 = vunpack.c.l.b16 %v90
  %v376 = vunpack.c.l.b16 %v91
  %v377 = vunpack.c.h.b16 %v91
  %v378 = vunpack.c.l.b16 %v92
  %v379 = vunpack.c.l.b16 %v93
  %v380 = vunpack.c.h.b16 %v93
  %v381 = vunpack.c.l.b16 %v94
  %v382 = vunpack.c.l.b16 %v95
  %v383 = vunpack.c.h.b16 %v95
  %v384 = vunpack.c.l.b16 %v96
  %v385 = vunpack.c.l.b16 %v97
  %v386 = vunpack.c.h.b16 %v97
  %v387 = vunpack.c.l.b16 %v98
  %v388 = vunpack.c.l.b16 %v99
  %v389 = vunpack.c.h.b16 %v99
  %v390 = vunpack.c.l.b16 %v100
  %v391 = vunpack.c.l.b16 %v101
  %v392 = vunpack.c.h.b16 %v101
  %v393 = vunpack.c.l.b16 %v102
  %v394 = vunpack.c.l.b16 %v103
  %v395 = vunpack.c.h.b16 %v103
  %v396 = vunpack.c.l.b16 %v104
  %v397 = vunpack.c.l.b16 %v105
  %v398 = vunpack.c.h.b16 %v105
  %v399 = vunpack.c.l.b16 %v106
  %v400 = vunpack.c.l.b16 %v107
  %v401 = vunpack.c.h.b16 %v107
  %v402 = vunpack.c.l.b16 %v108
  %v403 = vunpack.c.l.b16 %v109
  %v404 = vunpack.c.h.b16 %v109
  %v405 = vunpack.c.l.b16 %v110
  %v406 = vunpack.c.l.b16 %v111
  %v407 = vunpack.c.h.b16 %v111
  %v408 = vunpack.c.l.b16 %v112
  %v409 = vunpack.c.l.b16 %v113
  %v410 = vunpack.c.h.b16 %v113
  %v411 = vunpack.c.l.b16 %v114
  %v412 = vunpack.c.l.b16 %v115
  %v413 = vunpack.c.h.b16 %v115
  %v414 = vunpack.c.l.b16 %v116
  %v415 = vunpack.c.l.b16 %v117
  %v416 = vunpack.c.h.b16 %v117
  %v417 = vunpack.c.l.b16 %v118
  %v418 = vunpack.c.l.b16 %v119
  %v419 = vunpack.c.h.b16 %v119
  %v420 = vunpack.c.l.b16 %v120
  %v421 = vpack.c.b16 %v274, %v271
  %v422 = vpack.c.b16 %v275, %v272
  %v423 = vpack.c.b16 %v276, %v273
  %v424 = vpack.c.b16 %v280, %v277
  %v425 = vpack.c.b16 %v281, %v278
  %v426 = vpack.c.b16 %v282, %v279
  %v427 = vpack.c.b16 %v286, %v283
  %v428 = vpack.c.b16 %v287, %v284
  %v429 = vpack.c.b16 %v288, %v285
  %v430 = vpack.c.b16 %v292, %v289
  %v431 = vpack.c.b16 %v293, %v290
  %v432 = vpack.c.b16 %v294, %v291
  %v433 = vpack.c.b16 %v298, %v295
  %v434 = vpack.c.b16 %v299, %v296
  %v435 = vpack.c.b16 %v300, %v297
  %v436 = vpack.c.b16 %v304, %v301
  %v437 = vpack.c.b16 %v305, %v302
  %v438 = vpack.c.b16 %v306, %v303
  %v439 = vpack.c.b16 %v310, %v307
  %v440 = vpack.c.b16 %v311, %v308
  %v441 = vpack.c.b16 %v312, %v309
  %v442 = vpack.c.b16 %v316, %v313
  %v443 = vpack.c.b16 %v317, %v314
  %v444 = vpack.c.b16 %v318, %v315
  %v445 = vpack.c.b16 %v322, %v319
  %v446 = vpack.c.b16 %v323, %v320
  %v447 = vpack.c.b16 %v324, %v321
  %v448 = vpack.c.b16 %v328, %v325
  %v449 = vpack.c.b16 %v329, %v326
  %v450 = vpack.c.b16 %v330, %v327
  %v451 = vpack.c.b16 %v334, %v331
  %v452 = vpack.c.b16 %v335, %v332
  %v453 = vpack.c.b16 %v336, %v333
  %v454 = vpack.c.b16 %v340, %v337
  %v455 = vpack.c.b16 %v341, %v338
  %v456 = vpack.c.b16 %v342, %v339
  %v457 = vpack.c.b16 %v346, %v343
  %v458 = vpack.c.b16 %v347, %v344
  %v459 = vpack.c.b16 %v348, %v345
  %v460 = vpack.c.b16 %v352, %v349
  %v461 = vpack.c.b16 %v353, %v350
  %v462 = vpack.c.b16 %v354, %v351
  %v463 = vpack.c.b16 %v358, %v355
  %v464 = vpack.c.b16 %v359, %v356
  %v465 = vpack.c.b16 %v360, %v357
  %v466 = vpack.c.b16 %v364, %v361
  %v467 = vpack.c.b16 %v365, %v362
  %v468 = vpack.c.b16 %v366, %v363
  %v469 = vpack.c.b16 %v370, %v367
  %v470 = vpack.c.b16 %v371, %v368
  %v471 = vpack.c.b16 %v372, %v369
  %v472 = vpack.c.b16 %v376, %v373
  %v473 = vpack.c.b16 %v377, %v374
  %v474 = vpack.c.b16 %v378, %v375
  %v475 = vpack.c.b16 %v382, %v379
  %v476 = vpack.c.b16 %v383, %v380
  %v477 = vpack.c.b16 %v384, %v381
  %v478 = vpack.c.b16 %v388, %v385
  %v479 = vpack.c.b16 %v389, %v386
  %v480 = vpack.c.b16 %v390, %v387
  %v481 = vpack.c.b16 %v394, %v391
  %v482 = vpack.c.b16 %v395, %v392
  %v483 = vpack.c.b16 %v396, %v393
  %v484 = vpack.c.b16 %v400, %v397
  %v485 = vpack.c.b16 %v401, %v398
  %v486 = vpack.c.b16 %v402, %v399
  %v487 = vpack.c.b16 %v406, %v403
  %v488 = vpack.c.b16 %v407, %v404
  %v489 = vpack.c.b16 %v408, %v405
  %v490 = vpack.c.b16 %v412, %v409
  %v491 = vpack.c.b16 %v413, %v410
  %v492 = vpack.c.b16 %v414, %v411
  %v493 = vpack.c.b16 %v418, %v415
  %v494 = vpack.c.b16 %v419, %v416
  %v495 = vpack.c.b16 %v420, %v417
  %vm571 = vcmask 130048
  %v573 = vsel %vm571, %v160, 0
  %v576 = vsel %vm571, %v164, 0
  %578 = vmatpush.bf16.msra.mxu0 %v442
  %579 = vmatpush.bf16.msra.mxu0 %v439
  %580 = vmatpush.bf16.msra.mxu0 %v436
  %581 = vmatpush.bf16.msra.mxu0 %v433
  %582 = vmatpush.bf16.msra.mxu0 %v430
  %583 = vmatpush.bf16.msra.mxu0 %v427
  %584 = vmatpush.bf16.msra.mxu0 %v424
  %585 = vmatpush.bf16.msra.mxu0 %v421
  %586 = vmatmul.bf16.gmra.mxu0 %v157
  %v587 = vpop.f32.mrf.mxu0
  %v588 = vadd.f32 %v127, %v587
  %v589 = vpop.f32.mrf.mxu0
  %v590 = vadd.f32 %v132, %v589
  %591 = vmatmul.bf16.gmra.mxu0 %v161
  %v592 = vpop.f32.mrf.mxu0
  %v593 = vadd.f32 %v137, %v592
  %v594 = vpop.f32.mrf.mxu0
  %595 = vdwg.mxu0
  %596 = vmatpush.bf16.msra.mxu0 %v466
  %597 = vmatpush.bf16.msra.mxu0 %v463
  %598 = vmatpush.bf16.msra.mxu0 %v460
  %599 = vmatpush.bf16.msra.mxu0 %v457
  %600 = vmatpush.bf16.msra.mxu0 %v454
  %601 = vmatpush.bf16.msra.mxu0 %v451
  %602 = vmatpush.bf16.msra.mxu0 %v448
  %603 = vmatpush.bf16.msra.mxu0 %v445
  %604 = vmatmul.bf16.gmra.mxu0 %v158
  %v605 = vpop.f32.mrf.mxu0
  %v606 = vadd.f32 %v588, %v605
  %v607 = vpop.f32.mrf.mxu0
  %v608 = vadd.f32 %v590, %v607
  %609 = vmatmul.bf16.gmra.mxu0 %v162
  %v610 = vpop.f32.mrf.mxu0
  %v611 = vadd.f32 %v593, %v610
  %v612 = vpop.f32.mrf.mxu0
  %613 = vdwg.mxu0
  %614 = vmatpush.bf16.msra.mxu0 %v490
  %615 = vmatpush.bf16.msra.mxu0 %v487
  %616 = vmatpush.bf16.msra.mxu0 %v484
  %617 = vmatpush.bf16.msra.mxu0 %v481
  %618 = vmatpush.bf16.msra.mxu0 %v478
  %619 = vmatpush.bf16.msra.mxu0 %v475
  %620 = vmatpush.bf16.msra.mxu0 %v472
  %621 = vmatpush.bf16.msra.mxu0 %v469
  %622 = vmatmul.bf16.gmra.mxu0 %v159
  %v623 = vpop.f32.mrf.mxu0
  %v624 = vadd.f32 %v606, %v623
  %v625 = vpop.f32.mrf.mxu0
  %v626 = vadd.f32 %v608, %v625
  %627 = vmatmul.bf16.gmra.mxu0 %v163
  %v628 = vpop.f32.mrf.mxu0
  %v629 = vadd.f32 %v611, %v628
  %v630 = vpop.f32.mrf.mxu0
  %631 = vdwg.mxu0
  %632 = vmatpush.bf16.msra.mxu0 0
  %633 = vmatpush.bf16.msra.mxu0 0
  %634 = vmatpush.bf16.msra.mxu0 0
  %635 = vmatpush.bf16.msra.mxu0 0
  %636 = vmatpush.bf16.msra.mxu0 0
  %637 = vmatpush.bf16.msra.mxu0 0
  %638 = vmatpush.bf16.msra.mxu0 0
  %639 = vmatpush.bf16.msra.mxu0 %v493
  %640 = vmatmul.bf16.gmra.mxu0 %v573
  %v641 = vpop.f32.mrf.mxu0
  %v642 = vadd.f32 %v624, %v641
  %v643 = vpop.f32.mrf.mxu0
  %v644 = vadd.f32 %v626, %v643
  %645 = vmatmul.bf16.gmra.mxu0 %v576
  %v646 = vpop.f32.mrf.mxu0
  %v647 = vadd.f32 %v629, %v646
  %v648 = vpop.f32.mrf.mxu0
  %649 = vdwg.mxu0
  %650 = vmatpush.bf16.msra.mxu0 %v443
  %651 = vmatpush.bf16.msra.mxu0 %v440
  %652 = vmatpush.bf16.msra.mxu0 %v437
  %653 = vmatpush.bf16.msra.mxu0 %v434
  %654 = vmatpush.bf16.msra.mxu0 %v431
  %655 = vmatpush.bf16.msra.mxu0 %v428
  %656 = vmatpush.bf16.msra.mxu0 %v425
  %657 = vmatpush.bf16.msra.mxu0 %v422
  %658 = vmatmul.bf16.gmra.mxu0 %v157
  %v659 = vpop.f32.mrf.mxu0
  %v660 = vadd.f32 %v127, %v659
  %v661 = vpop.f32.mrf.mxu0
  %v662 = vadd.f32 %v132, %v661
  %663 = vmatmul.bf16.gmra.mxu0 %v161
  %v664 = vpop.f32.mrf.mxu0
  %v665 = vadd.f32 %v137, %v664
  %v666 = vpop.f32.mrf.mxu0
  %667 = vdwg.mxu0
  %668 = vmatpush.bf16.msra.mxu0 %v467
  %669 = vmatpush.bf16.msra.mxu0 %v464
  %670 = vmatpush.bf16.msra.mxu0 %v461
  %671 = vmatpush.bf16.msra.mxu0 %v458
  %672 = vmatpush.bf16.msra.mxu0 %v455
  %673 = vmatpush.bf16.msra.mxu0 %v452
  %674 = vmatpush.bf16.msra.mxu0 %v449
  %675 = vmatpush.bf16.msra.mxu0 %v446
  %676 = vmatmul.bf16.gmra.mxu0 %v158
  %v677 = vpop.f32.mrf.mxu0
  %v678 = vadd.f32 %v660, %v677
  %v679 = vpop.f32.mrf.mxu0
  %v680 = vadd.f32 %v662, %v679
  %681 = vmatmul.bf16.gmra.mxu0 %v162
  %v682 = vpop.f32.mrf.mxu0
  %v683 = vadd.f32 %v665, %v682
  %v684 = vpop.f32.mrf.mxu0
  %685 = vdwg.mxu0
  %686 = vmatpush.bf16.msra.mxu0 %v491
  %687 = vmatpush.bf16.msra.mxu0 %v488
  %688 = vmatpush.bf16.msra.mxu0 %v485
  %689 = vmatpush.bf16.msra.mxu0 %v482
  %690 = vmatpush.bf16.msra.mxu0 %v479
  %691 = vmatpush.bf16.msra.mxu0 %v476
  %692 = vmatpush.bf16.msra.mxu0 %v473
  %693 = vmatpush.bf16.msra.mxu0 %v470
  %694 = vmatmul.bf16.gmra.mxu0 %v159
  %v695 = vpop.f32.mrf.mxu0
  %v696 = vadd.f32 %v678, %v695
  %v697 = vpop.f32.mrf.mxu0
  %v698 = vadd.f32 %v680, %v697
  %699 = vmatmul.bf16.gmra.mxu0 %v163
  %v700 = vpop.f32.mrf.mxu0
  %v701 = vadd.f32 %v683, %v700
  %v702 = vpop.f32.mrf.mxu0
  %703 = vdwg.mxu0
  %704 = vmatpush.bf16.msra.mxu0 0
  %705 = vmatpush.bf16.msra.mxu0 0
  %706 = vmatpush.bf16.msra.mxu0 0
  %707 = vmatpush.bf16.msra.mxu0 0
  %708 = vmatpush.bf16.msra.mxu0 0
  %709 = vmatpush.bf16.msra.mxu0 0
  %710 = vmatpush.bf16.msra.mxu0 0
  %711 = vmatpush.bf16.msra.mxu0 %v494
  %712 = vmatmul.bf16.gmra.mxu0 %v573
  %v713 = vpop.f32.mrf.mxu0
  %v714 = vadd.f32 %v696, %v713
  %v715 = vpop.f32.mrf.mxu0
  %v716 = vadd.f32 %v698, %v715
  %717 = vmatmul.bf16.gmra.mxu0 %v576
  %v718 = vpop.f32.mrf.mxu0
  %v719 = vadd.f32 %v701, %v718
  %v720 = vpop.f32.mrf.mxu0
  %721 = vdwg.mxu0
  %722 = vmatpush.bf16.msra.mxu0 %v444
  %723 = vmatpush.bf16.msra.mxu0 %v441
  %724 = vmatpush.bf16.msra.mxu0 %v438
  %725 = vmatpush.bf16.msra.mxu0 %v435
  %726 = vmatpush.bf16.msra.mxu0 %v432
  %727 = vmatpush.bf16.msra.mxu0 %v429
  %728 = vmatpush.bf16.msra.mxu0 %v426
  %729 = vmatpush.bf16.msra.mxu0 %v423
  %730 = vmatmul.bf16.gmra.mxu0 %v157
  %v731 = vpop.f32.mrf.mxu0
  %v732 = vadd.f32 %v127, %v731
  %v733 = vpop.f32.mrf.mxu0
  %v734 = vadd.f32 %v132, %v733
  %735 = vmatmul.bf16.gmra.mxu0 %v161
  %v736 = vpop.f32.mrf.mxu0
  %v737 = vadd.f32 %v137, %v736
  %v738 = vpop.f32.mrf.mxu0
  %739 = vdwg.mxu0
  %740 = vmatpush.bf16.msra.mxu0 %v468
  %741 = vmatpush.bf16.msra.mxu0 %v465
  %742 = vmatpush.bf16.msra.mxu0 %v462
  %743 = vmatpush.bf16.msra.mxu0 %v459
  %744 = vmatpush.bf16.msra.mxu0 %v456
  %745 = vmatpush.bf16.msra.mxu0 %v453
  %746 = vmatpush.bf16.msra.mxu0 %v450
  %747 = vmatpush.bf16.msra.mxu0 %v447
  %748 = vmatmul.bf16.gmra.mxu0 %v158
  %v749 = vpop.f32.mrf.mxu0
  %v750 = vadd.f32 %v732, %v749
  %v751 = vpop.f32.mrf.mxu0
  %v752 = vadd.f32 %v734, %v751
  %753 = vmatmul.bf16.gmra.mxu0 %v162
  %v754 = vpop.f32.mrf.mxu0
  %v755 = vadd.f32 %v737, %v754
  %v756 = vpop.f32.mrf.mxu0
  %757 = vdwg.mxu0
  %758 = vmatpush.bf16.msra.mxu0 %v492
  %759 = vmatpush.bf16.msra.mxu0 %v489
  %760 = vmatpush.bf16.msra.mxu0 %v486
  %761 = vmatpush.bf16.msra.mxu0 %v483
  %762 = vmatpush.bf16.msra.mxu0 %v480
  %763 = vmatpush.bf16.msra.mxu0 %v477
  %764 = vmatpush.bf16.msra.mxu0 %v474
  %765 = vmatpush.bf16.msra.mxu0 %v471
  %766 = vmatmul.bf16.gmra.mxu0 %v159
  %v767 = vpop.f32.mrf.mxu0
  %v768 = vadd.f32 %v750, %v767
  %v769 = vpop.f32.mrf.mxu0
  %v770 = vadd.f32 %v752, %v769
  %771 = vmatmul.bf16.gmra.mxu0 %v163
  %v772 = vpop.f32.mrf.mxu0
  %v773 = vadd.f32 %v755, %v772
  %v774 = vpop.f32.mrf.mxu0
  %775 = vdwg.mxu0
  %776 = vmatpush.bf16.msra.mxu0 0
  %777 = vmatpush.bf16.msra.mxu0 0
  %778 = vmatpush.bf16.msra.mxu0 0
  %779 = vmatpush.bf16.msra.mxu0 0
  %780 = vmatpush.bf16.msra.mxu0 0
  %781 = vmatpush.bf16.msra.mxu0 0
  %782 = vmatpush.bf16.msra.mxu0 0
  %783 = vmatpush.bf16.msra.mxu0 %v495
  %784 = vmatmul.bf16.gmra.mxu0 %v573
  %v785 = vpop.f32.mrf.mxu0
  %v786 = vadd.f32 %v768, %v785
  %v787 = vpop.f32.mrf.mxu0
  %v788 = vadd.f32 %v770, %v787
  %789 = vmatmul.bf16.gmra.mxu0 %v576
  %v790 = vpop.f32.mrf.mxu0
  %v791 = vadd.f32 %v773, %v790
  %v792 = vpop.f32.mrf.mxu0
  %793 = vdwg.mxu0
  %v794 = vpack.c.bf16 %v714, %v642
  %v795 = vpack.c.bf16 %v786, %v786
  %v796 = vpack.c.bf16 %v716, %v644
  %v797 = vpack.c.bf16 %v788, %v788
  %v798 = vpack.c.bf16 %v719, %v647
  %v799 = vpack.c.bf16 %v791, %v791
  %800 = vst [vmem:[%s3] sm:$0xff] %v794
  %vm801 = vcmask 257024
  %802 = vst.msk [vmem:[%s3 + $0x8] sm:$0xf] %vm801, %v795
  %803 = vst [vmem:[%s3 + $0xc] sm:$0xff] %v796
  %804 = vst.msk [vmem:[%s3 + $0x14] sm:$0xf] %vm801, %v797
  %805 = vst [vmem:[%s3 + $0x18] sm:$0xff] %v798
  %806 = vst.msk [vmem:[%s3 + $0x20] sm:$0xf] %vm801, %v799
  // Predicated region
  $region14: #{net_forward.13} parent=0 // pred_check
    _
  $region15: #{net_forward.13} parent=0 // pred_check_branch
    %808 = sbr.rel (0) target = $region17
  $region16: #{net_forward.13} parent=0 // pred_region
    _
  $region17: #{net_forward.13} parent=0 // pred_fallthru
    _
  // Predicated region
  $region18: #{net_forward.13} parent=0 // pred_check
    _
  $region19: #{net_forward.13} parent=0 // pred_check_branch
    %810 = sbr.rel (0) target = $region21
  $region20: #{net_forward.13} parent=0 // pred_region
    _
  $region21: #{net_forward.13} parent=0 // pred_fallthru
    _

// kernel: net_forward.14
$region0: #{net_forward.14}
  #allocation0 [shape = 'u32[]', space=smem, size = 0x4, offset = 0x4, fixed_abs, tag = 'smem constant byte address 0x4 - core index']
  #allocation1 [shape = 'u32[72,128]{1,0:T(1,128)}', space=vmem, size = 0x9000, scoped, tag = 'internal scratch']
  %s0 = inlined_call_operand.vmem [shape: bf16[24,144], index: 0, kind: input, shape index: {}]
  %s1 = inlined_call_operand.vmem [shape: bf16[144,288], index: 1, kind: input, shape index: {}]
  %s2 = inlined_call_operand.vmem [shape: f32[24,1], index: 2, kind: input, shape index: {}]
  %s3 = inlined_call_operand.vmem [shape: bf16[24,288], index: 3, kind: output, shape index: {}]
  %s4 = sld [smem:[#allocation0]]
  $region22: #{net_forward.14} parent=0
    _
  %s6 = ssub.s32 1, %s4
  %s7 = scalar_select 0, %s6, %s4
  // Predicated region
  $region2: #{net_forward.14} parent=0 // pred_check
    _
  $region3: #{net_forward.14} parent=0 // pred_check_branch
    %9 = sbr.rel (0) target = $region5
  $region4: #{net_forward.14} parent=0 // pred_region
    _
  $region5: #{net_forward.14} parent=0 // pred_fallthru
    _
  // Predicated region
  $region6: #{net_forward.14} parent=0 // pred_check
    _
  $region7: #{net_forward.14} parent=0 // pred_check_branch
    %11 = sbr.rel (0) target = $region9
  $region8: #{net_forward.14} parent=0 // pred_region
    _
  $region9: #{net_forward.14} parent=0 // pred_fallthru
    _
  // Predicated region
  $region10: #{net_forward.14} parent=0 // pred_check
    _
  $region11: #{net_forward.14} parent=0 // pred_check_branch
    %13 = sbr.rel (0) target = $region13
  $region12: #{net_forward.14} parent=0 // pred_region
    _
  $region13: #{net_forward.14} parent=0 // pred_fallthru
    _
  %v15 = vld [vmem:[%s0] sm:$0xff]
  %v16 = vld [vmem:[%s0 + $0x8] sm:$0xff]
  %v17 = vld [vmem:[%s0 + $0x10] sm:$0xff]
  %v18 = vld [vmem:[%s1] sm:$0xff]
  %v19 = vld [vmem:[%s1 + $0x8] sm:$0xf]
  %v20 = vld [vmem:[%s1 + $0xc] sm:$0xff]
  %v21 = vld [vmem:[%s1 + $0x14] sm:$0xf]
  %v22 = vld [vmem:[%s1 + $0x18] sm:$0xff]
  %v23 = vld [vmem:[%s1 + $0x20] sm:$0xf]
  %v24 = vld [vmem:[%s1 + $0x24] sm:$0xff]
  %v25 = vld [vmem:[%s1 + $0x2c] sm:$0xf]
  %v26 = vld [vmem:[%s1 + $0x30] sm:$0xff]
  %v27 = vld [vmem:[%s1 + $0x38] sm:$0xf]
  %v28 = vld [vmem:[%s1 + $0x3c] sm:$0xff]
  %v29 = vld [vmem:[%s1 + $0x44] sm:$0xf]
  %v30 = vld [vmem:[%s1 + $0x48] sm:$0xff]
  %v31 = vld [vmem:[%s1 + $0x50] sm:$0xf]
  %v32 = vld [vmem:[%s1 + $0x54] sm:$0xff]
  %v33 = vld [vmem:[%s1 + $0x5c] sm:$0xf]
  %v34 = vld [vmem:[%s1 + $0x60] sm:$0xff]
  %v35 = vld [vmem:[%s1 + $0x68] sm:$0xf]
  %v36 = vld [vmem:[%s1 + $0x6c] sm:$0xff]
  %v37 = vld [vmem:[%s1 + $0x74] sm:$0xf]
  %v38 = vld [vmem:[%s1 + $0x78] sm:$0xff]
  %v39 = vld [vmem:[%s1 + $0x80] sm:$0xf]
  %v40 = vld [vmem:[%s1 + $0x84] sm:$0xff]
  %v41 = vld [vmem:[%s1 + $0x8c] sm:$0xf]
  %v42 = vld [vmem:[%s1 + $0x90] sm:$0xff]
  %v43 = vld [vmem:[%s1 + $0x98] sm:$0xf]
  %v44 = vld [vmem:[%s1 + $0x9c] sm:$0xff]
  %v45 = vld [vmem:[%s1 + $0xa4] sm:$0xf]
  %v46 = vld [vmem:[%s1 + $0xa8] sm:$0xff]
  %v47 = vld [vmem:[%s1 + $0xb0] sm:$0xf]
  %v48 = vld [vmem:[%s1 + $0xb4] sm:$0xff]
  %v49 = vld [vmem:[%s1 + $0xbc] sm:$0xf]
  %v50 = vld [vmem:[%s1 + $0xc0] sm:$0xff]
  %v51 = vld [vmem:[%s1 + $0xc8] sm:$0xf]
  %v52 = vld [vmem:[%s1 + $0xcc] sm:$0xff]
  %v53 = vld [vmem:[%s1 + $0xd4] sm:$0xf]
  %v54 = vld [vmem:[%s2] sm:$0xff]
  %v55 = vld [vmem:[%s2 + $0x8] sm:$0xff]
  %v56 = vld [vmem:[%s2 + $0x10] sm:$0xff]
  %58 = vset.pattern.permute.xlu0 0
  %59 = vperm.xlu0 %58, %v54
  %v60 = vpop.permute.xlu0 %59
  %63 = vset.pattern.permute.xlu0 0
  %64 = vperm.xlu0 %63, %v55
  %v65 = vpop.permute.xlu0 %64
  %68 = vset.pattern.permute.xlu0 0
  %69 = vperm.xlu0 %68, %v56
  %v70 = vpop.permute.xlu0 %69
  %v75 = vunpack.c.l.b16 %v15
  %v76 = vunpack.c.h.b16 %v15
  %v77 = vunpack.c.l.b16 %v16
  %v78 = vunpack.c.h.b16 %v16
  %v79 = vunpack.c.l.b16 %v17
  %v80 = vunpack.c.h.b16 %v17
  %v81 = vpack.c.b16 %v77, %v75
  %v82 = vpack.c.b16 %v78, %v76
  %v83 = vpack.c.b16 %v79, %v79
  %v84 = vpack.c.b16 %v80, %v80
  %v123 = vunpack.c.l.b16 %v18
  %v124 = vunpack.c.h.b16 %v18
  %v125 = vunpack.c.l.b16 %v19
  %v126 = vunpack.c.l.b16 %v20
  %v127 = vunpack.c.h.b16 %v20
  %v128 = vunpack.c.l.b16 %v21
  %v129 = vunpack.c.l.b16 %v22
  %v130 = vunpack.c.h.b16 %v22
  %v131 = vunpack.c.l.b16 %v23
  %v132 = vunpack.c.l.b16 %v24
  %v133 = vunpack.c.h.b16 %v24
  %v134 = vunpack.c.l.b16 %v25
  %v135 = vunpack.c.l.b16 %v26
  %v136 = vunpack.c.h.b16 %v26
  %v137 = vunpack.c.l.b16 %v27
  %v138 = vunpack.c.l.b16 %v28
  %v139 = vunpack.c.h.b16 %v28
  %v140 = vunpack.c.l.b16 %v29
  %v141 = vunpack.c.l.b16 %v30
  %v142 = vunpack.c.h.b16 %v30
  %v143 = vunpack.c.l.b16 %v31
  %v144 = vunpack.c.l.b16 %v32
  %v145 = vunpack.c.h.b16 %v32
  %v146 = vunpack.c.l.b16 %v33
  %v147 = vunpack.c.l.b16 %v34
  %v148 = vunpack.c.h.b16 %v34
  %v149 = vunpack.c.l.b16 %v35
  %v150 = vunpack.c.l.b16 %v36
  %v151 = vunpack.c.h.b16 %v36
  %v152 = vunpack.c.l.b16 %v37
  %v153 = vunpack.c.l.b16 %v38
  %v154 = vunpack.c.h.b16 %v38
  %v155 = vunpack.c.l.b16 %v39
  %v156 = vunpack.c.l.b16 %v40
  %v157 = vunpack.c.h.b16 %v40
  %v158 = vunpack.c.l.b16 %v41
  %v159 = vunpack.c.l.b16 %v42
  %v160 = vunpack.c.h.b16 %v42
  %v161 = vunpack.c.l.b16 %v43
  %v162 = vunpack.c.l.b16 %v44
  %v163 = vunpack.c.h.b16 %v44
  %v164 = vunpack.c.l.b16 %v45
  %v165 = vunpack.c.l.b16 %v46
  %v166 = vunpack.c.h.b16 %v46
  %v167 = vunpack.c.l.b16 %v47
  %v168 = vunpack.c.l.b16 %v48
  %v169 = vunpack.c.h.b16 %v48
  %v170 = vunpack.c.l.b16 %v49
  %v171 = vunpack.c.l.b16 %v50
  %v172 = vunpack.c.h.b16 %v50
  %v173 = vunpack.c.l.b16 %v51
  %v174 = vunpack.c.l.b16 %v52
  %v175 = vunpack.c.h.b16 %v52
  %v176 = vunpack.c.l.b16 %v53
  %v177 = vpack.c.b16 %v126, %v123
  %v178 = vpack.c.b16 %v127, %v124
  %v179 = vpack.c.b16 %v128, %v125
  %v180 = vpack.c.b16 %v132, %v129
  %v181 = vpack.c.b16 %v133, %v130
  %v182 = vpack.c.b16 %v134, %v131
  %v183 = vpack.c.b16 %v138, %v135
  %v184 = vpack.c.b16 %v139, %v136
  %v185 = vpack.c.b16 %v140, %v137
  %v186 = vpack.c.b16 %v144, %v141
  %v187 = vpack.c.b16 %v145, %v142
  %v188 = vpack.c.b16 %v146, %v143
  %v189 = vpack.c.b16 %v150, %v147
  %v190 = vpack.c.b16 %v151, %v148
  %v191 = vpack.c.b16 %v152, %v149
  %v192 = vpack.c.b16 %v156, %v153
  %v193 = vpack.c.b16 %v157, %v154
  %v194 = vpack.c.b16 %v158, %v155
  %v195 = vpack.c.b16 %v162, %v159
  %v196 = vpack.c.b16 %v163, %v160
  %v197 = vpack.c.b16 %v164, %v161
  %v198 = vpack.c.b16 %v168, %v165
  %v199 = vpack.c.b16 %v169, %v166
  %v200 = vpack.c.b16 %v170, %v167
  %v201 = vpack.c.b16 %v174, %v171
  %v202 = vpack.c.b16 %v175, %v172
  %v203 = vpack.c.b16 %v176, %v173
  %vm231 = vcmask 130048
  %v233 = vsel %vm231, %v82, 0
  %v236 = vsel %vm231, %v84, 0
  %238 = vmatpush.bf16.msra.mxu0 %v198
  %239 = vmatpush.bf16.msra.mxu0 %v195
  %240 = vmatpush.bf16.msra.mxu0 %v192
  %241 = vmatpush.bf16.msra.mxu0 %v189
  %242 = vmatpush.bf16.msra.mxu0 %v186
  %243 = vmatpush.bf16.msra.mxu0 %v183
  %244 = vmatpush.bf16.msra.mxu0 %v180
  %245 = vmatpush.bf16.msra.mxu0 %v177
  %246 = vmatmul.bf16.gmra.mxu0 %v81
  %v247 = vpop.f32.mrf.mxu0
  %v248 = vadd.f32 %v60, %v247
  %v249 = vpop.f32.mrf.mxu0
  %v250 = vadd.f32 %v65, %v249
  %251 = vmatmul.bf16.gmra.mxu0 %v83
  %v252 = vpop.f32.mrf.mxu0
  %v253 = vadd.f32 %v70, %v252
  %v254 = vpop.f32.mrf.mxu0
  %255 = vdwg.mxu0
  %256 = vmatpush.bf16.msra.mxu0 0
  %257 = vmatpush.bf16.msra.mxu0 0
  %258 = vmatpush.bf16.msra.mxu0 0
  %259 = vmatpush.bf16.msra.mxu0 0
  %260 = vmatpush.bf16.msra.mxu0 0
  %261 = vmatpush.bf16.msra.mxu0 0
  %262 = vmatpush.bf16.msra.mxu0 0
  %263 = vmatpush.bf16.msra.mxu0 %v201
  %264 = vmatmul.bf16.gmra.mxu0 %v233
  %v265 = vpop.f32.mrf.mxu0
  %v266 = vadd.f32 %v248, %v265
  %v267 = vpop.f32.mrf.mxu0
  %v268 = vadd.f32 %v250, %v267
  %269 = vmatmul.bf16.gmra.mxu0 %v236
  %v270 = vpop.f32.mrf.mxu0
  %v271 = vadd.f32 %v253, %v270
  %v272 = vpop.f32.mrf.mxu0
  %273 = vdwg.mxu0
  %274 = vmatpush.bf16.msra.mxu0 %v199
  %275 = vmatpush.bf16.msra.mxu0 %v196
  %276 = vmatpush.bf16.msra.mxu0 %v193
  %277 = vmatpush.bf16.msra.mxu0 %v190
  %278 = vmatpush.bf16.msra.mxu0 %v187
  %279 = vmatpush.bf16.msra.mxu0 %v184
  %280 = vmatpush.bf16.msra.mxu0 %v181
  %281 = vmatpush.bf16.msra.mxu0 %v178
  %282 = vmatmul.bf16.gmra.mxu0 %v81
  %v283 = vpop.f32.mrf.mxu0
  %v284 = vadd.f32 %v60, %v283
  %v285 = vpop.f32.mrf.mxu0
  %v286 = vadd.f32 %v65, %v285
  %287 = vmatmul.bf16.gmra.mxu0 %v83
  %v288 = vpop.f32.mrf.mxu0
  %v289 = vadd.f32 %v70, %v288
  %v290 = vpop.f32.mrf.mxu0
  %291 = vdwg.mxu0
  %292 = vmatpush.bf16.msra.mxu0 0
  %293 = vmatpush.bf16.msra.mxu0 0
  %294 = vmatpush.bf16.msra.mxu0 0
  %295 = vmatpush.bf16.msra.mxu0 0
  %296 = vmatpush.bf16.msra.mxu0 0
  %297 = vmatpush.bf16.msra.mxu0 0
  %298 = vmatpush.bf16.msra.mxu0 0
  %299 = vmatpush.bf16.msra.mxu0 %v202
  %300 = vmatmul.bf16.gmra.mxu0 %v233
  %v301 = vpop.f32.mrf.mxu0
  %v302 = vadd.f32 %v284, %v301
  %v303 = vpop.f32.mrf.mxu0
  %v304 = vadd.f32 %v286, %v303
  %305 = vmatmul.bf16.gmra.mxu0 %v236
  %v306 = vpop.f32.mrf.mxu0
  %v307 = vadd.f32 %v289, %v306
  %v308 = vpop.f32.mrf.mxu0
  %309 = vdwg.mxu0
  %310 = vmatpush.bf16.msra.mxu0 %v200
  %311 = vmatpush.bf16.msra.mxu0 %v197
  %312 = vmatpush.bf16.msra.mxu0 %v194
  %313 = vmatpush.bf16.msra.mxu0 %v191
  %314 = vmatpush.bf16.msra.mxu0 %v188
  %315 = vmatpush.bf16.msra.mxu0 %v185
  %316 = vmatpush.bf16.msra.mxu0 %v182
  %317 = vmatpush.bf16.msra.mxu0 %v179
  %318 = vmatmul.bf16.gmra.mxu0 %v81
  %v319 = vpop.f32.mrf.mxu0
  %v320 = vadd.f32 %v60, %v319
  %v321 = vpop.f32.mrf.mxu0
  %v322 = vadd.f32 %v65, %v321
  %323 = vmatmul.bf16.gmra.mxu0 %v83
  %v324 = vpop.f32.mrf.mxu0
  %v325 = vadd.f32 %v70, %v324
  %v326 = vpop.f32.mrf.mxu0
  %327 = vdwg.mxu0
  %328 = vmatpush.bf16.msra.mxu0 0
  %329 = vmatpush.bf16.msra.mxu0 0
  %330 = vmatpush.bf16.msra.mxu0 0
  %331 = vmatpush.bf16.msra.mxu0 0
  %332 = vmatpush.bf16.msra.mxu0 0
  %333 = vmatpush.bf16.msra.mxu0 0
  %334 = vmatpush.bf16.msra.mxu0 0
  %335 = vmatpush.bf16.msra.mxu0 %v203
  %336 = vmatmul.bf16.gmra.mxu0 %v233
  %v337 = vpop.f32.mrf.mxu0
  %v338 = vadd.f32 %v320, %v337
  %v339 = vpop.f32.mrf.mxu0
  %v340 = vadd.f32 %v322, %v339
  %341 = vmatmul.bf16.gmra.mxu0 %v236
  %v342 = vpop.f32.mrf.mxu0
  %v343 = vadd.f32 %v325, %v342
  %v344 = vpop.f32.mrf.mxu0
  %345 = vdwg.mxu0
  %v346 = vpack.c.bf16 %v302, %v266
  %v347 = vpack.c.bf16 %v338, %v338
  %v348 = vpack.c.bf16 %v304, %v268
  %v349 = vpack.c.bf16 %v340, %v340
  %v350 = vpack.c.bf16 %v307, %v271
  %v351 = vpack.c.bf16 %v343, %v343
  %352 = vst [vmem:[%s3] sm:$0xff] %v346
  %vm353 = vcmask 257024
  %354 = vst.msk [vmem:[%s3 + $0x8] sm:$0xf] %vm353, %v347
  %355 = vst [vmem:[%s3 + $0xc] sm:$0xff] %v348
  %356 = vst.msk [vmem:[%s3 + $0x14] sm:$0xf] %vm353, %v349
  %357 = vst [vmem:[%s3 + $0x18] sm:$0xff] %v350
  %358 = vst.msk [vmem:[%s3 + $0x20] sm:$0xf] %vm353, %v351
  // Predicated region
  $region14: #{net_forward.14} parent=0 // pred_check
    _
  $region15: #{net_forward.14} parent=0 // pred_check_branch
    %360 = sbr.rel (0) target = $region17
  $region16: #{net_forward.14} parent=0 // pred_region
    _
  $region17: #{net_forward.14} parent=0 // pred_fallthru
    _
  // Predicated region
  $region18: #{net_forward.14} parent=0 // pred_check
    _
  $region19: #{net_forward.14} parent=0 // pred_check_branch
    %362 = sbr.rel (0) target = $region21
  $region20: #{net_forward.14} parent=0 // pred_region
    _
  $region21: #{net_forward.14} parent=0 // pred_fallthru
    _

// kernel: net_forward.15
$region0: #{net_forward.15}
  #allocation0 [shape = 'u32[]', space=smem, size = 0x4, offset = 0x4, fixed_abs, tag = 'smem constant byte address 0x4 - core index']
  #allocation1 [shape = 'u32[72,128]{1,0:T(1,128)}', space=vmem, size = 0x9000, scoped, tag = 'internal scratch']
  %s0 = inlined_call_operand.vmem [shape: bf16[24,216], index: 0, kind: input, shape index: {}]
  %s1 = inlined_call_operand.vmem [shape: bf16[216,288], index: 1, kind: input, shape index: {}]
  %s2 = inlined_call_operand.vmem [shape: f32[24,1], index: 2, kind: input, shape index: {}]
  %s3 = inlined_call_operand.vmem [shape: bf16[24,288], index: 3, kind: output, shape index: {}]
  %s4 = sld [smem:[#allocation0]]
  $region22: #{net_forward.15} parent=0
    _
  %s6 = ssub.s32 1, %s4
  %s7 = scalar_select 0, %s6, %s4
  // Predicated region
  $region2: #{net_forward.15} parent=0 // pred_check
    _
  $region3: #{net_forward.15} parent=0 // pred_check_branch
    %9 = sbr.rel (0) target = $region5
  $region4: #{net_forward.15} parent=0 // pred_region
    _
  $region5: #{net_forward.15} parent=0 // pred_fallthru
    _
  // Predicated region
  $region6: #{net_forward.15} parent=0 // pred_check
    _
  $region7: #{net_forward.15} parent=0 // pred_check_branch
    %11 = sbr.rel (0) target = $region9
  $region8: #{net_forward.15} parent=0 // pred_region
    _
  $region9: #{net_forward.15} parent=0 // pred_fallthru
    _
  // Predicated region
  $region10: #{net_forward.15} parent=0 // pred_check
    _
  $region11: #{net_forward.15} parent=0 // pred_check_branch
    %13 = sbr.rel (0) target = $region13
  $region12: #{net_forward.15} parent=0 // pred_region
    _
  $region13: #{net_forward.15} parent=0 // pred_fallthru
    _
  %v15 = vld [vmem:[%s0] sm:$0xff]
  %v16 = vld [vmem:[%s0 + $0x8] sm:$0xff]
  %v17 = vld [vmem:[%s0 + $0x10] sm:$0xff]
  %v18 = vld [vmem:[%s1] sm:$0xff]
  %v19 = vld [vmem:[%s1 + $0x8] sm:$0xf]
  %v20 = vld [vmem:[%s1 + $0xc] sm:$0xff]
  %v21 = vld [vmem:[%s1 + $0x14] sm:$0xf]
  %v22 = vld [vmem:[%s1 + $0x18] sm:$0xff]
  %v23 = vld [vmem:[%s1 + $0x20] sm:$0xf]
  %v24 = vld [vmem:[%s1 + $0x24] sm:$0xff]
  %v25 = vld [vmem:[%s1 + $0x2c] sm:$0xf]
  %v26 = vld [vmem:[%s1 + $0x30] sm:$0xff]
  %v27 = vld [vmem:[%s1 + $0x38] sm:$0xf]
  %v28 = vld [vmem:[%s1 + $0x3c] sm:$0xff]
  %v29 = vld [vmem:[%s1 + $0x44] sm:$0xf]
  %v30 = vld [vmem:[%s1 + $0x48] sm:$0xff]
  %v31 = vld [vmem:[%s1 + $0x50] sm:$0xf]
  %v32 = vld [vmem:[%s1 + $0x54] sm:$0xff]
  %v33 = vld [vmem:[%s1 + $0x5c] sm:$0xf]
  %v34 = vld [vmem:[%s1 + $0x60] sm:$0xff]
  %v35 = vld [vmem:[%s1 + $0x68] sm:$0xf]
  %v36 = vld [vmem:[%s1 + $0x6c] sm:$0xff]
  %v37 = vld [vmem:[%s1 + $0x74] sm:$0xf]
  %v38 = vld [vmem:[%s1 + $0x78] sm:$0xff]
  %v39 = vld [vmem:[%s1 + $0x80] sm:$0xf]
  %v40 = vld [vmem:[%s1 + $0x84] sm:$0xff]
  %v41 = vld [vmem:[%s1 + $0x8c] sm:$0xf]
  %v42 = vld [vmem:[%s1 + $0x90] sm:$0xff]
  %v43 = vld [vmem:[%s1 + $0x98] sm:$0xf]
  %v44 = vld [vmem:[%s1 + $0x9c] sm:$0xff]
  %v45 = vld [vmem:[%s1 + $0xa4] sm:$0xf]
  %v46 = vld [vmem:[%s1 + $0xa8] sm:$0xff]
  %v47 = vld [vmem:[%s1 + $0xb0] sm:$0xf]
  %v48 = vld [vmem:[%s1 + $0xb4] sm:$0xff]
  %v49 = vld [vmem:[%s1 + $0xbc] sm:$0xf]
  %v50 = vld [vmem:[%s1 + $0xc0] sm:$0xff]
  %v51 = vld [vmem:[%s1 + $0xc8] sm:$0xf]
  %v52 = vld [vmem:[%s1 + $0xcc] sm:$0xff]
  %v53 = vld [vmem:[%s1 + $0xd4] sm:$0xf]
  %v54 = vld [vmem:[%s1 + $0xd8] sm:$0xff]
  %v55 = vld [vmem:[%s1 + $0xe0] sm:$0xf]
  %v56 = vld [vmem:[%s1 + $0xe4] sm:$0xff]
  %v57 = vld [vmem:[%s1 + $0xec] sm:$0xf]
  %v58 = vld [vmem:[%s1 + $0xf0] sm:$0xff]
  %v59 = vld [vmem:[%s1 + $0xf8] sm:$0xf]
  %v60 = vld [vmem:[%s1 + $0xfc] sm:$0xff]
  %v61 = vld [vmem:[%s1 + $0x104] sm:$0xf]
  %v62 = vld [vmem:[%s1 + $0x108] sm:$0xff]
  %v63 = vld [vmem:[%s1 + $0x110] sm:$0xf]
  %v64 = vld [vmem:[%s1 + $0x114] sm:$0xff]
  %v65 = vld [vmem:[%s1 + $0x11c] sm:$0xf]
  %v66 = vld [vmem:[%s1 + $0x120] sm:$0xff]
  %v67 = vld [vmem:[%s1 + $0x128] sm:$0xf]
  %v68 = vld [vmem:[%s1 + $0x12c] sm:$0xff]
  %v69 = vld [vmem:[%s1 + $0x134] sm:$0xf]
  %v70 = vld [vmem:[%s1 + $0x138] sm:$0xff]
  %v71 = vld [vmem:[%s1 + $0x140] sm:$0xf]
  %v72 = vld [vmem:[%s2] sm:$0xff]
  %v73 = vld [vmem:[%s2 + $0x8] sm:$0xff]
  %v74 = vld [vmem:[%s2 + $0x10] sm:$0xff]
  %76 = vset.pattern.permute.xlu0 0
  %77 = vperm.xlu0 %76, %v72
  %v78 = vpop.permute.xlu0 %77
  %81 = vset.pattern.permute.xlu0 0
  %82 = vperm.xlu0 %81, %v73
  %v83 = vpop.permute.xlu0 %82
  %86 = vset.pattern.permute.xlu0 0
  %87 = vperm.xlu0 %86, %v74
  %v88 = vpop.permute.xlu0 %87
  %v93 = vunpack.c.l.b16 %v15
  %v94 = vunpack.c.h.b16 %v15
  %v95 = vunpack.c.l.b16 %v16
  %v96 = vunpack.c.h.b16 %v16
  %v97 = vunpack.c.l.b16 %v17
  %v98 = vunpack.c.h.b16 %v17
  %v99 = vpack.c.b16 %v95, %v93
  %v100 = vpack.c.b16 %v96, %v94
  %v101 = vpack.c.b16 %v97, %v97
  %v102 = vpack.c.b16 %v98, %v98
  %v159 = vunpack.c.l.b16 %v18
  %v160 = vunpack.c.h.b16 %v18
  %v161 = vunpack.c.l.b16 %v19
  %v162 = vunpack.c.l.b16 %v20
  %v163 = vunpack.c.h.b16 %v20
  %v164 = vunpack.c.l.b16 %v21
  %v165 = vunpack.c.l.b16 %v22
  %v166 = vunpack.c.h.b16 %v22
  %v167 = vunpack.c.l.b16 %v23
  %v168 = vunpack.c.l.b16 %v24
  %v169 = vunpack.c.h.b16 %v24
  %v170 = vunpack.c.l.b16 %v25
  %v171 = vunpack.c.l.b16 %v26
  %v172 = vunpack.c.h.b16 %v26
  %v173 = vunpack.c.l.b16 %v27
  %v174 = vunpack.c.l.b16 %v28
  %v175 = vunpack.c.h.b16 %v28
  %v176 = vunpack.c.l.b16 %v29
  %v177 = vunpack.c.l.b16 %v30
  %v178 = vunpack.c.h.b16 %v30
  %v179 = vunpack.c.l.b16 %v31
  %v180 = vunpack.c.l.b16 %v32
  %v181 = vunpack.c.h.b16 %v32
  %v182 = vunpack.c.l.b16 %v33
  %v183 = vunpack.c.l.b16 %v34
  %v184 = vunpack.c.h.b16 %v34
  %v185 = vunpack.c.l.b16 %v35
  %v186 = vunpack.c.l.b16 %v36
  %v187 = vunpack.c.h.b16 %v36
  %v188 = vunpack.c.l.b16 %v37
  %v189 = vunpack.c.l.b16 %v38
  %v190 = vunpack.c.h.b16 %v38
  %v191 = vunpack.c.l.b16 %v39
  %v192 = vunpack.c.l.b16 %v40
  %v193 = vunpack.c.h.b16 %v40
  %v194 = vunpack.c.l.b16 %v41
  %v195 = vunpack.c.l.b16 %v42
  %v196 = vunpack.c.h.b16 %v42
  %v197 = vunpack.c.l.b16 %v43
  %v198 = vunpack.c.l.b16 %v44
  %v199 = vunpack.c.h.b16 %v44
  %v200 = vunpack.c.l.b16 %v45
  %v201 = vunpack.c.l.b16 %v46
  %v202 = vunpack.c.h.b16 %v46
  %v203 = vunpack.c.l.b16 %v47
  %v204 = vunpack.c.l.b16 %v48
  %v205 = vunpack.c.h.b16 %v48
  %v206 = vunpack.c.l.b16 %v49
  %v207 = vunpack.c.l.b16 %v50
  %v208 = vunpack.c.h.b16 %v50
  %v209 = vunpack.c.l.b16 %v51
  %v210 = vunpack.c.l.b16 %v52
  %v211 = vunpack.c.h.b16 %v52
  %v212 = vunpack.c.l.b16 %v53
  %v213 = vunpack.c.l.b16 %v54
  %v214 = vunpack.c.h.b16 %v54
  %v215 = vunpack.c.l.b16 %v55
  %v216 = vunpack.c.l.b16 %v56
  %v217 = vunpack.c.h.b16 %v56
  %v218 = vunpack.c.l.b16 %v57
  %v219 = vunpack.c.l.b16 %v58
  %v220 = vunpack.c.h.b16 %v58
  %v221 = vunpack.c.l.b16 %v59
  %v222 = vunpack.c.l.b16 %v60
  %v223 = vunpack.c.h.b16 %v60
  %v224 = vunpack.c.l.b16 %v61
  %v225 = vunpack.c.l.b16 %v62
  %v226 = vunpack.c.h.b16 %v62
  %v227 = vunpack.c.l.b16 %v63
  %v228 = vunpack.c.l.b16 %v64
  %v229 = vunpack.c.h.b16 %v64
  %v230 = vunpack.c.l.b16 %v65
  %v231 = vunpack.c.l.b16 %v66
  %v232 = vunpack.c.h.b16 %v66
  %v233 = vunpack.c.l.b16 %v67
  %v234 = vunpack.c.l.b16 %v68
  %v235 = vunpack.c.h.b16 %v68
  %v236 = vunpack.c.l.b16 %v69
  %v237 = vunpack.c.l.b16 %v70
  %v238 = vunpack.c.h.b16 %v70
  %v239 = vunpack.c.l.b16 %v71
  %v240 = vpack.c.b16 %v162, %v159
  %v241 = vpack.c.b16 %v163, %v160
  %v242 = vpack.c.b16 %v164, %v161
  %v243 = vpack.c.b16 %v168, %v165
  %v244 = vpack.c.b16 %v169, %v166
  %v245 = vpack.c.b16 %v170, %v167
  %v246 = vpack.c.b16 %v174, %v171
  %v247 = vpack.c.b16 %v175, %v172
  %v248 = vpack.c.b16 %v176, %v173
  %v249 = vpack.c.b16 %v180, %v177
  %v250 = vpack.c.b16 %v181, %v178
  %v251 = vpack.c.b16 %v182, %v179
  %v252 = vpack.c.b16 %v186, %v183
  %v253 = vpack.c.b16 %v187, %v184
  %v254 = vpack.c.b16 %v188, %v185
  %v255 = vpack.c.b16 %v192, %v189
  %v256 = vpack.c.b16 %v193, %v190
  %v257 = vpack.c.b16 %v194, %v191
  %v258 = vpack.c.b16 %v198, %v195
  %v259 = vpack.c.b16 %v199, %v196
  %v260 = vpack.c.b16 %v200, %v197
  %v261 = vpack.c.b16 %v204, %v201
  %v262 = vpack.c.b16 %v205, %v202
  %v263 = vpack.c.b16 %v206, %v203
  %v264 = vpack.c.b16 %v210, %v207
  %v265 = vpack.c.b16 %v211, %v208
  %v266 = vpack.c.b16 %v212, %v209
  %v267 = vpack.c.b16 %v216, %v213
  %v268 = vpack.c.b16 %v217, %v214
  %v269 = vpack.c.b16 %v218, %v215
  %v270 = vpack.c.b16 %v222, %v219
  %v271 = vpack.c.b16 %v223, %v220
  %v272 = vpack.c.b16 %v224, %v221
  %v273 = vpack.c.b16 %v228, %v225
  %v274 = vpack.c.b16 %v229, %v226
  %v275 = vpack.c.b16 %v230, %v227
  %v276 = vpack.c.b16 %v234, %v231
  %v277 = vpack.c.b16 %v235, %v232
  %v278 = vpack.c.b16 %v236, %v233
  %v279 = vpack.c.b16 %v237, %v237
  %v280 = vpack.c.b16 %v238, %v238
  %v281 = vpack.c.b16 %v239, %v239
  %vm321 = vcmask 719872
  %v323 = vsel %vm321, %v100, 0
  %v326 = vsel %vm321, %v102, 0
  %vm328 = vcmask 1043456
  %v330 = vsel %vm328, %v279, 0
  %v333 = vsel %vm328, %v280, 0
  %v336 = vsel %vm328, %v281, 0
  %338 = vmatpush.bf16.msra.mxu0 %v261
  %339 = vmatpush.bf16.msra.mxu0 %v258
  %340 = vmatpush.bf16.msra.mxu0 %v255
  %341 = vmatpush.bf16.msra.mxu0 %v252
  %342 = vmatpush.bf16.msra.mxu0 %v249
  %343 = vmatpush.bf16.msra.mxu0 %v246
  %344 = vmatpush.bf16.msra.mxu0 %v243
  %345 = vmatpush.bf16.msra.mxu0 %v240
  %346 = vmatmul.bf16.gmra.mxu0 %v99
  %v347 = vpop.f32.mrf.mxu0
  %v348 = vadd.f32 %v78, %v347
  %v349 = vpop.f32.mrf.mxu0
  %v350 = vadd.f32 %v83, %v349
  %351 = vmatmul.bf16.gmra.mxu0 %v101
  %v352 = vpop.f32.mrf.mxu0
  %v353 = vadd.f32 %v88, %v352
  %v354 = vpop.f32.mrf.mxu0
  %355 = vdwg.mxu0
  %356 = vmatpush.bf16.msra.mxu0 0
  %357 = vmatpush.bf16.msra.mxu0 0
  %358 = vmatpush.bf16.msra.mxu0 %v330
  %359 = vmatpush.bf16.msra.mxu0 %v276
  %360 = vmatpush.bf16.msra.mxu0 %v273
  %361 = vmatpush.bf16.msra.mxu0 %v270
  %362 = vmatpush.bf16.msra.mxu0 %v267
  %363 = vmatpush.bf16.msra.mxu0 %v264
  %364 = vmatmul.bf16.gmra.mxu0 %v323
  %v365 = vpop.f32.mrf.mxu0
  %v366 = vadd.f32 %v348, %v365
  %v367 = vpop.f32.mrf.mxu0
  %v368 = vadd.f32 %v350, %v367
  %369 = vmatmul.bf16.gmra.mxu0 %v326
  %v370 = vpop.f32.mrf.mxu0
  %v371 = vadd.f32 %v353, %v370
  %v372 = vpop.f32.mrf.mxu0
  %373 = vdwg.mxu0
  %374 = vmatpush.bf16.msra.mxu0 %v262
  %375 = vmatpush.bf16.msra.mxu0 %v259
  %376 = vmatpush.bf16.msra.mxu0 %v256
  %377 = vmatpush.bf16.msra.mxu0 %v253
  %378 = vmatpush.bf16.msra.mxu0 %v250
  %379 = vmatpush.bf16.msra.mxu0 %v247
  %380 = vmatpush.bf16.msra.mxu0 %v244
  %381 = vmatpush.bf16.msra.mxu0 %v241
  %382 = vmatmul.bf16.gmra.mxu0 %v99
  %v383 = vpop.f32.mrf.mxu0
  %v384 = vadd.f32 %v78, %v383
  %v385 = vpop.f32.mrf.mxu0
  %v386 = vadd.f32 %v83, %v385
  %387 = vmatmul.bf16.gmra.mxu0 %v101
  %v388 = vpop.f32.mrf.mxu0
  %v389 = vadd.f32 %v88, %v388
  %v390 = vpop.f32.mrf.mxu0
  %391 = vdwg.mxu0
  %392 = vmatpush.bf16.msra.mxu0 0
  %393 = vmatpush.bf16.msra.mxu0 0
  %394 = vmatpush.bf16.msra.mxu0 %v333
  %395 = vmatpush.bf16.msra.mxu0 %v277
  %396 = vmatpush.bf16.msra.mxu0 %v274
  %397 = vmatpush.bf16.msra.mxu0 %v271
  %398 = vmatpush.bf16.msra.mxu0 %v268
  %399 = vmatpush.bf16.msra.mxu0 %v265
  %400 = vmatmul.bf16.gmra.mxu0 %v323
  %v401 = vpop.f32.mrf.mxu0
  %v402 = vadd.f32 %v384, %v401
  %v403 = vpop.f32.mrf.mxu0
  %v404 = vadd.f32 %v386, %v403
  %405 = vmatmul.bf16.gmra.mxu0 %v326
  %v406 = vpop.f32.mrf.mxu0
  %v407 = vadd.f32 %v389, %v406
  %v408 = vpop.f32.mrf.mxu0
  %409 = vdwg.mxu0
  %410 = vmatpush.bf16.msra.mxu0 %v263
  %411 = vmatpush.bf16.msra.mxu0 %v260
  %412 = vmatpush.bf16.msra.mxu0 %v257
  %413 = vmatpush.bf16.msra.mxu0 %v254
  %414 = vmatpush.bf16.msra.mxu0 %v251
  %415 = vmatpush.bf16.msra.mxu0 %v248
  %416 = vmatpush.bf16.msra.mxu0 %v245
  %417 = vmatpush.bf16.msra.mxu0 %v242
  %418 = vmatmul.bf16.gmra.mxu0 %v99
  %v419 = vpop.f32.mrf.mxu0
  %v420 = vadd.f32 %v78, %v419
  %v421 = vpop.f32.mrf.mxu0
  %v422 = vadd.f32 %v83, %v421
  %423 = vmatmul.bf16.gmra.mxu0 %v101
  %v424 = vpop.f32.mrf.mxu0
  %v425 = vadd.f32 %v88, %v424
  %v426 = vpop.f32.mrf.mxu0
  %427 = vdwg.mxu0
  %428 = vmatpush.bf16.msra.mxu0 0
  %429 = vmatpush.bf16.msra.mxu0 0
  %430 = vmatpush.bf16.msra.mxu0 %v336
  %431 = vmatpush.bf16.msra.mxu0 %v278
  %432 = vmatpush.bf16.msra.mxu0 %v275
  %433 = vmatpush.bf16.msra.mxu0 %v272
  %434 = vmatpush.bf16.msra.mxu0 %v269
  %435 = vmatpush.bf16.msra.mxu0 %v266
  %436 = vmatmul.bf16.gmra.mxu0 %v323
  %v437 = vpop.f32.mrf.mxu0
  %v438 = vadd.f32 %v420, %v437
  %v439 = vpop.f32.mrf.mxu0
  %v440 = vadd.f32 %v422, %v439
  %441 = vmatmul.bf16.gmra.mxu0 %v326
  %v442 = vpop.f32.mrf.mxu0
  %v443 = vadd.f32 %v425, %v442
  %v444 = vpop.f32.mrf.mxu0
  %445 = vdwg.mxu0
  %v446 = vpack.c.bf16 %v402, %v366
  %v447 = vpack.c.bf16 %v438, %v438
  %v448 = vpack.c.bf16 %v404, %v368
  %v449 = vpack.c.bf16 %v440, %v440
  %v450 = vpack.c.bf16 %v407, %v371
  %v451 = vpack.c.bf16 %v443, %v443
  %452 = vst [vmem:[%s3] sm:$0xff] %v446
  %vm453 = vcmask 257024
  %454 = vst.msk [vmem:[%s3 + $0x8] sm:$0xf] %vm453, %v447
  %455 = vst [vmem:[%s3 + $0xc] sm:$0xff] %v448
  %456 = vst.msk [vmem:[%s3 + $0x14] sm:$0xf] %vm453, %v449
  %457 = vst [vmem:[%s3 + $0x18] sm:$0xff] %v450
  %458 = vst.msk [vmem:[%s3 + $0x20] sm:$0xf] %vm453, %v451
  // Predicated region
  $region14: #{net_forward.15} parent=0 // pred_check
    _
  $region15: #{net_forward.15} parent=0 // pred_check_branch
    %460 = sbr.rel (0) target = $region17
  $region16: #{net_forward.15} parent=0 // pred_region
    _
  $region17: #{net_forward.15} parent=0 // pred_fallthru
    _
  // Predicated region
  $region18: #{net_forward.15} parent=0 // pred_check
    _
  $region19: #{net_forward.15} parent=0 // pred_check_branch
    %462 = sbr.rel (0) target = $region21
  $region20: #{net_forward.15} parent=0 // pred_region
    _
  $region21: #{net_forward.15} parent=0 // pred_fallthru
    _

// kernel: net_forward.16
$region0: #{net_forward.16}
  #allocation0 [shape = 'u32[]', space=smem, size = 0x4, offset = 0x4, fixed_abs, tag = 'smem constant byte address 0x4 - core index']
  #allocation1 [shape = 'u32[72,128]{1,0:T(1,128)}', space=vmem, size = 0x9000, scoped, tag = 'internal scratch']
  #allocation2 [shape = 'f32[20,32]{1,0:T(8,128)}', space=vmem, size = 0x3000, scoped, tag = 'scratch operand']
  %s0 = inlined_call_operand.vmem [shape: bf16[20,2200], index: 0, kind: input, shape index: {}]
  %s1 = inlined_call_operand.vmem [shape: bf16[4,2200,32], index: 1, kind: input, shape index: {}]
  %s2 = inlined_call_operand.vmem [shape: f32[20,1], index: 2, kind: input, shape index: {}]
  %s3 = inlined_call_operand.vmem [shape: bf16[20,32], index: 3, kind: output, shape index: {}]
  %s4 = sld [smem:[#allocation0]]
  $region57: #{net_forward.16} parent=0
    _
  %s6 = ssub.s32 1, %s4
  %s7 = scalar_select 0, %s6, %s4
  loop: start=0, step=1, limit=6
  $region2: #{net_forward.16} parent=0 // loop_pre_header
    _
  $region3: #{net_forward.16} parent=0 // loop_header
    %s9 = sphi 0, %s13
    %p10 = scmp.ge.s32.totalorder %s9, 6
    %s16 = sphi 0, %s28
    %s17 = sphi 0, %s24
    %s18 = sphi 0, %s16
    %s19 = sphi 0, %s17
    %s20 = sphi 0, %s18
    %s21 = sphi 0, %s19
    %s29 = sphi 0, %s29
    %s31 = sphi 0, %s29
    %s32 = sphi 0, %s31
    %s46 = sphi 0, %s32
    %s54 = sphi 0, %s56
    %s57 = sphi 0, %s54
    %s58 = sphi 0, %s57
    %s74 = sphi 0, %s58
    %s78 = sphi 0, %s78
    %s80 = sphi 0, %s78
    %s81 = sphi 0, %s80
    %s95 = sphi 0, %s81
    %s101 = sphi 0, %s103
    %s104 = sphi 0, %s101
    %s105 = sphi 0, %s104
    %s121 = sphi 0, %s105
  $region4: #{net_forward.16} parent=0 // loop_header_branch
    %12 = sbr.rel (%p10) target = $region8
  $region5: #{net_forward.16} parent=0 // loop_body
    %s14 = ssub.s32 %s9, 1
    %s15 = ssub.s32 %s9, 2
    %s22 = sadd.s32 1, %s17
    %p23 = scmp.ge.s32.totalorder %s22, 4
    %s24 = scalar_select %p23, 0, %s22
    %s25 = sadd.s32 1, %s16
    %s26 = scalar_select %p23, %s25, %s16
    %p27 = scmp.ge.s32.totalorder %s26, 1
    %s28 = scalar_select %p27, 0, %s26
    %s30 = sadd.s32 %s29, 1
    %p33 = scmp.eq.s32.totalorder %s9, 3
    %p34 = scmp.ne.s32.totalorder %s29, %s31
    %p35 = scmp.eq.s32.totalorder %s9, 0
    %p36 = por %p34, %p35
    %p37 = scmp.ne.s32.totalorder %s29, %s31
    %p38 = scmp.eq.s32.totalorder %s14, 3
    %p39 = por %p37, %p38
    %p40 = scmp.ne.s32.totalorder %s31, %s32
    %p41 = scmp.eq.s32.totalorder %s14, 0
    %p42 = por %p40, %p41
    %p43 = scmp.ne.s32.totalorder %s31, %s32
    %p44 = scmp.eq.s32.totalorder %s15, 3
    %p45 = por %p43, %p44
    %p47 = scmp.ne.s32.totalorder %s32, %s46
    %p48 = scmp.eq.s32.totalorder %s15, 0
    %p49 = por %p47, %p48
    %s50 = ssub.s32 %s17, %s24
    %s51 = ssub.s32 %s16, %s28
    %s52 = sor.u32 %s50, %s51
    %p53 = scmp.eq.s32.totalorder %s52, 0
    %s55 = sadd.s32 %s54, 1
    %s56 = scalar_select %p53, %s54, %s55
    %p59 = pneg %p53
    %p60 = scmp.eq.s32.totalorder %s9, 3
    %p61 = por %p59, %p60
    %p62 = scmp.ne.s32.totalorder %s54, %s57
    %p63 = scmp.eq.s32.totalorder %s9, 0
    %p64 = por %p62, %p63
    %p65 = scmp.ne.s32.totalorder %s54, %s57
    %p66 = scmp.eq.s32.totalorder %s14, 3
    %p67 = por %p65, %p66
    %p68 = scmp.ne.s32.totalorder %s57, %s58
    %p69 = scmp.eq.s32.totalorder %s14, 0
    %p70 = por %p68, %p69
    %p71 = scmp.ne.s32.totalorder %s57, %s58
    %p72 = scmp.eq.s32.totalorder %s15, 3
    %p73 = por %p71, %p72
    %p75 = scmp.ne.s32.totalorder %s58, %s74
    %p76 = scmp.eq.s32.totalorder %s15, 0
    %p77 = por %p75, %p76
    %s79 = sadd.s32 %s78, 1
    %p82 = scmp.eq.s32.totalorder %s9, 3
    %p83 = scmp.ne.s32.totalorder %s78, %s80
    %p84 = scmp.eq.s32.totalorder %s9, 0
    %p85 = por %p83, %p84
    %p86 = scmp.ne.s32.totalorder %s78, %s80
    %p87 = scmp.eq.s32.totalorder %s14, 3
    %p88 = por %p86, %p87
    %p89 = scmp.ne.s32.totalorder %s80, %s81
    %p90 = scmp.eq.s32.totalorder %s14, 0
    %p91 = por %p89, %p90
    %p92 = scmp.ne.s32.totalorder %s80, %s81
    %p93 = scmp.eq.s32.totalorder %s15, 3
    %p94 = por %p92, %p93
    %p96 = scmp.ne.s32.totalorder %s81, %s95
    %p97 = scmp.eq.s32.totalorder %s15, 0
    %p98 = por %p96, %p97
    %s99 = ssub.s32 %s16, %s28
    %p100 = scmp.eq.s32.totalorder %s99, 0
    %s102 = sadd.s32 %s101, 1
    %s103 = scalar_select %p100, %s101, %s102
    %p106 = pneg %p100
    %p107 = scmp.eq.s32.totalorder %s9, 3
    %p108 = por %p106, %p107
    %p109 = scmp.ne.s32.totalorder %s101, %s104
    %p110 = scmp.eq.s32.totalorder %s9, 0
    %p111 = por %p109, %p110
    %p112 = scmp.ne.s32.totalorder %s101, %s104
    %p113 = scmp.eq.s32.totalorder %s14, 3
    %p114 = por %p112, %p113
    %p115 = scmp.ne.s32.totalorder %s104, %s105
    %p116 = scmp.eq.s32.totalorder %s14, 0
    %p117 = por %p115, %p116
    %p118 = scmp.ne.s32.totalorder %s104, %s105
    %p119 = scmp.eq.s32.totalorder %s15, 3
    %p120 = por %p118, %p119
    %p122 = scmp.ne.s32.totalorder %s105, %s121
    %p123 = scmp.eq.s32.totalorder %s15, 0
    %p124 = por %p122, %p123
    %p125 = scmp.le.s32.totalorder 1, %s9
    %p126 = scmp.lt.s32.totalorder %s9, 5
    %p127 = pnand %p125, %p126
    %p128 = pneg %p127
    // Predicated region
    $region9: #{net_forward.16} parent=5 // pred_check
      _
    $region10: #{net_forward.16} parent=5 // pred_check_branch
      %130 = sbr.rel (%p127) target = $region12
    $region11: #{net_forward.16} parent=5 // pred_region
      %s131 = ssub.s32 %s9, 1
      // Predicated region
      $region13: #{net_forward.16} parent=11 // pred_check
        %p132 = pneg %p42
      $region14: #{net_forward.16} parent=11 // pred_check_branch
        %134 = sbr.rel (%p132) target = $region16
      $region15: #{net_forward.16} parent=11 // pred_region
        _
      $region16: #{net_forward.16} parent=11 // pred_fallthru
        _
      // Predicated region
      $region17: #{net_forward.16} parent=11 // pred_check
        %p135 = pneg %p91
      $region18: #{net_forward.16} parent=11 // pred_check_branch
        %137 = sbr.rel (%p135) target = $region20
      $region19: #{net_forward.16} parent=11 // pred_region
        _
      $region20: #{net_forward.16} parent=11 // pred_fallthru
        _
    $region12: #{net_forward.16} parent=5 // pred_fallthru
      _
    %p138 = scmp.lt.s32.totalorder %s9, 4
    // Predicated region
    $region21: #{net_forward.16} parent=5 // pred_check
      %p139 = pneg %p138
    $region22: #{net_forward.16} parent=5 // pred_check_branch
      %141 = sbr.rel (%p139) target = $region24
    $region23: #{net_forward.16} parent=5 // pred_region
      // Predicated region
      $region25: #{net_forward.16} parent=23 // pred_check
        %p142 = pneg %p64
      $region26: #{net_forward.16} parent=23 // pred_check_branch
        %144 = sbr.rel (%p142) target = $region28
      $region27: #{net_forward.16} parent=23 // pred_region
        %p145 = scmp.lt.s32.totalorder %s17, 3
        %s146 = scalar_select %p145, %s17, 3
        %p147 = scmp.lt.s32.totalorder %s16, 0
        %s148 = scalar_select %p147, %s16, 0
        %s149 = smul.addr %s146, 275
        %s150 = sadd.s32 %s148, %s149
        %s151 = smul.addr %s150, 4
        %s152 = scalar_lea.vmem %s1, %s151
      $region28: #{net_forward.16} parent=23 // pred_fallthru
        _
    $region24: #{net_forward.16} parent=5 // pred_fallthru
      _
    %p153 = scmp.le.s32.totalorder 1, %s9
    %p154 = scmp.lt.s32.totalorder %s9, 5
    %p155 = pnand %p153, %p154
    %p156 = pneg %p155
    // Predicated region
    $region29: #{net_forward.16} parent=5 // pred_check
      _
    $region30: #{net_forward.16} parent=5 // pred_check_branch
      %158 = sbr.rel (%p155) target = $region32
    $region31: #{net_forward.16} parent=5 // pred_region
      %s159 = ssub.s32 %s9, 1
      %p160 = pneg %p42
      %p161 = pneg %p39
      %p162 = scmp.lt.s32.totalorder %s19, 3
      %s163 = scalar_select %p162, %s19, 3
      %p164 = scmp.lt.s32.totalorder %s18, 0
      %s165 = scalar_select %p164, %s18, 0
      %s166 = smul.addr %s163, 275
      %s167 = sadd.s32 %s165, %s166
      %s168 = smul.addr %s167, 4
      %s169 = scalar_lea.vmem %s1, %s168
      %p170 = pneg %p70
      %p171 = pneg %p67
      %p172 = pneg %p91
      %p173 = pneg %p88
      %p174 = pneg %p117
      %p175 = pneg %p114
      %p176 = scmp.lt.s32.totalorder %s18, 0
      %s177 = scalar_select %p176, %s18, 0
      %s178 = smul.addr %s177, 4
      %s179 = scalar_lea.vmem %s3, %s178
      %p180 = scmp.lt.s32.totalorder %s19, 3
      %s181 = scalar_select %p180, %s19, 3
      %p182 = scmp.lt.s32.totalorder %s18, 0
      %s183 = scalar_select %p182, %s18, 0
      %s184 = smul.addr %s181, 275
      %s185 = sadd.s32 %s183, %s184
      %s186 = smul.addr %s185, 4
      %s187 = scalar_lea.vmem %s1, %s186
      %p188 = scmp.lt.s32.totalorder %s18, 0
      %s189 = scalar_select %p188, %s18, 0
      %s190 = smul.addr %s189, 4
      %s191 = scalar_lea.vmem %s3, %s190
      %v193 = vld [vmem:[%s0] sm:$0xff]
      %v194 = vld [vmem:[%s0 + $0x8] sm:$0xff]
      %v195 = vld [vmem:[%s0 + $0x10] sm:$0xff]
      %v196 = vld [vmem:[%s0 + $0x18] sm:$0xff]
      %v197 = vld [vmem:[%s0 + $0x20] sm:$0xff]
      %v198 = vld [vmem:[%s0 + $0x28] sm:$0xff]
      %v199 = vld [vmem:[%s0 + $0x30] sm:$0xff]
      %v200 = vld [vmem:[%s0 + $0x38] sm:$0xff]
      %v201 = vld [vmem:[%s0 + $0x40] sm:$0xff]
      %v202 = vld [vmem:[%s0 + $0x48] sm:$0xff]
      %v203 = vld [vmem:[%s0 + $0x50] sm:$0xff]
      %v204 = vld [vmem:[%s0 + $0x58] sm:$0xff]
      %v205 = vld [vmem:[%s0 + $0x60] sm:$0xff]
      %v206 = vld [vmem:[%s0 + $0x68] sm:$0xff]
      %v207 = vld [vmem:[%s0 + $0x70] sm:$0xff]
      %v208 = vld [vmem:[%s0 + $0x78] sm:$0xff]
      %v209 = vld [vmem:[%s0 + $0x80] sm:$0xff]
      %v210 = vld [vmem:[%s0 + $0x88] sm:$0xff]
      %v211 = vld [vmem:[%s0 + $0x90] sm:$0x33]
      %v212 = vld [vmem:[%s0 + $0x98] sm:$0x33]
      %v213 = vld [vmem:[%s0 + $0xa0] sm:$0x33]
      %v214 = vld [vmem:[%s0 + $0xa8] sm:$0x33]
      %v215 = vld [vmem:[%s0 + $0xb0] sm:$0x33]
      %v216 = vld [vmem:[%s0 + $0xb8] sm:$0x33]
      %v217 = vld [vmem:[%s0 + $0xc0] sm:$0x33]
      %v218 = vld [vmem:[%s0 + $0xc8] sm:$0x33]
      %v219 = vld [vmem:[%s0 + $0xd0] sm:$0x33]
      %v220 = vld [vmem:[%s187] sm:$0xf]
      %v221 = vld [vmem:[%s187 + $0x4] sm:$0xf]
      %v222 = vld [vmem:[%s187 + $0x8] sm:$0xf]
      %v223 = vld [vmem:[%s187 + $0xc] sm:$0xf]
      %v224 = vld [vmem:[%s187 + $0x10] sm:$0xf]
      %v225 = vld [vmem:[%s187 + $0x14] sm:$0xf]
      %v226 = vld [vmem:[%s187 + $0x18] sm:$0xf]
      %v227 = vld [vmem:[%s187 + $0x1c] sm:$0xf]
      %v228 = vld [vmem:[%s187 + $0x20] sm:$0xf]
      %v229 = vld [vmem:[%s187 + $0x24] sm:$0xf]
      %v230 = vld [vmem:[%s187 + $0x28] sm:$0xf]
      %v231 = vld [vmem:[%s187 + $0x2c] sm:$0xf]
      %v232 = vld [vmem:[%s187 + $0x30] sm:$0xf]
      %v233 = vld [vmem:[%s187 + $0x34] sm:$0xf]
      %v234 = vld [vmem:[%s187 + $0x38] sm:$0xf]
      %v235 = vld [vmem:[%s187 + $0x3c] sm:$0xf]
      %v236 = vld [vmem:[%s187 + $0x40] sm:$0xf]
      %v237 = vld [vmem:[%s187 + $0x44] sm:$0xf]
      %v238 = vld [vmem:[%s187 + $0x48] sm:$0xf]
      %v239 = vld [vmem:[%s187 + $0x4c] sm:$0xf]
      %v240 = vld [vmem:[%s187 + $0x50] sm:$0xf]
      %v241 = vld [vmem:[%s187 + $0x54] sm:$0xf]
      %v242 = vld [vmem:[%s187 + $0x58] sm:$0xf]
      %v243 = vld [vmem:[%s187 + $0x5c] sm:$0xf]
      %v244 = vld [vmem:[%s187 + $0x60] sm:$0xf]
      %v245 = vld [vmem:[%s187 + $0x64] sm:$0xf]
      %v246 = vld [vmem:[%s187 + $0x68] sm:$0xf]
      %v247 = vld [vmem:[%s187 + $0x6c] sm:$0xf]
      %v248 = vld [vmem:[%s187 + $0x70] sm:$0xf]
      %v249 = vld [vmem:[%s187 + $0x74] sm:$0xf]
      %v250 = vld [vmem:[%s187 + $0x78] sm:$0xf]
      %v251 = vld [vmem:[%s187 + $0x7c] sm:$0xf]
      %v252 = vld [vmem:[%s187 + $0x80] sm:$0xf]
      %v253 = vld [vmem:[%s187 + $0x84] sm:$0xf]
      %v254 = vld [vmem:[%s187 + $0x88] sm:$0xf]
      %v255 = vld [vmem:[%s187 + $0x8c] sm:$0xf]
      %v256 = vld [vmem:[%s187 + $0x90] sm:$0xf]
      %v257 = vld [vmem:[%s187 + $0x94] sm:$0xf]
      %v258 = vld [vmem:[%s187 + $0x98] sm:$0xf]
      %v259 = vld [vmem:[%s187 + $0x9c] sm:$0xf]
      %v260 = vld [vmem:[%s187 + $0xa0] sm:$0xf]
      %v261 = vld [vmem:[%s187 + $0xa4] sm:$0xf]
      %v262 = vld [vmem:[%s187 + $0xa8] sm:$0xf]
      %v263 = vld [vmem:[%s187 + $0xac] sm:$0xf]
      %v264 = vld [vmem:[%s187 + $0xb0] sm:$0xf]
      %v265 = vld [vmem:[%s187 + $0xb4] sm:$0xf]
      %v266 = vld [vmem:[%s187 + $0xb8] sm:$0xf]
      %v267 = vld [vmem:[%s187 + $0xbc] sm:$0xf]
      %v268 = vld [vmem:[%s187 + $0xc0] sm:$0xf]
      %v269 = vld [vmem:[%s187 + $0xc4] sm:$0xf]
      %v270 = vld [vmem:[%s187 + $0xc8] sm:$0xf]
      %v271 = vld [vmem:[%s187 + $0xcc] sm:$0xf]
      %v272 = vld [vmem:[%s187 + $0xd0] sm:$0xf]
      %v273 = vld [vmem:[%s187 + $0xd4] sm:$0xf]
      %v274 = vld [vmem:[%s187 + $0xd8] sm:$0xf]
      %v275 = vld [vmem:[%s187 + $0xdc] sm:$0xf]
      %v276 = vld [vmem:[%s187 + $0xe0] sm:$0xf]
      %v277 = vld [vmem:[%s187 + $0xe4] sm:$0xf]
      %v278 = vld [vmem:[%s187 + $0xe8] sm:$0xf]
      %v279 = vld [vmem:[%s187 + $0xec] sm:$0xf]
      %v280 = vld [vmem:[%s187 + $0xf0] sm:$0xf]
      %v281 = vld [vmem:[%s187 + $0xf4] sm:$0xf]
      %v282 = vld [vmem:[%s187 + $0xf8] sm:$0xf]
      %v283 = vld [vmem:[%s187 + $0xfc] sm:$0xf]
      %v284 = vld [vmem:[%s187 + $0x100] sm:$0xf]
      %v285 = vld [vmem:[%s187 + $0x104] sm:$0xf]
      %v286 = vld [vmem:[%s187 + $0x108] sm:$0xf]
      %v287 = vld [vmem:[%s187 + $0x10c] sm:$0xf]
      %v288 = vld [vmem:[%s187 + $0x110] sm:$0xf]
      %v289 = vld [vmem:[%s187 + $0x114] sm:$0xf]
      %v290 = vld [vmem:[%s187 + $0x118] sm:$0xf]
      %v291 = vld [vmem:[%s187 + $0x11c] sm:$0xf]
      %v292 = vld [vmem:[%s187 + $0x120] sm:$0xf]
      %v293 = vld [vmem:[%s187 + $0x124] sm:$0xf]
      %v294 = vld [vmem:[%s187 + $0x128] sm:$0xf]
      %v295 = vld [vmem:[%s187 + $0x12c] sm:$0xf]
      %v296 = vld [vmem:[%s187 + $0x130] sm:$0xf]
      %v297 = vld [vmem:[%s187 + $0x134] sm:$0xf]
      %v298 = vld [vmem:[%s187 + $0x138] sm:$0xf]
      %v299 = vld [vmem:[%s187 + $0x13c] sm:$0xf]
      %v300 = vld [vmem:[%s187 + $0x140] sm:$0xf]
      %v301 = vld [vmem:[%s187 + $0x144] sm:$0xf]
      %v302 = vld [vmem:[%s187 + $0x148] sm:$0xf]
      %v303 = vld [vmem:[%s187 + $0x14c] sm:$0xf]
      %v304 = vld [vmem:[%s187 + $0x150] sm:$0xf]
      %v305 = vld [vmem:[%s187 + $0x154] sm:$0xf]
      %v306 = vld [vmem:[%s187 + $0x158] sm:$0xf]
      %v307 = vld [vmem:[%s187 + $0x15c] sm:$0xf]
      %v308 = vld [vmem:[%s187 + $0x160] sm:$0xf]
      %v309 = vld [vmem:[%s187 + $0x164] sm:$0xf]
      %v310 = vld [vmem:[%s187 + $0x168] sm:$0xf]
      %v311 = vld [vmem:[%s187 + $0x16c] sm:$0xf]
      %v312 = vld [vmem:[%s187 + $0x170] sm:$0xf]
      %v313 = vld [vmem:[%s187 + $0x174] sm:$0xf]
      %v314 = vld [vmem:[%s187 + $0x178] sm:$0xf]
      %v315 = vld [vmem:[%s187 + $0x17c] sm:$0xf]
      %v316 = vld [vmem:[%s187 + $0x180] sm:$0xf]
      %v317 = vld [vmem:[%s187 + $0x184] sm:$0xf]
      %v318 = vld [vmem:[%s187 + $0x188] sm:$0xf]
      %v319 = vld [vmem:[%s187 + $0x18c] sm:$0xf]
      %v320 = vld [vmem:[%s187 + $0x190] sm:$0xf]
      %v321 = vld [vmem:[%s187 + $0x194] sm:$0xf]
      %v322 = vld [vmem:[%s187 + $0x198] sm:$0xf]
      %v323 = vld [vmem:[%s187 + $0x19c] sm:$0xf]
      %v324 = vld [vmem:[%s187 + $0x1a0] sm:$0xf]
      %v325 = vld [vmem:[%s187 + $0x1a4] sm:$0xf]
      %v326 = vld [vmem:[%s187 + $0x1a8] sm:$0xf]
      %v327 = vld [vmem:[%s187 + $0x1ac] sm:$0xf]
      %v328 = vld [vmem:[%s187 + $0x1b0] sm:$0xf]
      %v329 = vld [vmem:[%s187 + $0x1b4] sm:$0xf]
      %v330 = vld [vmem:[%s187 + $0x1b8] sm:$0xf]
      %v331 = vld [vmem:[%s187 + $0x1bc] sm:$0xf]
      %v332 = vld [vmem:[%s187 + $0x1c0] sm:$0xf]
      %v333 = vld [vmem:[%s187 + $0x1c4] sm:$0xf]
      %v334 = vld [vmem:[%s187 + $0x1c8] sm:$0xf]
      %v335 = vld [vmem:[%s187 + $0x1cc] sm:$0xf]
      %v336 = vld [vmem:[%s187 + $0x1d0] sm:$0xf]
      %v337 = vld [vmem:[%s187 + $0x1d4] sm:$0xf]
      %v338 = vld [vmem:[%s187 + $0x1d8] sm:$0xf]
      %v339 = vld [vmem:[%s187 + $0x1dc] sm:$0xf]
      %v340 = vld [vmem:[%s187 + $0x1e0] sm:$0xf]
      %v341 = vld [vmem:[%s187 + $0x1e4] sm:$0xf]
      %v342 = vld [vmem:[%s187 + $0x1e8] sm:$0xf]
      %v343 = vld [vmem:[%s187 + $0x1ec] sm:$0xf]
      %v344 = vld [vmem:[%s187 + $0x1f0] sm:$0xf]
      %v345 = vld [vmem:[%s187 + $0x1f4] sm:$0xf]
      %v346 = vld [vmem:[%s187 + $0x1f8] sm:$0xf]
      %v347 = vld [vmem:[%s187 + $0x1fc] sm:$0xf]
      %v348 = vld [vmem:[%s187 + $0x200] sm:$0xf]
      %v349 = vld [vmem:[%s187 + $0x204] sm:$0xf]
      %v350 = vld [vmem:[%s187 + $0x208] sm:$0xf]
      %v351 = vld [vmem:[%s187 + $0x20c] sm:$0xf]
      %v352 = vld [vmem:[%s187 + $0x210] sm:$0xf]
      %v353 = vld [vmem:[%s187 + $0x214] sm:$0xf]
      %v354 = vld [vmem:[%s187 + $0x218] sm:$0xf]
      %v355 = vld [vmem:[%s187 + $0x21c] sm:$0xf]
      %v356 = vld [vmem:[%s187 + $0x220] sm:$0xf]
      %v357 = vld [vmem:[%s187 + $0x224] sm:$0xf]
      %v358 = vld [vmem:[%s187 + $0x228] sm:$0xf]
      %v359 = vld [vmem:[%s187 + $0x22c] sm:$0xf]
      %v360 = vld [vmem:[%s187 + $0x230] sm:$0xf]
      %v361 = vld [vmem:[%s187 + $0x234] sm:$0xf]
      %v362 = vld [vmem:[%s187 + $0x238] sm:$0xf]
      %v363 = vld [vmem:[%s187 + $0x23c] sm:$0xf]
      %v364 = vld [vmem:[%s187 + $0x240] sm:$0xf]
      %v365 = vld [vmem:[%s187 + $0x244] sm:$0xf]
      %v366 = vld [vmem:[%s187 + $0x248] sm:$0xf]
      %v367 = vld [vmem:[%s187 + $0x24c] sm:$0xf]
      %v368 = vld [vmem:[%s187 + $0x250] sm:$0xf]
      %v369 = vld [vmem:[%s187 + $0x254] sm:$0xf]
      %v370 = vld [vmem:[%s187 + $0x258] sm:$0xf]
      %v371 = vld [vmem:[%s187 + $0x25c] sm:$0xf]
      %v372 = vld [vmem:[%s187 + $0x260] sm:$0xf]
      %v373 = vld [vmem:[%s187 + $0x264] sm:$0xf]
      %v374 = vld [vmem:[%s187 + $0x268] sm:$0xf]
      %v375 = vld [vmem:[%s187 + $0x26c] sm:$0xf]
      %v376 = vld [vmem:[%s187 + $0x270] sm:$0xf]
      %v377 = vld [vmem:[%s187 + $0x274] sm:$0xf]
      %v378 = vld [vmem:[%s187 + $0x278] sm:$0xf]
      %v379 = vld [vmem:[%s187 + $0x27c] sm:$0xf]
      %v380 = vld [vmem:[%s187 + $0x280] sm:$0xf]
      %v381 = vld [vmem:[%s187 + $0x284] sm:$0xf]
      %v382 = vld [vmem:[%s187 + $0x288] sm:$0xf]
      %v383 = vld [vmem:[%s187 + $0x28c] sm:$0xf]
      %v384 = vld [vmem:[%s187 + $0x290] sm:$0xf]
      %v385 = vld [vmem:[%s187 + $0x294] sm:$0xf]
      %v386 = vld [vmem:[%s187 + $0x298] sm:$0xf]
      %v387 = vld [vmem:[%s187 + $0x29c] sm:$0xf]
      %v388 = vld [vmem:[%s187 + $0x2a0] sm:$0xf]
      %v389 = vld [vmem:[%s187 + $0x2a4] sm:$0xf]
      %v390 = vld [vmem:[%s187 + $0x2a8] sm:$0xf]
      %v391 = vld [vmem:[%s187 + $0x2ac] sm:$0xf]
      %v392 = vld [vmem:[%s187 + $0x2b0] sm:$0xf]
      %v393 = vld [vmem:[%s187 + $0x2b4] sm:$0xf]
      %v394 = vld [vmem:[%s187 + $0x2b8] sm:$0xf]
      %v395 = vld [vmem:[%s187 + $0x2bc] sm:$0xf]
      %v396 = vld [vmem:[%s187 + $0x2c0] sm:$0xf]
      %v397 = vld [vmem:[%s187 + $0x2c4] sm:$0xf]
      %v398 = vld [vmem:[%s187 + $0x2c8] sm:$0xf]
      %v399 = vld [vmem:[%s187 + $0x2cc] sm:$0xf]
      %v400 = vld [vmem:[%s187 + $0x2d0] sm:$0xf]
      %v401 = vld [vmem:[%s187 + $0x2d4] sm:$0xf]
      %v402 = vld [vmem:[%s187 + $0x2d8] sm:$0xf]
      %v403 = vld [vmem:[%s187 + $0x2dc] sm:$0xf]
      %v404 = vld [vmem:[%s187 + $0x2e0] sm:$0xf]
      %v405 = vld [vmem:[%s187 + $0x2e4] sm:$0xf]
      %v406 = vld [vmem:[%s187 + $0x2e8] sm:$0xf]
      %v407 = vld [vmem:[%s187 + $0x2ec] sm:$0xf]
      %v408 = vld [vmem:[%s187 + $0x2f0] sm:$0xf]
      %v409 = vld [vmem:[%s187 + $0x2f4] sm:$0xf]
      %v410 = vld [vmem:[%s187 + $0x2f8] sm:$0xf]
      %v411 = vld [vmem:[%s187 + $0x2fc] sm:$0xf]
      %v412 = vld [vmem:[%s187 + $0x300] sm:$0xf]
      %v413 = vld [vmem:[%s187 + $0x304] sm:$0xf]
      %v414 = vld [vmem:[%s187 + $0x308] sm:$0xf]
      %v415 = vld [vmem:[%s187 + $0x30c] sm:$0xf]
      %v416 = vld [vmem:[%s187 + $0x310] sm:$0xf]
      %v417 = vld [vmem:[%s187 + $0x314] sm:$0xf]
      %v418 = vld [vmem:[%s187 + $0x318] sm:$0xf]
      %v419 = vld [vmem:[%s187 + $0x31c] sm:$0xf]
      %v420 = vld [vmem:[%s187 + $0x320] sm:$0xf]
      %v421 = vld [vmem:[%s187 + $0x324] sm:$0xf]
      %v422 = vld [vmem:[%s187 + $0x328] sm:$0xf]
      %v423 = vld [vmem:[%s187 + $0x32c] sm:$0xf]
      %v424 = vld [vmem:[%s187 + $0x330] sm:$0xf]
      %v425 = vld [vmem:[%s187 + $0x334] sm:$0xf]
      %v426 = vld [vmem:[%s187 + $0x338] sm:$0xf]
      %v427 = vld [vmem:[%s187 + $0x33c] sm:$0xf]
      %v428 = vld [vmem:[%s187 + $0x340] sm:$0xf]
      %v429 = vld [vmem:[%s187 + $0x344] sm:$0xf]
      %v430 = vld [vmem:[%s187 + $0x348] sm:$0xf]
      %v431 = vld [vmem:[%s187 + $0x34c] sm:$0xf]
      %v432 = vld [vmem:[%s187 + $0x350] sm:$0xf]
      %v433 = vld [vmem:[%s187 + $0x354] sm:$0xf]
      %v434 = vld [vmem:[%s187 + $0x358] sm:$0xf]
      %v435 = vld [vmem:[%s187 + $0x35c] sm:$0xf]
      %v436 = vld [vmem:[%s187 + $0x360] sm:$0xf]
      %v437 = vld [vmem:[%s187 + $0x364] sm:$0xf]
      %v438 = vld [vmem:[%s187 + $0x368] sm:$0xf]
      %v439 = vld [vmem:[%s187 + $0x36c] sm:$0xf]
      %v440 = vld [vmem:[%s187 + $0x370] sm:$0xf]
      %v441 = vld [vmem:[%s187 + $0x374] sm:$0xf]
      %v442 = vld [vmem:[%s187 + $0x378] sm:$0xf]
      %v443 = vld [vmem:[%s187 + $0x37c] sm:$0xf]
      %v444 = vld [vmem:[%s187 + $0x380] sm:$0xf]
      %v445 = vld [vmem:[%s187 + $0x384] sm:$0xf]
      %v446 = vld [vmem:[%s187 + $0x388] sm:$0xf]
      %v447 = vld [vmem:[%s187 + $0x38c] sm:$0xf]
      %v448 = vld [vmem:[%s187 + $0x390] sm:$0xf]
      %v449 = vld [vmem:[%s187 + $0x394] sm:$0xf]
      %v450 = vld [vmem:[%s187 + $0x398] sm:$0xf]
      %v451 = vld [vmem:[%s187 + $0x39c] sm:$0xf]
      %v452 = vld [vmem:[%s187 + $0x3a0] sm:$0xf]
      %v453 = vld [vmem:[%s187 + $0x3a4] sm:$0xf]
      %v454 = vld [vmem:[%s187 + $0x3a8] sm:$0xf]
      %v455 = vld [vmem:[%s187 + $0x3ac] sm:$0xf]
      %v456 = vld [vmem:[%s187 + $0x3b0] sm:$0xf]
      %v457 = vld [vmem:[%s187 + $0x3b4] sm:$0xf]
      %v458 = vld [vmem:[%s187 + $0x3b8] sm:$0xf]
      %v459 = vld [vmem:[%s187 + $0x3bc] sm:$0xf]
      %v460 = vld [vmem:[%s187 + $0x3c0] sm:$0xf]
      %v461 = vld [vmem:[%s187 + $0x3c4] sm:$0xf]
      %v462 = vld [vmem:[%s187 + $0x3c8] sm:$0xf]
      %v463 = vld [vmem:[%s187 + $0x3cc] sm:$0xf]
      %v464 = vld [vmem:[%s187 + $0x3d0] sm:$0xf]
      %v465 = vld [vmem:[%s187 + $0x3d4] sm:$0xf]
      %v466 = vld [vmem:[%s187 + $0x3d8] sm:$0xf]
      %v467 = vld [vmem:[%s187 + $0x3dc] sm:$0xf]
      %v468 = vld [vmem:[%s187 + $0x3e0] sm:$0xf]
      %v469 = vld [vmem:[%s187 + $0x3e4] sm:$0xf]
      %v470 = vld [vmem:[%s187 + $0x3e8] sm:$0xf]
      %v471 = vld [vmem:[%s187 + $0x3ec] sm:$0xf]
      %v472 = vld [vmem:[%s187 + $0x3f0] sm:$0xf]
      %v473 = vld [vmem:[%s187 + $0x3f4] sm:$0xf]
      %v474 = vld [vmem:[%s187 + $0x3f8] sm:$0xf]
      %v475 = vld [vmem:[%s187 + $0x3fc] sm:$0xf]
      %v476 = vld [vmem:[%s187 + $0x400] sm:$0xf]
      %v477 = vld [vmem:[%s187 + $0x404] sm:$0xf]
      %v478 = vld [vmem:[%s187 + $0x408] sm:$0xf]
      %v479 = vld [vmem:[%s187 + $0x40c] sm:$0xf]
      %v480 = vld [vmem:[%s187 + $0x410] sm:$0xf]
      %v481 = vld [vmem:[%s187 + $0x414] sm:$0xf]
      %v482 = vld [vmem:[%s187 + $0x418] sm:$0xf]
      %v483 = vld [vmem:[%s187 + $0x41c] sm:$0xf]
      %v484 = vld [vmem:[%s187 + $0x420] sm:$0xf]
      %v485 = vld [vmem:[%s187 + $0x424] sm:$0xf]
      %v486 = vld [vmem:[%s187 + $0x428] sm:$0xf]
      %v487 = vld [vmem:[%s187 + $0x42c] sm:$0xf]
      %v488 = vld [vmem:[%s187 + $0x430] sm:$0xf]
      %v489 = vld [vmem:[%s187 + $0x434] sm:$0xf]
      %v490 = vld [vmem:[%s187 + $0x438] sm:$0xf]
      %v491 = vld [vmem:[%s187 + $0x43c] sm:$0xf]
      %v492 = vld [vmem:[%s187 + $0x440] sm:$0xf]
      %v493 = vld [vmem:[%s187 + $0x444] sm:$0xf]
      %v494 = vld [vmem:[%s187 + $0x448] sm:$0xf]
      %v495 = vld [vmem:[%s2] sm:$0xff]
      %v496 = vld [vmem:[%s2 + $0x8] sm:$0xff]
      %v497 = vld [vmem:[%s2 + $0x10] sm:$0xf]
      %499 = vset.pattern.permute.xlu0 0
      %500 = vperm.xlu0 %499, %v495
      %v501 = vpop.permute.xlu0 %500
      %504 = vset.pattern.permute.xlu0 0
      %505 = vperm.xlu0 %504, %v496
      %v506 = vpop.permute.xlu0 %505
      %509 = vset.pattern.permute.xlu0 0
      %510 = vperm.xlu0 %509, %v497
      %v511 = vpop.permute.xlu0 %510
      %v540 = vunpack.c.l.b16 %v193
      %v541 = vunpack.c.h.b16 %v193
      %v542 = vunpack.c.l.b16 %v194
      %v543 = vunpack.c.h.b16 %v194
      %v544 = vunpack.c.l.b16 %v195
      %v545 = vunpack.c.h.b16 %v195
      %v546 = vunpack.c.l.b16 %v196
      %v547 = vunpack.c.h.b16 %v196
      %v548 = vunpack.c.l.b16 %v197
      %v549 = vunpack.c.h.b16 %v197
      %v550 = vunpack.c.l.b16 %v198
      %v551 = vunpack.c.h.b16 %v198
      %v552 = vunpack.c.l.b16 %v199
      %v553 = vunpack.c.h.b16 %v199
      %v554 = vunpack.c.l.b16 %v200
      %v555 = vunpack.c.h.b16 %v200
      %v556 = vunpack.c.l.b16 %v201
      %v557 = vunpack.c.h.b16 %v201
      %v558 = vunpack.c.l.b16 %v202
      %v559 = vunpack.c.h.b16 %v202
      %v560 = vunpack.c.l.b16 %v203
      %v561 = vunpack.c.h.b16 %v203
      %v562 = vunpack.c.l.b16 %v204
      %v563 = vunpack.c.h.b16 %v204
      %v564 = vunpack.c.l.b16 %v205
      %v565 = vunpack.c.h.b16 %v205
      %v566 = vunpack.c.l.b16 %v206
      %v567 = vunpack.c.h.b16 %v206
      %v568 = vunpack.c.l.b16 %v207
      %v569 = vunpack.c.h.b16 %v207
      %v570 = vunpack.c.l.b16 %v208
      %v571 = vunpack.c.h.b16 %v208
      %v572 = vunpack.c.l.b16 %v209
      %v573 = vunpack.c.h.b16 %v209
      %v574 = vunpack.c.l.b16 %v210
      %v575 = vunpack.c.h.b16 %v210
      %v576 = vunpack.c.l.b16 %v211
      %v577 = vunpack.c.h.b16 %v211
      %v578 = vunpack.c.l.b16 %v212
      %v579 = vunpack.c.h.b16 %v212
      %v580 = vunpack.c.l.b16 %v213
      %v581 = vunpack.c.h.b16 %v213
      %v582 = vunpack.c.l.b16 %v214
      %v583 = vunpack.c.h.b16 %v214
      %v584 = vunpack.c.l.b16 %v215
      %v585 = vunpack.c.h.b16 %v215
      %v586 = vunpack.c.l.b16 %v216
      %v587 = vunpack.c.h.b16 %v216
      %v588 = vunpack.c.l.b16 %v217
      %v589 = vunpack.c.h.b16 %v217
      %v590 = vunpack.c.l.b16 %v218
      %v591 = vunpack.c.h.b16 %v218
      %v592 = vunpack.c.l.b16 %v219
      %v593 = vunpack.c.h.b16 %v219
      %v594 = vpack.c.b16 %v558, %v540
      %v595 = vpack.c.b16 %v559, %v541
      %v596 = vpack.c.b16 %v560, %v542
      %v597 = vpack.c.b16 %v561, %v543
      %v598 = vpack.c.b16 %v562, %v544
      %v599 = vpack.c.b16 %v563, %v545
      %v600 = vpack.c.b16 %v564, %v546
      %v601 = vpack.c.b16 %v565, %v547
      %v602 = vpack.c.b16 %v566, %v548
      %v603 = vpack.c.b16 %v567, %v549
      %v604 = vpack.c.b16 %v568, %v550
      %v605 = vpack.c.b16 %v569, %v551
      %v606 = vpack.c.b16 %v570, %v552
      %v607 = vpack.c.b16 %v571, %v553
      %v608 = vpack.c.b16 %v572, %v554
      %v609 = vpack.c.b16 %v573, %v555
      %v610 = vpack.c.b16 %v574, %v556
      %v611 = vpack.c.b16 %v575, %v557
      %v612 = vpack.c.b16 %v576, %v576
      %v613 = vpack.c.b16 %v577, %v577
      %v614 = vpack.c.b16 %v578, %v578
      %v615 = vpack.c.b16 %v579, %v579
      %v616 = vpack.c.b16 %v580, %v580
      %v617 = vpack.c.b16 %v581, %v581
      %v618 = vpack.c.b16 %v582, %v582
      %v619 = vpack.c.b16 %v583, %v583
      %v620 = vpack.c.b16 %v584, %v584
      %v621 = vpack.c.b16 %v585, %v585
      %v622 = vpack.c.b16 %v586, %v586
      %v623 = vpack.c.b16 %v587, %v587
      %v624 = vpack.c.b16 %v588, %v588
      %v625 = vpack.c.b16 %v589, %v589
      %v626 = vpack.c.b16 %v590, %v590
      %v627 = vpack.c.b16 %v591, %v591
      %v628 = vpack.c.b16 %v592, %v592
      %v629 = vpack.c.b16 %v593, %v593
      %v939 = vunpack.c.l.b16 %v220
      %v940 = vunpack.c.l.b16 %v221
      %v941 = vunpack.c.l.b16 %v222
      %v942 = vunpack.c.l.b16 %v223
      %v943 = vunpack.c.l.b16 %v224
      %v944 = vunpack.c.l.b16 %v225
      %v945 = vunpack.c.l.b16 %v226
      %v946 = vunpack.c.l.b16 %v227
      %v947 = vunpack.c.l.b16 %v228
      %v948 = vunpack.c.l.b16 %v229
      %v949 = vunpack.c.l.b16 %v230
      %v950 = vunpack.c.l.b16 %v231
      %v951 = vunpack.c.l.b16 %v232
      %v952 = vunpack.c.l.b16 %v233
      %v953 = vunpack.c.l.b16 %v234
      %v954 = vunpack.c.l.b16 %v235
      %v955 = vunpack.c.l.b16 %v236
      %v956 = vunpack.c.l.b16 %v237
      %v957 = vunpack.c.l.b16 %v238
      %v958 = vunpack.c.l.b16 %v239
      %v959 = vunpack.c.l.b16 %v240
      %v960 = vunpack.c.l.b16 %v241
      %v961 = vunpack.c.l.b16 %v242
      %v962 = vunpack.c.l.b16 %v243
      %v963 = vunpack.c.l.b16 %v244
      %v964 = vunpack.c.l.b16 %v245
      %v965 = vunpack.c.l.b16 %v246
      %v966 = vunpack.c.l.b16 %v247
      %v967 = vunpack.c.l.b16 %v248
      %v968 = vunpack.c.l.b16 %v249
      %v969 = vunpack.c.l.b16 %v250
      %v970 = vunpack.c.l.b16 %v251
      %v971 = vunpack.c.l.b16 %v252
      %v972 = vunpack.c.l.b16 %v253
      %v973 = vunpack.c.l.b16 %v254
      %v974 = vunpack.c.l.b16 %v255
      %v975 = vunpack.c.l.b16 %v256
      %v976 = vunpack.c.l.b16 %v257
      %v977 = vunpack.c.l.b16 %v258
      %v978 = vunpack.c.l.b16 %v259
      %v979 = vunpack.c.l.b16 %v260
      %v980 = vunpack.c.l.b16 %v261
      %v981 = vunpack.c.l.b16 %v262
      %v982 = vunpack.c.l.b16 %v263
      %v983 = vunpack.c.l.b16 %v264
      %v984 = vunpack.c.l.b16 %v265
      %v985 = vunpack.c.l.b16 %v266
      %v986 = vunpack.c.l.b16 %v267
      %v987 = vunpack.c.l.b16 %v268
      %v988 = vunpack.c.l.b16 %v269
      %v989 = vunpack.c.l.b16 %v270
      %v990 = vunpack.c.l.b16 %v271
      %v991 = vunpack.c.l.b16 %v272
      %v992 = vunpack.c.l.b16 %v273
      %v993 = vunpack.c.l.b16 %v274
      %v994 = vunpack.c.l.b16 %v275
      %v995 = vunpack.c.l.b16 %v276
      %v996 = vunpack.c.l.b16 %v277
      %v997 = vunpack.c.l.b16 %v278
      %v998 = vunpack.c.l.b16 %v279
      %v999 = vunpack.c.l.b16 %v280
      %v1000 = vunpack.c.l.b16 %v281
      %v1001 = vunpack.c.l.b16 %v282
      %v1002 = vunpack.c.l.b16 %v283
      %v1003 = vunpack.c.l.b16 %v284
      %v1004 = vunpack.c.l.b16 %v285
      %v1005 = vunpack.c.l.b16 %v286
      %v1006 = vunpack.c.l.b16 %v287
      %v1007 = vunpack.c.l.b16 %v288
      %v1008 = vunpack.c.l.b16 %v289
      %v1009 = vunpack.c.l.b16 %v290
      %v1010 = vunpack.c.l.b16 %v291
      %v1011 = vunpack.c.l.b16 %v292
      %v1012 = vunpack.c.l.b16 %v293
      %v1013 = vunpack.c.l.b16 %v294
      %v1014 = vunpack.c.l.b16 %v295
      %v1015 = vunpack.c.l.b16 %v296
      %v1016 = vunpack.c.l.b16 %v297
      %v1017 = vunpack.c.l.b16 %v298
      %v1018 = vunpack.c.l.b16 %v299
      %v1019 = vunpack.c.l.b16 %v300
      %v1020 = vunpack.c.l.b16 %v301
      %v1021 = vunpack.c.l.b16 %v302
      %v1022 = vunpack.c.l.b16 %v303
      %v1023 = vunpack.c.l.b16 %v304
      %v1024 = vunpack.c.l.b16 %v305
      %v1025 = vunpack.c.l.b16 %v306
      %v1026 = vunpack.c.l.b16 %v307
      %v1027 = vunpack.c.l.b16 %v308
      %v1028 = vunpack.c.l.b16 %v309
      %v1029 = vunpack.c.l.b16 %v310
      %v1030 = vunpack.c.l.b16 %v311
      %v1031 = vunpack.c.l.b16 %v312
      %v1032 = vunpack.c.l.b16 %v313
      %v1033 = vunpack.c.l.b16 %v314
      %v1034 = vunpack.c.l.b16 %v315
      %v1035 = vunpack.c.l.b16 %v316
      %v1036 = vunpack.c.l.b16 %v317
      %v1037 = vunpack.c.l.b16 %v318
      %v1038 = vunpack.c.l.b16 %v319
      %v1039 = vunpack.c.l.b16 %v320
      %v1040 = vunpack.c.l.b16 %v321
      %v1041 = vunpack.c.l.b16 %v322
      %v1042 = vunpack.c.l.b16 %v323
      %v1043 = vunpack.c.l.b16 %v324
      %v1044 = vunpack.c.l.b16 %v325
      %v1045 = vunpack.c.l.b16 %v326
      %v1046 = vunpack.c.l.b16 %v327
      %v1047 = vunpack.c.l.b16 %v328
      %v1048 = vunpack.c.l.b16 %v329
      %v1049 = vunpack.c.l.b16 %v330
      %v1050 = vunpack.c.l.b16 %v331
      %v1051 = vunpack.c.l.b16 %v332
      %v1052 = vunpack.c.l.b16 %v333
      %v1053 = vunpack.c.l.b16 %v334
      %v1054 = vunpack.c.l.b16 %v335
      %v1055 = vunpack.c.l.b16 %v336
      %v1056 = vunpack.c.l.b16 %v337
      %v1057 = vunpack.c.l.b16 %v338
      %v1058 = vunpack.c.l.b16 %v339
      %v1059 = vunpack.c.l.b16 %v340
      %v1060 = vunpack.c.l.b16 %v341
      %v1061 = vunpack.c.l.b16 %v342
      %v1062 = vunpack.c.l.b16 %v343
      %v1063 = vunpack.c.l.b16 %v344
      %v1064 = vunpack.c.l.b16 %v345
      %v1065 = vunpack.c.l.b16 %v346
      %v1066 = vunpack.c.l.b16 %v347
      %v1067 = vunpack.c.l.b16 %v348
      %v1068 = vunpack.c.l.b16 %v349
      %v1069 = vunpack.c.l.b16 %v350
      %v1070 = vunpack.c.l.b16 %v351
      %v1071 = vunpack.c.l.b16 %v352
      %v1072 = vunpack.c.l.b16 %v353
      %v1073 = vunpack.c.l.b16 %v354
      %v1074 = vunpack.c.l.b16 %v355
      %v1075 = vunpack.c.l.b16 %v356
      %v1076 = vunpack.c.l.b16 %v357
      %v1077 = vunpack.c.l.b16 %v358
      %v1078 = vunpack.c.l.b16 %v359
      %v1079 = vunpack.c.l.b16 %v360
      %v1080 = vunpack.c.l.b16 %v361
      %v1081 = vunpack.c.l.b16 %v362
      %v1082 = vunpack.c.l.b16 %v363
      %v1083 = vunpack.c.l.b16 %v364
      %v1084 = vunpack.c.l.b16 %v365
      %v1085 = vunpack.c.l.b16 %v366
      %v1086 = vunpack.c.l.b16 %v367
      %v1087 = vunpack.c.l.b16 %v368
      %v1088 = vunpack.c.l.b16 %v369
      %v1089 = vunpack.c.l.b16 %v370
      %v1090 = vunpack.c.l.b16 %v371
      %v1091 = vunpack.c.l.b16 %v372
      %v1092 = vunpack.c.l.b16 %v373
      %v1093 = vunpack.c.l.b16 %v374
      %v1094 = vunpack.c.l.b16 %v375
      %v1095 = vunpack.c.l.b16 %v376
      %v1096 = vunpack.c.l.b16 %v377
      %v1097 = vunpack.c.l.b16 %v378
      %v1098 = vunpack.c.l.b16 %v379
      %v1099 = vunpack.c.l.b16 %v380
      %v1100 = vunpack.c.l.b16 %v381
      %v1101 = vunpack.c.l.b16 %v382
      %v1102 = vunpack.c.l.b16 %v383
      %v1103 = vunpack.c.l.b16 %v384
      %v1104 = vunpack.c.l.b16 %v385
      %v1105 = vunpack.c.l.b16 %v386
      %v1106 = vunpack.c.l.b16 %v387
      %v1107 = vunpack.c.l.b16 %v388
      %v1108 = vunpack.c.l.b16 %v389
      %v1109 = vunpack.c.l.b16 %v390
      %v1110 = vunpack.c.l.b16 %v391
      %v1111 = vunpack.c.l.b16 %v392
      %v1112 = vunpack.c.l.b16 %v393
      %v1113 = vunpack.c.l.b16 %v394
      %v1114 = vunpack.c.l.b16 %v395
      %v1115 = vunpack.c.l.b16 %v396
      %v1116 = vunpack.c.l.b16 %v397
      %v1117 = vunpack.c.l.b16 %v398
      %v1118 = vunpack.c.l.b16 %v399
      %v1119 = vunpack.c.l.b16 %v400
      %v1120 = vunpack.c.l.b16 %v401
      %v1121 = vunpack.c.l.b16 %v402
      %v1122 = vunpack.c.l.b16 %v403
      %v1123 = vunpack.c.l.b16 %v404
      %v1124 = vunpack.c.l.b16 %v405
      %v1125 = vunpack.c.l.b16 %v406
      %v1126 = vunpack.c.l.b16 %v407
      %v1127 = vunpack.c.l.b16 %v408
      %v1128 = vunpack.c.l.b16 %v409
      %v1129 = vunpack.c.l.b16 %v410
      %v1130 = vunpack.c.l.b16 %v411
      %v1131 = vunpack.c.l.b16 %v412
      %v1132 = vunpack.c.l.b16 %v413
      %v1133 = vunpack.c.l.b16 %v414
      %v1134 = vunpack.c.l.b16 %v415
      %v1135 = vunpack.c.l.b16 %v416
      %v1136 = vunpack.c.l.b16 %v417
      %v1137 = vunpack.c.l.b16 %v418
      %v1138 = vunpack.c.l.b16 %v419
      %v1139 = vunpack.c.l.b16 %v420
      %v1140 = vunpack.c.l.b16 %v421
      %v1141 = vunpack.c.l.b16 %v422
      %v1142 = vunpack.c.l.b16 %v423
      %v1143 = vunpack.c.l.b16 %v424
      %v1144 = vunpack.c.l.b16 %v425
      %v1145 = vunpack.c.l.b16 %v426
      %v1146 = vunpack.c.l.b16 %v427
      %v1147 = vunpack.c.l.b16 %v428
      %v1148 = vunpack.c.l.b16 %v429
      %v1149 = vunpack.c.l.b16 %v430
      %v1150 = vunpack.c.l.b16 %v431
      %v1151 = vunpack.c.l.b16 %v432
      %v1152 = vunpack.c.l.b16 %v433
      %v1153 = vunpack.c.l.b16 %v434
      %v1154 = vunpack.c.l.b16 %v435
      %v1155 = vunpack.c.l.b16 %v436
      %v1156 = vunpack.c.l.b16 %v437
      %v1157 = vunpack.c.l.b16 %v438
      %v1158 = vunpack.c.l.b16 %v439
      %v1159 = vunpack.c.l.b16 %v440
      %v1160 = vunpack.c.l.b16 %v441
      %v1161 = vunpack.c.l.b16 %v442
      %v1162 = vunpack.c.l.b16 %v443
      %v1163 = vunpack.c.l.b16 %v444
      %v1164 = vunpack.c.l.b16 %v445
      %v1165 = vunpack.c.l.b16 %v446
      %v1166 = vunpack.c.l.b16 %v447
      %v1167 = vunpack.c.l.b16 %v448
      %v1168 = vunpack.c.l.b16 %v449
      %v1169 = vunpack.c.l.b16 %v450
      %v1170 = vunpack.c.l.b16 %v451
      %v1171 = vunpack.c.l.b16 %v452
      %v1172 = vunpack.c.l.b16 %v453
      %v1173 = vunpack.c.l.b16 %v454
      %v1174 = vunpack.c.l.b16 %v455
      %v1175 = vunpack.c.l.b16 %v456
      %v1176 = vunpack.c.l.b16 %v457
      %v1177 = vunpack.c.l.b16 %v458
      %v1178 = vunpack.c.l.b16 %v459
      %v1179 = vunpack.c.l.b16 %v460
      %v1180 = vunpack.c.l.b16 %v461
      %v1181 = vunpack.c.l.b16 %v462
      %v1182 = vunpack.c.l.b16 %v463
      %v1183 = vunpack.c.l.b16 %v464
      %v1184 = vunpack.c.l.b16 %v465
      %v1185 = vunpack.c.l.b16 %v466
      %v1186 = vunpack.c.l.b16 %v467
      %v1187 = vunpack.c.l.b16 %v468
      %v1188 = vunpack.c.l.b16 %v469
      %v1189 = vunpack.c.l.b16 %v470
      %v1190 = vunpack.c.l.b16 %v471
      %v1191 = vunpack.c.l.b16 %v472
      %v1192 = vunpack.c.l.b16 %v473
      %v1193 = vunpack.c.l.b16 %v474
      %v1194 = vunpack.c.l.b16 %v475
      %v1195 = vunpack.c.l.b16 %v476
      %v1196 = vunpack.c.l.b16 %v477
      %v1197 = vunpack.c.l.b16 %v478
      %v1198 = vunpack.c.l.b16 %v479
      %v1199 = vunpack.c.l.b16 %v480
      %v1200 = vunpack.c.l.b16 %v481
      %v1201 = vunpack.c.l.b16 %v482
      %v1202 = vunpack.c.l.b16 %v483
      %v1203 = vunpack.c.l.b16 %v484
      %v1204 = vunpack.c.l.b16 %v485
      %v1205 = vunpack.c.l.b16 %v486
      %v1206 = vunpack.c.l.b16 %v487
      %v1207 = vunpack.c.l.b16 %v488
      %v1208 = vunpack.c.l.b16 %v489
      %v1209 = vunpack.c.l.b16 %v490
      %v1210 = vunpack.c.l.b16 %v491
      %v1211 = vunpack.c.l.b16 %v492
      %v1212 = vunpack.c.l.b16 %v493
      %v1213 = vunpack.c.l.b16 %v494
      %v1214 = vpack.c.b16 %v940, %v939
      %v1215 = vpack.c.b16 %v942, %v941
      %v1216 = vpack.c.b16 %v944, %v943
      %v1217 = vpack.c.b16 %v946, %v945
      %v1218 = vpack.c.b16 %v948, %v947
      %v1219 = vpack.c.b16 %v950, %v949
      %v1220 = vpack.c.b16 %v952, %v951
      %v1221 = vpack.c.b16 %v954, %v953
      %v1222 = vpack.c.b16 %v956, %v955
      %v1223 = vpack.c.b16 %v958, %v957
      %v1224 = vpack.c.b16 %v960, %v959
      %v1225 = vpack.c.b16 %v962, %v961
      %v1226 = vpack.c.b16 %v964, %v963
      %v1227 = vpack.c.b16 %v966, %v965
      %v1228 = vpack.c.b16 %v968, %v967
      %v1229 = vpack.c.b16 %v970, %v969
      %v1230 = vpack.c.b16 %v972, %v971
      %v1231 = vpack.c.b16 %v974, %v973
      %v1232 = vpack.c.b16 %v976, %v975
      %v1233 = vpack.c.b16 %v978, %v977
      %v1234 = vpack.c.b16 %v980, %v979
      %v1235 = vpack.c.b16 %v982, %v981
      %v1236 = vpack.c.b16 %v984, %v983
      %v1237 = vpack.c.b16 %v986, %v985
      %v1238 = vpack.c.b16 %v988, %v987
      %v1239 = vpack.c.b16 %v990, %v989
      %v1240 = vpack.c.b16 %v992, %v991
      %v1241 = vpack.c.b16 %v994, %v993
      %v1242 = vpack.c.b16 %v996, %v995
      %v1243 = vpack.c.b16 %v998, %v997
      %v1244 = vpack.c.b16 %v1000, %v999
      %v1245 = vpack.c.b16 %v1002, %v1001
      %v1246 = vpack.c.b16 %v1004, %v1003
      %v1247 = vpack.c.b16 %v1006, %v1005
      %v1248 = vpack.c.b16 %v1008, %v1007
      %v1249 = vpack.c.b16 %v1010, %v1009
      %v1250 = vpack.c.b16 %v1012, %v1011
      %v1251 = vpack.c.b16 %v1014, %v1013
      %v1252 = vpack.c.b16 %v1016, %v1015
      %v1253 = vpack.c.b16 %v1018, %v1017
      %v1254 = vpack.c.b16 %v1020, %v1019
      %v1255 = vpack.c.b16 %v1022, %v1021
      %v1256 = vpack.c.b16 %v1024, %v1023
      %v1257 = vpack.c.b16 %v1026, %v1025
      %v1258 = vpack.c.b16 %v1028, %v1027
      %v1259 = vpack.c.b16 %v1030, %v1029
      %v1260 = vpack.c.b16 %v1032, %v1031
      %v1261 = vpack.c.b16 %v1034, %v1033
      %v1262 = vpack.c.b16 %v1036, %v1035
      %v1263 = vpack.c.b16 %v1038, %v1037
      %v1264 = vpack.c.b16 %v1040, %v1039
      %v1265 = vpack.c.b16 %v1042, %v1041
      %v1266 = vpack.c.b16 %v1044, %v1043
      %v1267 = vpack.c.b16 %v1046, %v1045
      %v1268 = vpack.c.b16 %v1048, %v1047
      %v1269 = vpack.c.b16 %v1050, %v1049
      %v1270 = vpack.c.b16 %v1052, %v1051
      %v1271 = vpack.c.b16 %v1054, %v1053
      %v1272 = vpack.c.b16 %v1056, %v1055
      %v1273 = vpack.c.b16 %v1058, %v1057
      %v1274 = vpack.c.b16 %v1060, %v1059
      %v1275 = vpack.c.b16 %v1062, %v1061
      %v1276 = vpack.c.b16 %v1064, %v1063
      %v1277 = vpack.c.b16 %v1066, %v1065
      %v1278 = vpack.c.b16 %v1068, %v1067
      %v1279 = vpack.c.b16 %v1070, %v1069
      %v1280 = vpack.c.b16 %v1072, %v1071
      %v1281 = vpack.c.b16 %v1074, %v1073
      %v1282 = vpack.c.b16 %v1076, %v1075
      %v1283 = vpack.c.b16 %v1078, %v1077
      %v1284 = vpack.c.b16 %v1080, %v1079
      %v1285 = vpack.c.b16 %v1082, %v1081
      %v1286 = vpack.c.b16 %v1084, %v1083
      %v1287 = vpack.c.b16 %v1086, %v1085
      %v1288 = vpack.c.b16 %v1088, %v1087
      %v1289 = vpack.c.b16 %v1090, %v1089
      %v1290 = vpack.c.b16 %v1092, %v1091
      %v1291 = vpack.c.b16 %v1094, %v1093
      %v1292 = vpack.c.b16 %v1096, %v1095
      %v1293 = vpack.c.b16 %v1098, %v1097
      %v1294 = vpack.c.b16 %v1100, %v1099
      %v1295 = vpack.c.b16 %v1102, %v1101
      %v1296 = vpack.c.b16 %v1104, %v1103
      %v1297 = vpack.c.b16 %v1106, %v1105
      %v1298 = vpack.c.b16 %v1108, %v1107
      %v1299 = vpack.c.b16 %v1110, %v1109
      %v1300 = vpack.c.b16 %v1112, %v1111
      %v1301 = vpack.c.b16 %v1114, %v1113
      %v1302 = vpack.c.b16 %v1116, %v1115
      %v1303 = vpack.c.b16 %v1118, %v1117
      %v1304 = vpack.c.b16 %v1120, %v1119
      %v1305 = vpack.c.b16 %v1122, %v1121
      %v1306 = vpack.c.b16 %v1124, %v1123
      %v1307 = vpack.c.b16 %v1126, %v1125
      %v1308 = vpack.c.b16 %v1128, %v1127
      %v1309 = vpack.c.b16 %v1130, %v1129
      %v1310 = vpack.c.b16 %v1132, %v1131
      %v1311 = vpack.c.b16 %v1134, %v1133
      %v1312 = vpack.c.b16 %v1136, %v1135
      %v1313 = vpack.c.b16 %v1138, %v1137
      %v1314 = vpack.c.b16 %v1140, %v1139
      %v1315 = vpack.c.b16 %v1142, %v1141
      %v1316 = vpack.c.b16 %v1144, %v1143
      %v1317 = vpack.c.b16 %v1146, %v1145
      %v1318 = vpack.c.b16 %v1148, %v1147
      %v1319 = vpack.c.b16 %v1150, %v1149
      %v1320 = vpack.c.b16 %v1152, %v1151
      %v1321 = vpack.c.b16 %v1154, %v1153
      %v1322 = vpack.c.b16 %v1156, %v1155
      %v1323 = vpack.c.b16 %v1158, %v1157
      %v1324 = vpack.c.b16 %v1160, %v1159
      %v1325 = vpack.c.b16 %v1162, %v1161
      %v1326 = vpack.c.b16 %v1164, %v1163
      %v1327 = vpack.c.b16 %v1166, %v1165
      %v1328 = vpack.c.b16 %v1168, %v1167
      %v1329 = vpack.c.b16 %v1170, %v1169
      %v1330 = vpack.c.b16 %v1172, %v1171
      %v1331 = vpack.c.b16 %v1174, %v1173
      %v1332 = vpack.c.b16 %v1176, %v1175
      %v1333 = vpack.c.b16 %v1178, %v1177
      %v1334 = vpack.c.b16 %v1180, %v1179
      %v1335 = vpack.c.b16 %v1182, %v1181
      %v1336 = vpack.c.b16 %v1184, %v1183
      %v1337 = vpack.c.b16 %v1186, %v1185
      %v1338 = vpack.c.b16 %v1188, %v1187
      %v1339 = vpack.c.b16 %v1190, %v1189
      %v1340 = vpack.c.b16 %v1192, %v1191
      %v1341 = vpack.c.b16 %v1194, %v1193
      %v1342 = vpack.c.b16 %v1196, %v1195
      %v1343 = vpack.c.b16 %v1198, %v1197
      %v1344 = vpack.c.b16 %v1200, %v1199
      %v1345 = vpack.c.b16 %v1202, %v1201
      %v1346 = vpack.c.b16 %v1204, %v1203
      %v1347 = vpack.c.b16 %v1206, %v1205
      %v1348 = vpack.c.b16 %v1208, %v1207
      %v1349 = vpack.c.b16 %v1210, %v1209
      %v1350 = vpack.c.b16 %v1212, %v1211
      %v1351 = vpack.c.b16 %v1213, %v1213
      %vm1489 = vcmask 195584
      %v1491 = vsel %vm1489, %v611, 0
      %v1494 = vsel %vm1489, %v629, 0
      %vm1496 = vcmask 1043456
      %v1498 = vsel %vm1496, %v1351, 0
      %1500 = vmatpush.bf16.msra.mxu0 %v1221
      %1501 = vmatpush.bf16.msra.mxu0 %v1220
      %1502 = vmatpush.bf16.msra.mxu0 %v1219
      %1503 = vmatpush.bf16.msra.mxu0 %v1218
      %1504 = vmatpush.bf16.msra.mxu0 %v1217
      %1505 = vmatpush.bf16.msra.mxu0 %v1216
      %1506 = vmatpush.bf16.msra.mxu0 %v1215
      %1507 = vmatpush.bf16.msra.mxu0 %v1214
      %1508 = vmatmul.bf16.gmra.mxu0 %v594
      %v1509 = vpop.f32.mrf.mxu0
      %v1510 = vadd.f32 %v501, %v1509
      %v1511 = vpop.f32.mrf.mxu0
      %v1512 = vadd.f32 %v506, %v1511
      %1513 = vmatmul.bf16.gmra.mxu0 %v612
      %v1514 = vpop.f32.mrf.mxu0
      %v1515 = vadd.f32 %v511, %v1514
      %v1516 = vpop.f32.mrf.mxu0
      %1517 = vdwg.mxu0
      %1518 = vmatpush.bf16.msra.mxu0 %v1229
      %1519 = vmatpush.bf16.msra.mxu0 %v1228
      %1520 = vmatpush.bf16.msra.mxu0 %v1227
      %1521 = vmatpush.bf16.msra.mxu0 %v1226
      %1522 = vmatpush.bf16.msra.mxu0 %v1225
      %1523 = vmatpush.bf16.msra.mxu0 %v1224
      %1524 = vmatpush.bf16.msra.mxu0 %v1223
      %1525 = vmatpush.bf16.msra.mxu0 %v1222
      %1526 = vmatmul.bf16.gmra.mxu0 %v595
      %v1527 = vpop.f32.mrf.mxu0
      %v1528 = vadd.f32 %v1510, %v1527
      %v1529 = vpop.f32.mrf.mxu0
      %v1530 = vadd.f32 %v1512, %v1529
      %1531 = vmatmul.bf16.gmra.mxu0 %v613
      %v1532 = vpop.f32.mrf.mxu0
      %v1533 = vadd.f32 %v1515, %v1532
      %v1534 = vpop.f32.mrf.mxu0
      %1535 = vdwg.mxu0
      %1536 = vmatpush.bf16.msra.mxu0 %v1237
      %1537 = vmatpush.bf16.msra.mxu0 %v1236
      %1538 = vmatpush.bf16.msra.mxu0 %v1235
      %1539 = vmatpush.bf16.msra.mxu0 %v1234
      %1540 = vmatpush.bf16.msra.mxu0 %v1233
      %1541 = vmatpush.bf16.msra.mxu0 %v1232
      %1542 = vmatpush.bf16.msra.mxu0 %v1231
      %1543 = vmatpush.bf16.msra.mxu0 %v1230
      %1544 = vmatmul.bf16.gmra.mxu0 %v596
      %v1545 = vpop.f32.mrf.mxu0
      %v1546 = vadd.f32 %v1528, %v1545
      %v1547 = vpop.f32.mrf.mxu0
      %v1548 = vadd.f32 %v1530, %v1547
      %1549 = vmatmul.bf16.gmra.mxu0 %v614
      %v1550 = vpop.f32.mrf.mxu0
      %v1551 = vadd.f32 %v1533, %v1550
      %v1552 = vpop.f32.mrf.mxu0
      %1553 = vdwg.mxu0
      %1554 = vmatpush.bf16.msra.mxu0 %v1245
      %1555 = vmatpush.bf16.msra.mxu0 %v1244
      %1556 = vmatpush.bf16.msra.mxu0 %v1243
      %1557 = vmatpush.bf16.msra.mxu0 %v1242
      %1558 = vmatpush.bf16.msra.mxu0 %v1241
      %1559 = vmatpush.bf16.msra.mxu0 %v1240
      %1560 = vmatpush.bf16.msra.mxu0 %v1239
      %1561 = vmatpush.bf16.msra.mxu0 %v1238
      %1562 = vmatmul.bf16.gmra.mxu0 %v597
      %v1563 = vpop.f32.mrf.mxu0
      %v1564 = vadd.f32 %v1546, %v1563
      %v1565 = vpop.f32.mrf.mxu0
      %v1566 = vadd.f32 %v1548, %v1565
      %1567 = vmatmul.bf16.gmra.mxu0 %v615
      %v1568 = vpop.f32.mrf.mxu0
      %v1569 = vadd.f32 %v1551, %v1568
      %v1570 = vpop.f32.mrf.mxu0
      %1571 = vdwg.mxu0
      %1572 = vmatpush.bf16.msra.mxu0 %v1253
      %1573 = vmatpush.bf16.msra.mxu0 %v1252
      %1574 = vmatpush.bf16.msra.mxu0 %v1251
      %1575 = vmatpush.bf16.msra.mxu0 %v1250
      %1576 = vmatpush.bf16.msra.mxu0 %v1249
      %1577 = vmatpush.bf16.msra.mxu0 %v1248
      %1578 = vmatpush.bf16.msra.mxu0 %v1247
      %1579 = vmatpush.bf16.msra.mxu0 %v1246
      %1580 = vmatmul.bf16.gmra.mxu0 %v598
      %v1581 = vpop.f32.mrf.mxu0
      %v1582 = vadd.f32 %v1564, %v1581
      %v1583 = vpop.f32.mrf.mxu0
      %v1584 = vadd.f32 %v1566, %v1583
      %1585 = vmatmul.bf16.gmra.mxu0 %v616
      %v1586 = vpop.f32.mrf.mxu0
      %v1587 = vadd.f32 %v1569, %v1586
      %v1588 = vpop.f32.mrf.mxu0
      %1589 = vdwg.mxu0
      %1590 = vmatpush.bf16.msra.mxu0 %v1261
      %1591 = vmatpush.bf16.msra.mxu0 %v1260
      %1592 = vmatpush.bf16.msra.mxu0 %v1259
      %1593 = vmatpush.bf16.msra.mxu0 %v1258
      %1594 = vmatpush.bf16.msra.mxu0 %v1257
      %1595 = vmatpush.bf16.msra.mxu0 %v1256
      %1596 = vmatpush.bf16.msra.mxu0 %v1255
      %1597 = vmatpush.bf16.msra.mxu0 %v1254
      %1598 = vmatmul.bf16.gmra.mxu0 %v599
      %v1599 = vpop.f32.mrf.mxu0
      %v1600 = vadd.f32 %v1582, %v1599
      %v1601 = vpop.f32.mrf.mxu0
      %v1602 = vadd.f32 %v1584, %v1601
      %1603 = vmatmul.bf16.gmra.mxu0 %v617
      %v1604 = vpop.f32.mrf.mxu0
      %v1605 = vadd.f32 %v1587, %v1604
      %v1606 = vpop.f32.mrf.mxu0
      %1607 = vdwg.mxu0
      %1608 = vmatpush.bf16.msra.mxu0 %v1269
      %1609 = vmatpush.bf16.msra.mxu0 %v1268
      %1610 = vmatpush.bf16.msra.mxu0 %v1267
      %1611 = vmatpush.bf16.msra.mxu0 %v1266
      %1612 = vmatpush.bf16.msra.mxu0 %v1265
      %1613 = vmatpush.bf16.msra.mxu0 %v1264
      %1614 = vmatpush.bf16.msra.mxu0 %v1263
      %1615 = vmatpush.bf16.msra.mxu0 %v1262
      %1616 = vmatmul.bf16.gmra.mxu0 %v600
      %v1617 = vpop.f32.mrf.mxu0
      %v1618 = vadd.f32 %v1600, %v1617
      %v1619 = vpop.f32.mrf.mxu0
      %v1620 = vadd.f32 %v1602, %v1619
      %1621 = vmatmul.bf16.gmra.mxu0 %v618
      %v1622 = vpop.f32.mrf.mxu0
      %v1623 = vadd.f32 %v1605, %v1622
      %v1624 = vpop.f32.mrf.mxu0
      %1625 = vdwg.mxu0
      %1626 = vmatpush.bf16.msra.mxu0 %v1277
      %1627 = vmatpush.bf16.msra.mxu0 %v1276
      %1628 = vmatpush.bf16.msra.mxu0 %v1275
      %1629 = vmatpush.bf16.msra.mxu0 %v1274
      %1630 = vmatpush.bf16.msra.mxu0 %v1273
      %1631 = vmatpush.bf16.msra.mxu0 %v1272
      %1632 = vmatpush.bf16.msra.mxu0 %v1271
      %1633 = vmatpush.bf16.msra.mxu0 %v1270
      %1634 = vmatmul.bf16.gmra.mxu0 %v601
      %v1635 = vpop.f32.mrf.mxu0
      %v1636 = vadd.f32 %v1618, %v1635
      %v1637 = vpop.f32.mrf.mxu0
      %v1638 = vadd.f32 %v1620, %v1637
      %1639 = vmatmul.bf16.gmra.mxu0 %v619
      %v1640 = vpop.f32.mrf.mxu0
      %v1641 = vadd.f32 %v1623, %v1640
      %v1642 = vpop.f32.mrf.mxu0
      %1643 = vdwg.mxu0
      %1644 = vmatpush.bf16.msra.mxu0 %v1285
      %1645 = vmatpush.bf16.msra.mxu0 %v1284
      %1646 = vmatpush.bf16.msra.mxu0 %v1283
      %1647 = vmatpush.bf16.msra.mxu0 %v1282
      %1648 = vmatpush.bf16.msra.mxu0 %v1281
      %1649 = vmatpush.bf16.msra.mxu0 %v1280
      %1650 = vmatpush.bf16.msra.mxu0 %v1279
      %1651 = vmatpush.bf16.msra.mxu0 %v1278
      %1652 = vmatmul.bf16.gmra.mxu0 %v602
      %v1653 = vpop.f32.mrf.mxu0
      %v1654 = vadd.f32 %v1636, %v1653
      %v1655 = vpop.f32.mrf.mxu0
      %v1656 = vadd.f32 %v1638, %v1655
      %1657 = vmatmul.bf16.gmra.mxu0 %v620
      %v1658 = vpop.f32.mrf.mxu0
      %v1659 = vadd.f32 %v1641, %v1658
      %v1660 = vpop.f32.mrf.mxu0
      %1661 = vdwg.mxu0
      %1662 = vmatpush.bf16.msra.mxu0 %v1293
      %1663 = vmatpush.bf16.msra.mxu0 %v1292
      %1664 = vmatpush.bf16.msra.mxu0 %v1291
      %1665 = vmatpush.bf16.msra.mxu0 %v1290
      %1666 = vmatpush.bf16.msra.mxu0 %v1289
      %1667 = vmatpush.bf16.msra.mxu0 %v1288
      %1668 = vmatpush.bf16.msra.mxu0 %v1287
      %1669 = vmatpush.bf16.msra.mxu0 %v1286
      %1670 = vmatmul.bf16.gmra.mxu0 %v603
      %v1671 = vpop.f32.mrf.mxu0
      %v1672 = vadd.f32 %v1654, %v1671
      %v1673 = vpop.f32.mrf.mxu0
      %v1674 = vadd.f32 %v1656, %v1673
      %1675 = vmatmul.bf16.gmra.mxu0 %v621
      %v1676 = vpop.f32.mrf.mxu0
      %v1677 = vadd.f32 %v1659, %v1676
      %v1678 = vpop.f32.mrf.mxu0
      %1679 = vdwg.mxu0
      %1680 = vmatpush.bf16.msra.mxu0 %v1301
      %1681 = vmatpush.bf16.msra.mxu0 %v1300
      %1682 = vmatpush.bf16.msra.mxu0 %v1299
      %1683 = vmatpush.bf16.msra.mxu0 %v1298
      %1684 = vmatpush.bf16.msra.mxu0 %v1297
      %1685 = vmatpush.bf16.msra.mxu0 %v1296
      %1686 = vmatpush.bf16.msra.mxu0 %v1295
      %1687 = vmatpush.bf16.msra.mxu0 %v1294
      %1688 = vmatmul.bf16.gmra.mxu0 %v604
      %v1689 = vpop.f32.mrf.mxu0
      %v1690 = vadd.f32 %v1672, %v1689
      %v1691 = vpop.f32.mrf.mxu0
      %v1692 = vadd.f32 %v1674, %v1691
      %1693 = vmatmul.bf16.gmra.mxu0 %v622
      %v1694 = vpop.f32.mrf.mxu0
      %v1695 = vadd.f32 %v1677, %v1694
      %v1696 = vpop.f32.mrf.mxu0
      %1697 = vdwg.mxu0
      %1698 = vmatpush.bf16.msra.mxu0 %v1309
      %1699 = vmatpush.bf16.msra.mxu0 %v1308
      %1700 = vmatpush.bf16.msra.mxu0 %v1307
      %1701 = vmatpush.bf16.msra.mxu0 %v1306
      %1702 = vmatpush.bf16.msra.mxu0 %v1305
      %1703 = vmatpush.bf16.msra.mxu0 %v1304
      %1704 = vmatpush.bf16.msra.mxu0 %v1303
      %1705 = vmatpush.bf16.msra.mxu0 %v1302
      %1706 = vmatmul.bf16.gmra.mxu0 %v605
      %v1707 = vpop.f32.mrf.mxu0
      %v1708 = vadd.f32 %v1690, %v1707
      %v1709 = vpop.f32.mrf.mxu0
      %v1710 = vadd.f32 %v1692, %v1709
      %1711 = vmatmul.bf16.gmra.mxu0 %v623
      %v1712 = vpop.f32.mrf.mxu0
      %v1713 = vadd.f32 %v1695, %v1712
      %v1714 = vpop.f32.mrf.mxu0
      %1715 = vdwg.mxu0
      %1716 = vmatpush.bf16.msra.mxu0 %v1317
      %1717 = vmatpush.bf16.msra.mxu0 %v1316
      %1718 = vmatpush.bf16.msra.mxu0 %v1315
      %1719 = vmatpush.bf16.msra.mxu0 %v1314
      %1720 = vmatpush.bf16.msra.mxu0 %v1313
      %1721 = vmatpush.bf16.msra.mxu0 %v1312
      %1722 = vmatpush.bf16.msra.mxu0 %v1311
      %1723 = vmatpush.bf16.msra.mxu0 %v1310
      %1724 = vmatmul.bf16.gmra.mxu0 %v606
      %v1725 = vpop.f32.mrf.mxu0
      %v1726 = vadd.f32 %v1708, %v1725
      %v1727 = vpop.f32.mrf.mxu0
      %v1728 = vadd.f32 %v1710, %v1727
      %1729 = vmatmul.bf16.gmra.mxu0 %v624
      %v1730 = vpop.f32.mrf.mxu0
      %v1731 = vadd.f32 %v1713, %v1730
      %v1732 = vpop.f32.mrf.mxu0
      %1733 = vdwg.mxu0
      %1734 = vmatpush.bf16.msra.mxu0 %v1325
      %1735 = vmatpush.bf16.msra.mxu0 %v1324
      %1736 = vmatpush.bf16.msra.mxu0 %v1323
      %1737 = vmatpush.bf16.msra.mxu0 %v1322
      %1738 = vmatpush.bf16.msra.mxu0 %v1321
      %1739 = vmatpush.bf16.msra.mxu0 %v1320
      %1740 = vmatpush.bf16.msra.mxu0 %v1319
      %1741 = vmatpush.bf16.msra.mxu0 %v1318
      %1742 = vmatmul.bf16.gmra.mxu0 %v607
      %v1743 = vpop.f32.mrf.mxu0
      %v1744 = vadd.f32 %v1726, %v1743
      %v1745 = vpop.f32.mrf.mxu0
      %v1746 = vadd.f32 %v1728, %v1745
      %1747 = vmatmul.bf16.gmra.mxu0 %v625
      %v1748 = vpop.f32.mrf.mxu0
      %v1749 = vadd.f32 %v1731, %v1748
      %v1750 = vpop.f32.mrf.mxu0
      %1751 = vdwg.mxu0
      %1752 = vmatpush.bf16.msra.mxu0 %v1333
      %1753 = vmatpush.bf16.msra.mxu0 %v1332
      %1754 = vmatpush.bf16.msra.mxu0 %v1331
      %1755 = vmatpush.bf16.msra.mxu0 %v1330
      %1756 = vmatpush.bf16.msra.mxu0 %v1329
      %1757 = vmatpush.bf16.msra.mxu0 %v1328
      %1758 = vmatpush.bf16.msra.mxu0 %v1327
      %1759 = vmatpush.bf16.msra.mxu0 %v1326
      %1760 = vmatmul.bf16.gmra.mxu0 %v608
      %v1761 = vpop.f32.mrf.mxu0
      %v1762 = vadd.f32 %v1744, %v1761
      %v1763 = vpop.f32.mrf.mxu0
      %v1764 = vadd.f32 %v1746, %v1763
      %1765 = vmatmul.bf16.gmra.mxu0 %v626
      %v1766 = vpop.f32.mrf.mxu0
      %v1767 = vadd.f32 %v1749, %v1766
      %v1768 = vpop.f32.mrf.mxu0
      %1769 = vdwg.mxu0
      %1770 = vmatpush.bf16.msra.mxu0 %v1341
      %1771 = vmatpush.bf16.msra.mxu0 %v1340
      %1772 = vmatpush.bf16.msra.mxu0 %v1339
      %1773 = vmatpush.bf16.msra.mxu0 %v1338
      %1774 = vmatpush.bf16.msra.mxu0 %v1337
      %1775 = vmatpush.bf16.msra.mxu0 %v1336
      %1776 = vmatpush.bf16.msra.mxu0 %v1335
      %1777 = vmatpush.bf16.msra.mxu0 %v1334
      %1778 = vmatmul.bf16.gmra.mxu0 %v609
      %v1779 = vpop.f32.mrf.mxu0
      %v1780 = vadd.f32 %v1762, %v1779
      %v1781 = vpop.f32.mrf.mxu0
      %v1782 = vadd.f32 %v1764, %v1781
      %1783 = vmatmul.bf16.gmra.mxu0 %v627
      %v1784 = vpop.f32.mrf.mxu0
      %v1785 = vadd.f32 %v1767, %v1784
      %v1786 = vpop.f32.mrf.mxu0
      %1787 = vdwg.mxu0
      %1788 = vmatpush.bf16.msra.mxu0 %v1349
      %1789 = vmatpush.bf16.msra.mxu0 %v1348
      %1790 = vmatpush.bf16.msra.mxu0 %v1347
      %1791 = vmatpush.bf16.msra.mxu0 %v1346
      %1792 = vmatpush.bf16.msra.mxu0 %v1345
      %1793 = vmatpush.bf16.msra.mxu0 %v1344
      %1794 = vmatpush.bf16.msra.mxu0 %v1343
      %1795 = vmatpush.bf16.msra.mxu0 %v1342
      %1796 = vmatmul.bf16.gmra.mxu0 %v610
      %v1797 = vpop.f32.mrf.mxu0
      %v1798 = vadd.f32 %v1780, %v1797
      %v1799 = vpop.f32.mrf.mxu0
      %v1800 = vadd.f32 %v1782, %v1799
      %1801 = vmatmul.bf16.gmra.mxu0 %v628
      %v1802 = vpop.f32.mrf.mxu0
      %v1803 = vadd.f32 %v1785, %v1802
      %v1804 = vpop.f32.mrf.mxu0
      %1805 = vdwg.mxu0
      %1806 = vmatpush.bf16.msra.mxu0 0
      %1807 = vmatpush.bf16.msra.mxu0 0
      %1808 = vmatpush.bf16.msra.mxu0 0
      %1809 = vmatpush.bf16.msra.mxu0 0
      %1810 = vmatpush.bf16.msra.mxu0 0
      %1811 = vmatpush.bf16.msra.mxu0 0
      %1812 = vmatpush.bf16.msra.mxu0 %v1498
      %1813 = vmatpush.bf16.msra.mxu0 %v1350
      %1814 = vmatmul.bf16.gmra.mxu0 %v1491
      %v1815 = vpop.f32.mrf.mxu0
      %v1816 = vadd.f32 %v1798, %v1815
      %v1817 = vpop.f32.mrf.mxu0
      %v1818 = vadd.f32 %v1800, %v1817
      %1819 = vmatmul.bf16.gmra.mxu0 %v1494
      %v1820 = vpop.f32.mrf.mxu0
      %v1821 = vadd.f32 %v1803, %v1820
      %v1822 = vpop.f32.mrf.mxu0
      %1823 = vdwg.mxu0
      %p1824 = scmp.eq.s32.totalorder %s19, 0
      // Predicated region
      $region33: #{net_forward.16} parent=31 // pred_check
        %p1825 = pneg %p1824
      $region34: #{net_forward.16} parent=31 // pred_check_branch
        %1827 = sbr.rel (%p1825) target = $region36
      $region35: #{net_forward.16} parent=31 // pred_region
        %vm1828 = vcmask 261120
        %1829 = vst.msk [vmem:[#allocation2] sm:$0xff] %vm1828, %v1816
        %1830 = vst.msk [vmem:[#allocation2 + $0x8] sm:$0xff] %vm1828, %v1818
        %vm1831 = vcmask 257024
        %1832 = vst.msk [vmem:[#allocation2 + $0x10] sm:$0xf] %vm1831, %v1821
      $region36: #{net_forward.16} parent=31 // pred_fallthru
        _
      %p1833 = scmp.gt.s32.totalorder %s19, 0
      // Predicated region
      $region37: #{net_forward.16} parent=31 // pred_check
        %p1834 = pneg %p1833
      $region38: #{net_forward.16} parent=31 // pred_check_branch
        %1836 = sbr.rel (%p1834) target = $region40
      $region39: #{net_forward.16} parent=31 // pred_region
        %v1837 = vld [vmem:[#allocation2] sm:$0xff]
        %v1838 = vld [vmem:[#allocation2 + $0x8] sm:$0xff]
        %v1839 = vld [vmem:[#allocation2 + $0x10] sm:$0xf]
        %v1840 = vmax.f32 %v1837, %v1816
        %v1841 = vmax.f32 %v1838, %v1818
        %v1842 = vmax.f32 %v1839, %v1821
        %vm1843 = vcmask 261120
        %1844 = vst.msk [vmem:[#allocation2] sm:$0xff] %vm1843, %v1840
        %1845 = vst.msk [vmem:[#allocation2 + $0x8] sm:$0xff] %vm1843, %v1841
        %vm1846 = vcmask 257024
        %1847 = vst.msk [vmem:[#allocation2 + $0x10] sm:$0xf] %vm1846, %v1842
      $region40: #{net_forward.16} parent=31 // pred_fallthru
        _
      %p1848 = scmp.eq.s32.totalorder %s19, 3
      // Predicated region
      $region41: #{net_forward.16} parent=31 // pred_check
        %p1849 = pneg %p1848
      $region42: #{net_forward.16} parent=31 // pred_check_branch
        %1851 = sbr.rel (%p1849) target = $region44
      $region43: #{net_forward.16} parent=31 // pred_region
        %v1852 = vld [vmem:[#allocation2] sm:$0xff]
        %v1853 = vld [vmem:[#allocation2 + $0x8] sm:$0xff]
        %v1854 = vld [vmem:[#allocation2 + $0x10] sm:$0xf]
        %v1855 = vmax.f32 %v1852, 0.0
        %v1856 = vmax.f32 %v1853, 0.0
        %v1857 = vmax.f32 %v1854, 0.0
        %v1858 = vpack.c.bf16 %v1855, %v1855
        %v1859 = vpack.c.bf16 %v1856, %v1856
        %v1860 = vpack.c.bf16 %v1857, %v1857
        %vm1861 = vcmask 257024
        %1862 = vst.msk [vmem:[%s191] sm:$0xf] %vm1861, %v1858
        %1863 = vst.msk [vmem:[%s191 + $0x4] sm:$0xf] %vm1861, %v1859
        %vm1864 = vcmask 254976
        %1865 = vst.msk [vmem:[%s191 + $0x8] sm:$0x3] %vm1864, %v1860
      $region44: #{net_forward.16} parent=31 // pred_fallthru
        _
      %p1866 = scmp.lt.s32.totalorder %s18, 0
      %s1867 = scalar_select %p1866, %s18, 0
      %s1868 = smul.addr %s1867, 4
      %s1869 = scalar_lea.vmem %s3, %s1868
      // Predicated region
      $region45: #{net_forward.16} parent=31 // pred_check
        %p1870 = pneg %p114
      $region46: #{net_forward.16} parent=31 // pred_check_branch
        %1872 = sbr.rel (%p1870) target = $region48
      $region47: #{net_forward.16} parent=31 // pred_region
        _
      $region48: #{net_forward.16} parent=31 // pred_fallthru
        _
      // Predicated region
      $region49: #{net_forward.16} parent=31 // pred_check
        %p1873 = pneg %p114
      $region50: #{net_forward.16} parent=31 // pred_check_branch
        %1875 = sbr.rel (%p1873) target = $region52
      $region51: #{net_forward.16} parent=31 // pred_region
        %p1876 = scmp.lt.s32.totalorder %s18, 0
        %s1877 = scalar_select %p1876, %s18, 0
        %s1878 = smul.addr %s1877, 4
        %s1879 = scalar_lea.vmem %s3, %s1878
      $region52: #{net_forward.16} parent=31 // pred_fallthru
        _
    $region32: #{net_forward.16} parent=5 // pred_fallthru
      _
    %p1880 = scmp.le.s32.totalorder 2, %s9
    // Predicated region
    $region53: #{net_forward.16} parent=5 // pred_check
      %p1881 = pneg %p1880
    $region54: #{net_forward.16} parent=5 // pred_check_branch
      %1883 = sbr.rel (%p1881) target = $region56
    $region55: #{net_forward.16} parent=5 // pred_region
      %s1884 = ssub.s32 %s9, 2
    $region56: #{net_forward.16} parent=5 // pred_fallthru
      _
  $region6: #{net_forward.16} parent=0 // loop_footer
    %s13 = sadd.s32 1, %s9
  $region7: #{net_forward.16} parent=0 // loop_footer_branch
    %8 = sbr.rel target = $region3
  $region8: #{net_forward.16} parent=0 // loop_exit
    _

// kernel: net_forward.17
$region0: #{net_forward.17}
  #allocation0 [shape = 'u32[]', space=smem, size = 0x4, offset = 0x4, fixed_abs, tag = 'smem constant byte address 0x4 - core index']
  #allocation1 [shape = 'u32[72,128]{1,0:T(1,128)}', space=vmem, size = 0x9000, scoped, tag = 'internal scratch']
  %s0 = inlined_call_operand.vmem [shape: bf16[72,180], index: 0, kind: input, shape index: {}]
  %s1 = inlined_call_operand.vmem [shape: bf16[180,32], index: 1, kind: input, shape index: {}]
  %s2 = inlined_call_operand.vmem [shape: f32[72,1], index: 2, kind: input, shape index: {}]
  %s3 = inlined_call_operand.vmem [shape: bf16[72,32], index: 3, kind: output, shape index: {}]
  %s4 = sld [smem:[#allocation0]]
  $region22: #{net_forward.17} parent=0
    _
  %s6 = ssub.s32 1, %s4
  %s7 = scalar_select 0, %s6, %s4
  // Predicated region
  $region2: #{net_forward.17} parent=0 // pred_check
    _
  $region3: #{net_forward.17} parent=0 // pred_check_branch
    %9 = sbr.rel (0) target = $region5
  $region4: #{net_forward.17} parent=0 // pred_region
    _
  $region5: #{net_forward.17} parent=0 // pred_fallthru
    _
  // Predicated region
  $region6: #{net_forward.17} parent=0 // pred_check
    _
  $region7: #{net_forward.17} parent=0 // pred_check_branch
    %11 = sbr.rel (0) target = $region9
  $region8: #{net_forward.17} parent=0 // pred_region
    _
  $region9: #{net_forward.17} parent=0 // pred_fallthru
    _
  // Predicated region
  $region10: #{net_forward.17} parent=0 // pred_check
    _
  $region11: #{net_forward.17} parent=0 // pred_check_branch
    %13 = sbr.rel (0) target = $region13
  $region12: #{net_forward.17} parent=0 // pred_region
    _
  $region13: #{net_forward.17} parent=0 // pred_fallthru
    _
  %v15 = vld [vmem:[%s0] sm:$0xff]
  %v16 = vld [vmem:[%s0 + $0x8] sm:$0xff]
  %v17 = vld [vmem:[%s0 + $0x10] sm:$0xff]
  %v18 = vld [vmem:[%s0 + $0x18] sm:$0xff]
  %v19 = vld [vmem:[%s0 + $0x20] sm:$0xff]
  %v20 = vld [vmem:[%s0 + $0x28] sm:$0xff]
  %v21 = vld [vmem:[%s0 + $0x30] sm:$0xff]
  %v22 = vld [vmem:[%s0 + $0x38] sm:$0xff]
  %v23 = vld [vmem:[%s0 + $0x40] sm:$0xff]
  %v24 = vld [vmem:[%s1] sm:$0xf]
  %v25 = vld [vmem:[%s1 + $0x4] sm:$0xf]
  %v26 = vld [vmem:[%s1 + $0x8] sm:$0xf]
  %v27 = vld [vmem:[%s1 + $0xc] sm:$0xf]
  %v28 = vld [vmem:[%s1 + $0x10] sm:$0xf]
  %v29 = vld [vmem:[%s1 + $0x14] sm:$0xf]
  %v30 = vld [vmem:[%s1 + $0x18] sm:$0xf]
  %v31 = vld [vmem:[%s1 + $0x1c] sm:$0xf]
  %v32 = vld [vmem:[%s1 + $0x20] sm:$0xf]
  %v33 = vld [vmem:[%s1 + $0x24] sm:$0xf]
  %v34 = vld [vmem:[%s1 + $0x28] sm:$0xf]
  %v35 = vld [vmem:[%s1 + $0x2c] sm:$0xf]
  %v36 = vld [vmem:[%s1 + $0x30] sm:$0xf]
  %v37 = vld [vmem:[%s1 + $0x34] sm:$0xf]
  %v38 = vld [vmem:[%s1 + $0x38] sm:$0xf]
  %v39 = vld [vmem:[%s1 + $0x3c] sm:$0xf]
  %v40 = vld [vmem:[%s1 + $0x40] sm:$0xf]
  %v41 = vld [vmem:[%s1 + $0x44] sm:$0xf]
  %v42 = vld [vmem:[%s1 + $0x48] sm:$0xf]
  %v43 = vld [vmem:[%s1 + $0x4c] sm:$0xf]
  %v44 = vld [vmem:[%s1 + $0x50] sm:$0xf]
  %v45 = vld [vmem:[%s1 + $0x54] sm:$0xf]
  %v46 = vld [vmem:[%s1 + $0x58] sm:$0x3]
  %v47 = vld [vmem:[%s2] sm:$0xff]
  %v48 = vld [vmem:[%s2 + $0x8] sm:$0xff]
  %v49 = vld [vmem:[%s2 + $0x10] sm:$0xff]
  %v50 = vld [vmem:[%s2 + $0x18] sm:$0xff]
  %v51 = vld [vmem:[%s2 + $0x20] sm:$0xff]
  %v52 = vld [vmem:[%s2 + $0x28] sm:$0xff]
  %v53 = vld [vmem:[%s2 + $0x30] sm:$0xff]
  %v54 = vld [vmem:[%s2 + $0x38] sm:$0xff]
  %v55 = vld [vmem:[%s2 + $0x40] sm:$0xff]
  %57 = vset.pattern.permute.xlu0 0
  %58 = vperm.xlu0 %57, %v47
  %v59 = vpop.permute.xlu0 %58
  %62 = vset.pattern.permute.xlu0 0
  %63 = vperm.xlu0 %62, %v48
  %v64 = vpop.permute.xlu0 %63
  %67 = vset.pattern.permute.xlu0 0
  %68 = vperm.xlu0 %67, %v49
  %v69 = vpop.permute.xlu0 %68
  %72 = vset.pattern.permute.xlu0 0
  %73 = vperm.xlu0 %72, %v50
  %v74 = vpop.permute.xlu0 %73
  %77 = vset.pattern.permute.xlu0 0
  %78 = vperm.xlu0 %77, %v51
  %v79 = vpop.permute.xlu0 %78
  %82 = vset.pattern.permute.xlu0 0
  %83 = vperm.xlu0 %82, %v52
  %v84 = vpop.permute.xlu0 %83
  %87 = vset.pattern.permute.xlu0 0
  %88 = vperm.xlu0 %87, %v53
  %v89 = vpop.permute.xlu0 %88
  %92 = vset.pattern.permute.xlu0 0
  %93 = vperm.xlu0 %92, %v54
  %v94 = vpop.permute.xlu0 %93
  %97 = vset.pattern.permute.xlu0 0
  %98 = vperm.xlu0 %97, %v55
  %v99 = vpop.permute.xlu0 %98
  %v110 = vunpack.c.l.b16 %v15
  %v111 = vunpack.c.h.b16 %v15
  %v112 = vunpack.c.l.b16 %v16
  %v113 = vunpack.c.h.b16 %v16
  %v114 = vunpack.c.l.b16 %v17
  %v115 = vunpack.c.h.b16 %v17
  %v116 = vunpack.c.l.b16 %v18
  %v117 = vunpack.c.h.b16 %v18
  %v118 = vunpack.c.l.b16 %v19
  %v119 = vunpack.c.h.b16 %v19
  %v120 = vunpack.c.l.b16 %v20
  %v121 = vunpack.c.h.b16 %v20
  %v122 = vunpack.c.l.b16 %v21
  %v123 = vunpack.c.h.b16 %v21
  %v124 = vunpack.c.l.b16 %v22
  %v125 = vunpack.c.h.b16 %v22
  %v126 = vunpack.c.l.b16 %v23
  %v127 = vunpack.c.h.b16 %v23
  %v128 = vpack.c.b16 %v112, %v110
  %v129 = vpack.c.b16 %v113, %v111
  %v130 = vpack.c.b16 %v116, %v114
  %v131 = vpack.c.b16 %v117, %v115
  %v132 = vpack.c.b16 %v120, %v118
  %v133 = vpack.c.b16 %v121, %v119
  %v134 = vpack.c.b16 %v124, %v122
  %v135 = vpack.c.b16 %v125, %v123
  %v136 = vpack.c.b16 %v126, %v126
  %v137 = vpack.c.b16 %v127, %v127
  %v166 = vunpack.c.l.b16 %v24
  %v167 = vunpack.c.l.b16 %v25
  %v168 = vunpack.c.l.b16 %v26
  %v169 = vunpack.c.l.b16 %v27
  %v170 = vunpack.c.l.b16 %v28
  %v171 = vunpack.c.l.b16 %v29
  %v172 = vunpack.c.l.b16 %v30
  %v173 = vunpack.c.l.b16 %v31
  %v174 = vunpack.c.l.b16 %v32
  %v175 = vunpack.c.l.b16 %v33
  %v176 = vunpack.c.l.b16 %v34
  %v177 = vunpack.c.l.b16 %v35
  %v178 = vunpack.c.l.b16 %v36
  %v179 = vunpack.c.l.b16 %v37
  %v180 = vunpack.c.l.b16 %v38
  %v181 = vunpack.c.l.b16 %v39
  %v182 = vunpack.c.l.b16 %v40
  %v183 = vunpack.c.l.b16 %v41
  %v184 = vunpack.c.l.b16 %v42
  %v185 = vunpack.c.l.b16 %v43
  %v186 = vunpack.c.l.b16 %v44
  %v187 = vunpack.c.l.b16 %v45
  %v188 = vunpack.c.l.b16 %v46
  %v189 = vpack.c.b16 %v167, %v166
  %v190 = vpack.c.b16 %v169, %v168
  %v191 = vpack.c.b16 %v171, %v170
  %v192 = vpack.c.b16 %v173, %v172
  %v193 = vpack.c.b16 %v175, %v174
  %v194 = vpack.c.b16 %v177, %v176
  %v195 = vpack.c.b16 %v179, %v178
  %v196 = vpack.c.b16 %v181, %v180
  %v197 = vpack.c.b16 %v183, %v182
  %v198 = vpack.c.b16 %v185, %v184
  %v199 = vpack.c.b16 %v187, %v186
  %v200 = vpack.c.b16 %v188, %v188
  %vm212 = vcmask 424960
  %v214 = vsel %vm212, %v129, 0
  %v217 = vsel %vm212, %v131, 0
  %v220 = vsel %vm212, %v133, 0
  %v223 = vsel %vm212, %v135, 0
  %v226 = vsel %vm212, %v137, 0
  %vm228 = vcmask 1041408
  %v230 = vsel %vm228, %v200, 0
  %232 = vmatpush.bf16.msra.mxu0 %v196
  %233 = vmatpush.bf16.msra.mxu0 %v195
  %234 = vmatpush.bf16.msra.mxu0 %v194
  %235 = vmatpush.bf16.msra.mxu0 %v193
  %236 = vmatpush.bf16.msra.mxu0 %v192
  %237 = vmatpush.bf16.msra.mxu0 %v191
  %238 = vmatpush.bf16.msra.mxu0 %v190
  %239 = vmatpush.bf16.msra.mxu0 %v189
  %240 = vmatmul.bf16.gmra.mxu0 %v128
  %v241 = vpop.f32.mrf.mxu0
  %v242 = vadd.f32 %v59, %v241
  %v243 = vpop.f32.mrf.mxu0
  %v244 = vadd.f32 %v64, %v243
  %245 = vmatmul.bf16.gmra.mxu0 %v130
  %v246 = vpop.f32.mrf.mxu0
  %v247 = vadd.f32 %v69, %v246
  %v248 = vpop.f32.mrf.mxu0
  %v249 = vadd.f32 %v74, %v248
  %250 = vmatmul.bf16.gmra.mxu0 %v132
  %v251 = vpop.f32.mrf.mxu0
  %v252 = vadd.f32 %v79, %v251
  %v253 = vpop.f32.mrf.mxu0
  %v254 = vadd.f32 %v84, %v253
  %255 = vmatmul.bf16.gmra.mxu0 %v134
  %v256 = vpop.f32.mrf.mxu0
  %v257 = vadd.f32 %v89, %v256
  %v258 = vpop.f32.mrf.mxu0
  %v259 = vadd.f32 %v94, %v258
  %260 = vmatmul.bf16.gmra.mxu0 %v136
  %v261 = vpop.f32.mrf.mxu0
  %v262 = vadd.f32 %v99, %v261
  %v263 = vpop.f32.mrf.mxu0
  %264 = vdwg.mxu0
  %265 = vmatpush.bf16.msra.mxu0 0
  %266 = vmatpush.bf16.msra.mxu0 0
  %267 = vmatpush.bf16.msra.mxu0 0
  %268 = vmatpush.bf16.msra.mxu0 0
  %269 = vmatpush.bf16.msra.mxu0 %v230
  %270 = vmatpush.bf16.msra.mxu0 %v199
  %271 = vmatpush.bf16.msra.mxu0 %v198
  %272 = vmatpush.bf16.msra.mxu0 %v197
  %273 = vmatmul.bf16.gmra.mxu0 %v214
  %v274 = vpop.f32.mrf.mxu0
  %v275 = vadd.f32 %v242, %v274
  %v276 = vpop.f32.mrf.mxu0
  %v277 = vadd.f32 %v244, %v276
  %278 = vmatmul.bf16.gmra.mxu0 %v217
  %v279 = vpop.f32.mrf.mxu0
  %v280 = vadd.f32 %v247, %v279
  %v281 = vpop.f32.mrf.mxu0
  %v282 = vadd.f32 %v249, %v281
  %283 = vmatmul.bf16.gmra.mxu0 %v220
  %v284 = vpop.f32.mrf.mxu0
  %v285 = vadd.f32 %v252, %v284
  %v286 = vpop.f32.mrf.mxu0
  %v287 = vadd.f32 %v254, %v286
  %288 = vmatmul.bf16.gmra.mxu0 %v223
  %v289 = vpop.f32.mrf.mxu0
  %v290 = vadd.f32 %v257, %v289
  %v291 = vpop.f32.mrf.mxu0
  %v292 = vadd.f32 %v259, %v291
  %293 = vmatmul.bf16.gmra.mxu0 %v226
  %v294 = vpop.f32.mrf.mxu0
  %v295 = vadd.f32 %v262, %v294
  %v296 = vpop.f32.mrf.mxu0
  %297 = vdwg.mxu0
  %v298 = vpack.c.bf16 %v275, %v275
  %v299 = vpack.c.bf16 %v277, %v277
  %v300 = vpack.c.bf16 %v280, %v280
  %v301 = vpack.c.bf16 %v282, %v282
  %v302 = vpack.c.bf16 %v285, %v285
  %v303 = vpack.c.bf16 %v287, %v287
  %v304 = vpack.c.bf16 %v290, %v290
  %v305 = vpack.c.bf16 %v292, %v292
  %v306 = vpack.c.bf16 %v295, %v295
  %vm307 = vcmask 257024
  %308 = vst.msk [vmem:[%s3] sm:$0xf] %vm307, %v298
  %309 = vst.msk [vmem:[%s3 + $0x4] sm:$0xf] %vm307, %v299
  %310 = vst.msk [vmem:[%s3 + $0x8] sm:$0xf] %vm307, %v300
  %311 = vst.msk [vmem:[%s3 + $0xc] sm:$0xf] %vm307, %v301
  %312 = vst.msk [vmem:[%s3 + $0x10] sm:$0xf] %vm307, %v302
  %313 = vst.msk [vmem:[%s3 + $0x14] sm:$0xf] %vm307, %v303
  %314 = vst.msk [vmem:[%s3 + $0x18] sm:$0xf] %vm307, %v304
  %315 = vst.msk [vmem:[%s3 + $0x1c] sm:$0xf] %vm307, %v305
  %316 = vst.msk [vmem:[%s3 + $0x20] sm:$0xf] %vm307, %v306
  // Predicated region
  $region14: #{net_forward.17} parent=0 // pred_check
    _
  $region15: #{net_forward.17} parent=0 // pred_check_branch
    %318 = sbr.rel (0) target = $region17
  $region16: #{net_forward.17} parent=0 // pred_region
    _
  $region17: #{net_forward.17} parent=0 // pred_fallthru
    _
  // Predicated region
  $region18: #{net_forward.17} parent=0 // pred_check
    _
  $region19: #{net_forward.17} parent=0 // pred_check_branch
    %320 = sbr.rel (0) target = $region21
  $region20: #{net_forward.17} parent=0 // pred_region
    _
  $region21: #{net_forward.17} parent=0 // pred_fallthru
    _

// kernel: net_forward.18
$region0: #{net_forward.18}
  #allocation0 [shape = 'u32[]', space=smem, size = 0x4, offset = 0x4, fixed_abs, tag = 'smem constant byte address 0x4 - core index']
  #allocation1 [shape = 'u32[72,128]{1,0:T(1,128)}', space=vmem, size = 0x9000, scoped, tag = 'internal scratch']
  %s0 = inlined_call_operand.vmem [shape: bf16[24,400], index: 0, kind: input, shape index: {}]
  %s1 = inlined_call_operand.vmem [shape: bf16[400,32], index: 1, kind: input, shape index: {}]
  %s2 = inlined_call_operand.vmem [shape: f32[24,1], index: 2, kind: input, shape index: {}]
  %s3 = inlined_call_operand.vmem [shape: bf16[24,32], index: 3, kind: output, shape index: {}]
  %s4 = sld [smem:[#allocation0]]
  $region22: #{net_forward.18} parent=0
    _
  %s6 = ssub.s32 1, %s4
  %s7 = scalar_select 0, %s6, %s4
  // Predicated region
  $region2: #{net_forward.18} parent=0 // pred_check
    _
  $region3: #{net_forward.18} parent=0 // pred_check_branch
    %9 = sbr.rel (0) target = $region5
  $region4: #{net_forward.18} parent=0 // pred_region
    _
  $region5: #{net_forward.18} parent=0 // pred_fallthru
    _
  // Predicated region
  $region6: #{net_forward.18} parent=0 // pred_check
    _
  $region7: #{net_forward.18} parent=0 // pred_check_branch
    %11 = sbr.rel (0) target = $region9
  $region8: #{net_forward.18} parent=0 // pred_region
    _
  $region9: #{net_forward.18} parent=0 // pred_fallthru
    _
  // Predicated region
  $region10: #{net_forward.18} parent=0 // pred_check
    _
  $region11: #{net_forward.18} parent=0 // pred_check_branch
    %13 = sbr.rel (0) target = $region13
  $region12: #{net_forward.18} parent=0 // pred_region
    _
  $region13: #{net_forward.18} parent=0 // pred_fallthru
    _
  %v15 = vld [vmem:[%s0] sm:$0xff]
  %v16 = vld [vmem:[%s0 + $0x8] sm:$0xff]
  %v17 = vld [vmem:[%s0 + $0x10] sm:$0xff]
  %v18 = vld [vmem:[%s0 + $0x18] sm:$0xff]
  %v19 = vld [vmem:[%s0 + $0x20] sm:$0xff]
  %v20 = vld [vmem:[%s0 + $0x28] sm:$0xff]
  %v21 = vld [vmem:[%s1] sm:$0xf]
  %v22 = vld [vmem:[%s1 + $0x4] sm:$0xf]
  %v23 = vld [vmem:[%s1 + $0x8] sm:$0xf]
  %v24 = vld [vmem:[%s1 + $0xc] sm:$0xf]
  %v25 = vld [vmem:[%s1 + $0x10] sm:$0xf]
  %v26 = vld [vmem:[%s1 + $0x14] sm:$0xf]
  %v27 = vld [vmem:[%s1 + $0x18] sm:$0xf]
  %v28 = vld [vmem:[%s1 + $0x1c] sm:$0xf]
  %v29 = vld [vmem:[%s1 + $0x20] sm:$0xf]
  %v30 = vld [vmem:[%s1 + $0x24] sm:$0xf]
  %v31 = vld [vmem:[%s1 + $0x28] sm:$0xf]
  %v32 = vld [vmem:[%s1 + $0x2c] sm:$0xf]
  %v33 = vld [vmem:[%s1 + $0x30] sm:$0xf]
  %v34 = vld [vmem:[%s1 + $0x34] sm:$0xf]
  %v35 = vld [vmem:[%s1 + $0x38] sm:$0xf]
  %v36 = vld [vmem:[%s1 + $0x3c] sm:$0xf]
  %v37 = vld [vmem:[%s1 + $0x40] sm:$0xf]
  %v38 = vld [vmem:[%s1 + $0x44] sm:$0xf]
  %v39 = vld [vmem:[%s1 + $0x48] sm:$0xf]
  %v40 = vld [vmem:[%s1 + $0x4c] sm:$0xf]
  %v41 = vld [vmem:[%s1 + $0x50] sm:$0xf]
  %v42 = vld [vmem:[%s1 + $0x54] sm:$0xf]
  %v43 = vld [vmem:[%s1 + $0x58] sm:$0xf]
  %v44 = vld [vmem:[%s1 + $0x5c] sm:$0xf]
  %v45 = vld [vmem:[%s1 + $0x60] sm:$0xf]
  %v46 = vld [vmem:[%s1 + $0x64] sm:$0xf]
  %v47 = vld [vmem:[%s1 + $0x68] sm:$0xf]
  %v48 = vld [vmem:[%s1 + $0x6c] sm:$0xf]
  %v49 = vld [vmem:[%s1 + $0x70] sm:$0xf]
  %v50 = vld [vmem:[%s1 + $0x74] sm:$0xf]
  %v51 = vld [vmem:[%s1 + $0x78] sm:$0xf]
  %v52 = vld [vmem:[%s1 + $0x7c] sm:$0xf]
  %v53 = vld [vmem:[%s1 + $0x80] sm:$0xf]
  %v54 = vld [vmem:[%s1 + $0x84] sm:$0xf]
  %v55 = vld [vmem:[%s1 + $0x88] sm:$0xf]
  %v56 = vld [vmem:[%s1 + $0x8c] sm:$0xf]
  %v57 = vld [vmem:[%s1 + $0x90] sm:$0xf]
  %v58 = vld [vmem:[%s1 + $0x94] sm:$0xf]
  %v59 = vld [vmem:[%s1 + $0x98] sm:$0xf]
  %v60 = vld [vmem:[%s1 + $0x9c] sm:$0xf]
  %v61 = vld [vmem:[%s1 + $0xa0] sm:$0xf]
  %v62 = vld [vmem:[%s1 + $0xa4] sm:$0xf]
  %v63 = vld [vmem:[%s1 + $0xa8] sm:$0xf]
  %v64 = vld [vmem:[%s1 + $0xac] sm:$0xf]
  %v65 = vld [vmem:[%s1 + $0xb0] sm:$0xf]
  %v66 = vld [vmem:[%s1 + $0xb4] sm:$0xf]
  %v67 = vld [vmem:[%s1 + $0xb8] sm:$0xf]
  %v68 = vld [vmem:[%s1 + $0xbc] sm:$0xf]
  %v69 = vld [vmem:[%s1 + $0xc0] sm:$0xf]
  %v70 = vld [vmem:[%s1 + $0xc4] sm:$0xf]
  %v71 = vld [vmem:[%s2] sm:$0xff]
  %v72 = vld [vmem:[%s2 + $0x8] sm:$0xff]
  %v73 = vld [vmem:[%s2 + $0x10] sm:$0xff]
  %75 = vset.pattern.permute.xlu0 0
  %76 = vperm.xlu0 %75, %v71
  %v77 = vpop.permute.xlu0 %76
  %80 = vset.pattern.permute.xlu0 0
  %81 = vperm.xlu0 %80, %v72
  %v82 = vpop.permute.xlu0 %81
  %85 = vset.pattern.permute.xlu0 0
  %86 = vperm.xlu0 %85, %v73
  %v87 = vpop.permute.xlu0 %86
  %v95 = vunpack.c.l.b16 %v15
  %v96 = vunpack.c.h.b16 %v15
  %v97 = vunpack.c.l.b16 %v16
  %v98 = vunpack.c.h.b16 %v16
  %v99 = vunpack.c.l.b16 %v17
  %v100 = vunpack.c.h.b16 %v17
  %v101 = vunpack.c.l.b16 %v18
  %v102 = vunpack.c.h.b16 %v18
  %v103 = vunpack.c.l.b16 %v19
  %v104 = vunpack.c.h.b16 %v19
  %v105 = vunpack.c.l.b16 %v20
  %v106 = vunpack.c.h.b16 %v20
  %v107 = vpack.c.b16 %v99, %v95
  %v108 = vpack.c.b16 %v100, %v96
  %v109 = vpack.c.b16 %v101, %v97
  %v110 = vpack.c.b16 %v102, %v98
  %v111 = vpack.c.b16 %v103, %v103
  %v112 = vpack.c.b16 %v104, %v104
  %v113 = vpack.c.b16 %v105, %v105
  %v114 = vpack.c.b16 %v106, %v106
  %v171 = vunpack.c.l.b16 %v21
  %v172 = vunpack.c.l.b16 %v22
  %v173 = vunpack.c.l.b16 %v23
  %v174 = vunpack.c.l.b16 %v24
  %v175 = vunpack.c.l.b16 %v25
  %v176 = vunpack.c.l.b16 %v26
  %v177 = vunpack.c.l.b16 %v27
  %v178 = vunpack.c.l.b16 %v28
  %v179 = vunpack.c.l.b16 %v29
  %v180 = vunpack.c.l.b16 %v30
  %v181 = vunpack.c.l.b16 %v31
  %v182 = vunpack.c.l.b16 %v32
  %v183 = vunpack.c.l.b16 %v33
  %v184 = vunpack.c.l.b16 %v34
  %v185 = vunpack.c.l.b16 %v35
  %v186 = vunpack.c.l.b16 %v36
  %v187 = vunpack.c.l.b16 %v37
  %v188 = vunpack.c.l.b16 %v38
  %v189 = vunpack.c.l.b16 %v39
  %v190 = vunpack.c.l.b16 %v40
  %v191 = vunpack.c.l.b16 %v41
  %v192 = vunpack.c.l.b16 %v42
  %v193 = vunpack.c.l.b16 %v43
  %v194 = vunpack.c.l.b16 %v44
  %v195 = vunpack.c.l.b16 %v45
  %v196 = vunpack.c.l.b16 %v46
  %v197 = vunpack.c.l.b16 %v47
  %v198 = vunpack.c.l.b16 %v48
  %v199 = vunpack.c.l.b16 %v49
  %v200 = vunpack.c.l.b16 %v50
  %v201 = vunpack.c.l.b16 %v51
  %v202 = vunpack.c.l.b16 %v52
  %v203 = vunpack.c.l.b16 %v53
  %v204 = vunpack.c.l.b16 %v54
  %v205 = vunpack.c.l.b16 %v55
  %v206 = vunpack.c.l.b16 %v56
  %v207 = vunpack.c.l.b16 %v57
  %v208 = vunpack.c.l.b16 %v58
  %v209 = vunpack.c.l.b16 %v59
  %v210 = vunpack.c.l.b16 %v60
  %v211 = vunpack.c.l.b16 %v61
  %v212 = vunpack.c.l.b16 %v62
  %v213 = vunpack.c.l.b16 %v63
  %v214 = vunpack.c.l.b16 %v64
  %v215 = vunpack.c.l.b16 %v65
  %v216 = vunpack.c.l.b16 %v66
  %v217 = vunpack.c.l.b16 %v67
  %v218 = vunpack.c.l.b16 %v68
  %v219 = vunpack.c.l.b16 %v69
  %v220 = vunpack.c.l.b16 %v70
  %v221 = vpack.c.b16 %v172, %v171
  %v222 = vpack.c.b16 %v174, %v173
  %v223 = vpack.c.b16 %v176, %v175
  %v224 = vpack.c.b16 %v178, %v177
  %v225 = vpack.c.b16 %v180, %v179
  %v226 = vpack.c.b16 %v182, %v181
  %v227 = vpack.c.b16 %v184, %v183
  %v228 = vpack.c.b16 %v186, %v185
  %v229 = vpack.c.b16 %v188, %v187
  %v230 = vpack.c.b16 %v190, %v189
  %v231 = vpack.c.b16 %v192, %v191
  %v232 = vpack.c.b16 %v194, %v193
  %v233 = vpack.c.b16 %v196, %v195
  %v234 = vpack.c.b16 %v198, %v197
  %v235 = vpack.c.b16 %v200, %v199
  %v236 = vpack.c.b16 %v202, %v201
  %v237 = vpack.c.b16 %v204, %v203
  %v238 = vpack.c.b16 %v206, %v205
  %v239 = vpack.c.b16 %v208, %v207
  %v240 = vpack.c.b16 %v210, %v209
  %v241 = vpack.c.b16 %v212, %v211
  %v242 = vpack.c.b16 %v214, %v213
  %v243 = vpack.c.b16 %v216, %v215
  %v244 = vpack.c.b16 %v218, %v217
  %v245 = vpack.c.b16 %v220, %v219
  %vm271 = vcmask 130048
  %v273 = vsel %vm271, %v110, 0
  %v276 = vsel %vm271, %v114, 0
  %278 = vmatpush.bf16.msra.mxu0 %v228
  %279 = vmatpush.bf16.msra.mxu0 %v227
  %280 = vmatpush.bf16.msra.mxu0 %v226
  %281 = vmatpush.bf16.msra.mxu0 %v225
  %282 = vmatpush.bf16.msra.mxu0 %v224
  %283 = vmatpush.bf16.msra.mxu0 %v223
  %284 = vmatpush.bf16.msra.mxu0 %v222
  %285 = vmatpush.bf16.msra.mxu0 %v221
  %286 = vmatmul.bf16.gmra.mxu0 %v107
  %v287 = vpop.f32.mrf.mxu0
  %v288 = vadd.f32 %v77, %v287
  %v289 = vpop.f32.mrf.mxu0
  %v290 = vadd.f32 %v82, %v289
  %291 = vmatmul.bf16.gmra.mxu0 %v111
  %v292 = vpop.f32.mrf.mxu0
  %v293 = vadd.f32 %v87, %v292
  %v294 = vpop.f32.mrf.mxu0
  %295 = vdwg.mxu0
  %296 = vmatpush.bf16.msra.mxu0 %v236
  %297 = vmatpush.bf16.msra.mxu0 %v235
  %298 = vmatpush.bf16.msra.mxu0 %v234
  %299 = vmatpush.bf16.msra.mxu0 %v233
  %300 = vmatpush.bf16.msra.mxu0 %v232
  %301 = vmatpush.bf16.msra.mxu0 %v231
  %302 = vmatpush.bf16.msra.mxu0 %v230
  %303 = vmatpush.bf16.msra.mxu0 %v229
  %304 = vmatmul.bf16.gmra.mxu0 %v108
  %v305 = vpop.f32.mrf.mxu0
  %v306 = vadd.f32 %v288, %v305
  %v307 = vpop.f32.mrf.mxu0
  %v308 = vadd.f32 %v290, %v307
  %309 = vmatmul.bf16.gmra.mxu0 %v112
  %v310 = vpop.f32.mrf.mxu0
  %v311 = vadd.f32 %v293, %v310
  %v312 = vpop.f32.mrf.mxu0
  %313 = vdwg.mxu0
  %314 = vmatpush.bf16.msra.mxu0 %v244
  %315 = vmatpush.bf16.msra.mxu0 %v243
  %316 = vmatpush.bf16.msra.mxu0 %v242
  %317 = vmatpush.bf16.msra.mxu0 %v241
  %318 = vmatpush.bf16.msra.mxu0 %v240
  %319 = vmatpush.bf16.msra.mxu0 %v239
  %320 = vmatpush.bf16.msra.mxu0 %v238
  %321 = vmatpush.bf16.msra.mxu0 %v237
  %322 = vmatmul.bf16.gmra.mxu0 %v109
  %v323 = vpop.f32.mrf.mxu0
  %v324 = vadd.f32 %v306, %v323
  %v325 = vpop.f32.mrf.mxu0
  %v326 = vadd.f32 %v308, %v325
  %327 = vmatmul.bf16.gmra.mxu0 %v113
  %v328 = vpop.f32.mrf.mxu0
  %v329 = vadd.f32 %v311, %v328
  %v330 = vpop.f32.mrf.mxu0
  %331 = vdwg.mxu0
  %332 = vmatpush.bf16.msra.mxu0 0
  %333 = vmatpush.bf16.msra.mxu0 0
  %334 = vmatpush.bf16.msra.mxu0 0
  %335 = vmatpush.bf16.msra.mxu0 0
  %336 = vmatpush.bf16.msra.mxu0 0
  %337 = vmatpush.bf16.msra.mxu0 0
  %338 = vmatpush.bf16.msra.mxu0 0
  %339 = vmatpush.bf16.msra.mxu0 %v245
  %340 = vmatmul.bf16.gmra.mxu0 %v273
  %v341 = vpop.f32.mrf.mxu0
  %v342 = vadd.f32 %v324, %v341
  %v343 = vpop.f32.mrf.mxu0
  %v344 = vadd.f32 %v326, %v343
  %345 = vmatmul.bf16.gmra.mxu0 %v276
  %v346 = vpop.f32.mrf.mxu0
  %v347 = vadd.f32 %v329, %v346
  %v348 = vpop.f32.mrf.mxu0
  %349 = vdwg.mxu0
  %v350 = vpack.c.bf16 %v342, %v342
  %v351 = vpack.c.bf16 %v344, %v344
  %v352 = vpack.c.bf16 %v347, %v347
  %vm353 = vcmask 257024
  %354 = vst.msk [vmem:[%s3] sm:$0xf] %vm353, %v350
  %355 = vst.msk [vmem:[%s3 + $0x4] sm:$0xf] %vm353, %v351
  %356 = vst.msk [vmem:[%s3 + $0x8] sm:$0xf] %vm353, %v352
  // Predicated region
  $region14: #{net_forward.18} parent=0 // pred_check
    _
  $region15: #{net_forward.18} parent=0 // pred_check_branch
    %358 = sbr.rel (0) target = $region17
  $region16: #{net_forward.18} parent=0 // pred_region
    _
  $region17: #{net_forward.18} parent=0 // pred_fallthru
    _
  // Predicated region
  $region18: #{net_forward.18} parent=0 // pred_check
    _
  $region19: #{net_forward.18} parent=0 // pred_check_branch
    %360 = sbr.rel (0) target = $region21
  $region20: #{net_forward.18} parent=0 // pred_region
    _
  $region21: #{net_forward.18} parent=0 // pred_fallthru
    _

// kernel: net_forward.19
$region0: #{net_forward.19}
  #allocation0 [shape = 'u32[]', space=smem, size = 0x4, offset = 0x4, fixed_abs, tag = 'smem constant byte address 0x4 - core index']
  #allocation1 [shape = 'u32[72,128]{1,0:T(1,128)}', space=vmem, size = 0x9000, scoped, tag = 'internal scratch']
  %s0 = inlined_call_operand.vmem [shape: bf16[24,144], index: 0, kind: input, shape index: {}]
  %s1 = inlined_call_operand.vmem [shape: bf16[144,32], index: 1, kind: input, shape index: {}]
  %s2 = inlined_call_operand.vmem [shape: f32[24,1], index: 2, kind: input, shape index: {}]
  %s3 = inlined_call_operand.vmem [shape: bf16[24,32], index: 3, kind: output, shape index: {}]
  %s4 = sld [smem:[#allocation0]]
  $region22: #{net_forward.19} parent=0
    _
  %s6 = ssub.s32 1, %s4
  %s7 = scalar_select 0, %s6, %s4
  // Predicated region
  $region2: #{net_forward.19} parent=0 // pred_check
    _
  $region3: #{net_forward.19} parent=0 // pred_check_branch
    %9 = sbr.rel (0) target = $region5
  $region4: #{net_forward.19} parent=0 // pred_region
    _
  $region5: #{net_forward.19} parent=0 // pred_fallthru
    _
  // Predicated region
  $region6: #{net_forward.19} parent=0 // pred_check
    _
  $region7: #{net_forward.19} parent=0 // pred_check_branch
    %11 = sbr.rel (0) target = $region9
  $region8: #{net_forward.19} parent=0 // pred_region
    _
  $region9: #{net_forward.19} parent=0 // pred_fallthru
    _
  // Predicated region
  $region10: #{net_forward.19} parent=0 // pred_check
    _
  $region11: #{net_forward.19} parent=0 // pred_check_branch
    %13 = sbr.rel (0) target = $region13
  $region12: #{net_forward.19} parent=0 // pred_region
    _
  $region13: #{net_forward.19} parent=0 // pred_fallthru
    _
  %v15 = vld [vmem:[%s0] sm:$0xff]
  %v16 = vld [vmem:[%s0 + $0x8] sm:$0xff]
  %v17 = vld [vmem:[%s0 + $0x10] sm:$0xff]
  %v18 = vld [vmem:[%s1] sm:$0xf]
  %v19 = vld [vmem:[%s1 + $0x4] sm:$0xf]
  %v20 = vld [vmem:[%s1 + $0x8] sm:$0xf]
  %v21 = vld [vmem:[%s1 + $0xc] sm:$0xf]
  %v22 = vld [vmem:[%s1 + $0x10] sm:$0xf]
  %v23 = vld [vmem:[%s1 + $0x14] sm:$0xf]
  %v24 = vld [vmem:[%s1 + $0x18] sm:$0xf]
  %v25 = vld [vmem:[%s1 + $0x1c] sm:$0xf]
  %v26 = vld [vmem:[%s1 + $0x20] sm:$0xf]
  %v27 = vld [vmem:[%s1 + $0x24] sm:$0xf]
  %v28 = vld [vmem:[%s1 + $0x28] sm:$0xf]
  %v29 = vld [vmem:[%s1 + $0x2c] sm:$0xf]
  %v30 = vld [vmem:[%s1 + $0x30] sm:$0xf]
  %v31 = vld [vmem:[%s1 + $0x34] sm:$0xf]
  %v32 = vld [vmem:[%s1 + $0x38] sm:$0xf]
  %v33 = vld [vmem:[%s1 + $0x3c] sm:$0xf]
  %v34 = vld [vmem:[%s1 + $0x40] sm:$0xf]
  %v35 = vld [vmem:[%s1 + $0x44] sm:$0xf]
  %v36 = vld [vmem:[%s2] sm:$0xff]
  %v37 = vld [vmem:[%s2 + $0x8] sm:$0xff]
  %v38 = vld [vmem:[%s2 + $0x10] sm:$0xff]
  %40 = vset.pattern.permute.xlu0 0
  %41 = vperm.xlu0 %40, %v36
  %v42 = vpop.permute.xlu0 %41
  %45 = vset.pattern.permute.xlu0 0
  %46 = vperm.xlu0 %45, %v37
  %v47 = vpop.permute.xlu0 %46
  %50 = vset.pattern.permute.xlu0 0
  %51 = vperm.xlu0 %50, %v38
  %v52 = vpop.permute.xlu0 %51
  %v57 = vunpack.c.l.b16 %v15
  %v58 = vunpack.c.h.b16 %v15
  %v59 = vunpack.c.l.b16 %v16
  %v60 = vunpack.c.h.b16 %v16
  %v61 = vunpack.c.l.b16 %v17
  %v62 = vunpack.c.h.b16 %v17
  %v63 = vpack.c.b16 %v59, %v57
  %v64 = vpack.c.b16 %v60, %v58
  %v65 = vpack.c.b16 %v61, %v61
  %v66 = vpack.c.b16 %v62, %v62
  %v87 = vunpack.c.l.b16 %v18
  %v88 = vunpack.c.l.b16 %v19
  %v89 = vunpack.c.l.b16 %v20
  %v90 = vunpack.c.l.b16 %v21
  %v91 = vunpack.c.l.b16 %v22
  %v92 = vunpack.c.l.b16 %v23
  %v93 = vunpack.c.l.b16 %v24
  %v94 = vunpack.c.l.b16 %v25
  %v95 = vunpack.c.l.b16 %v26
  %v96 = vunpack.c.l.b16 %v27
  %v97 = vunpack.c.l.b16 %v28
  %v98 = vunpack.c.l.b16 %v29
  %v99 = vunpack.c.l.b16 %v30
  %v100 = vunpack.c.l.b16 %v31
  %v101 = vunpack.c.l.b16 %v32
  %v102 = vunpack.c.l.b16 %v33
  %v103 = vunpack.c.l.b16 %v34
  %v104 = vunpack.c.l.b16 %v35
  %v105 = vpack.c.b16 %v88, %v87
  %v106 = vpack.c.b16 %v90, %v89
  %v107 = vpack.c.b16 %v92, %v91
  %v108 = vpack.c.b16 %v94, %v93
  %v109 = vpack.c.b16 %v96, %v95
  %v110 = vpack.c.b16 %v98, %v97
  %v111 = vpack.c.b16 %v100, %v99
  %v112 = vpack.c.b16 %v102, %v101
  %v113 = vpack.c.b16 %v104, %v103
  %vm123 = vcmask 130048
  %v125 = vsel %vm123, %v64, 0
  %v128 = vsel %vm123, %v66, 0
  %130 = vmatpush.bf16.msra.mxu0 %v112
  %131 = vmatpush.bf16.msra.mxu0 %v111
  %132 = vmatpush.bf16.msra.mxu0 %v110
  %133 = vmatpush.bf16.msra.mxu0 %v109
  %134 = vmatpush.bf16.msra.mxu0 %v108
  %135 = vmatpush.bf16.msra.mxu0 %v107
  %136 = vmatpush.bf16.msra.mxu0 %v106
  %137 = vmatpush.bf16.msra.mxu0 %v105
  %138 = vmatmul.bf16.gmra.mxu0 %v63
  %v139 = vpop.f32.mrf.mxu0
  %v140 = vadd.f32 %v42, %v139
  %v141 = vpop.f32.mrf.mxu0
  %v142 = vadd.f32 %v47, %v141
  %143 = vmatmul.bf16.gmra.mxu0 %v65
  %v144 = vpop.f32.mrf.mxu0
  %v145 = vadd.f32 %v52, %v144
  %v146 = vpop.f32.mrf.mxu0
  %147 = vdwg.mxu0
  %148 = vmatpush.bf16.msra.mxu0 0
  %149 = vmatpush.bf16.msra.mxu0 0
  %150 = vmatpush.bf16.msra.mxu0 0
  %151 = vmatpush.bf16.msra.mxu0 0
  %152 = vmatpush.bf16.msra.mxu0 0
  %153 = vmatpush.bf16.msra.mxu0 0
  %154 = vmatpush.bf16.msra.mxu0 0
  %155 = vmatpush.bf16.msra.mxu0 %v113
  %156 = vmatmul.bf16.gmra.mxu0 %v125
  %v157 = vpop.f32.mrf.mxu0
  %v158 = vadd.f32 %v140, %v157
  %v159 = vpop.f32.mrf.mxu0
  %v160 = vadd.f32 %v142, %v159
  %161 = vmatmul.bf16.gmra.mxu0 %v128
  %v162 = vpop.f32.mrf.mxu0
  %v163 = vadd.f32 %v145, %v162
  %v164 = vpop.f32.mrf.mxu0
  %165 = vdwg.mxu0
  %v166 = vpack.c.bf16 %v158, %v158
  %v167 = vpack.c.bf16 %v160, %v160
  %v168 = vpack.c.bf16 %v163, %v163
  %vm169 = vcmask 257024
  %170 = vst.msk [vmem:[%s3] sm:$0xf] %vm169, %v166
  %171 = vst.msk [vmem:[%s3 + $0x4] sm:$0xf] %vm169, %v167
  %172 = vst.msk [vmem:[%s3 + $0x8] sm:$0xf] %vm169, %v168
  // Predicated region
  $region14: #{net_forward.19} parent=0 // pred_check
    _
  $region15: #{net_forward.19} parent=0 // pred_check_branch
    %174 = sbr.rel (0) target = $region17
  $region16: #{net_forward.19} parent=0 // pred_region
    _
  $region17: #{net_forward.19} parent=0 // pred_fallthru
    _
  // Predicated region
  $region18: #{net_forward.19} parent=0 // pred_check
    _
  $region19: #{net_forward.19} parent=0 // pred_check_branch
    %176 = sbr.rel (0) target = $region21
  $region20: #{net_forward.19} parent=0 // pred_region
    _
  $region21: #{net_forward.19} parent=0 // pred_fallthru
    _

// kernel: net_forward.20
$region0: #{net_forward.20}
  #allocation0 [shape = 'u32[]', space=smem, size = 0x4, offset = 0x4, fixed_abs, tag = 'smem constant byte address 0x4 - core index']
  #allocation1 [shape = 'u32[72,128]{1,0:T(1,128)}', space=vmem, size = 0x9000, scoped, tag = 'internal scratch']
  %s0 = inlined_call_operand.vmem [shape: bf16[24,216], index: 0, kind: input, shape index: {}]
  %s1 = inlined_call_operand.vmem [shape: bf16[216,32], index: 1, kind: input, shape index: {}]
  %s2 = inlined_call_operand.vmem [shape: f32[24,1], index: 2, kind: input, shape index: {}]
  %s3 = inlined_call_operand.vmem [shape: bf16[24,32], index: 3, kind: output, shape index: {}]
  %s4 = sld [smem:[#allocation0]]
  $region22: #{net_forward.20} parent=0
    _
  %s6 = ssub.s32 1, %s4
  %s7 = scalar_select 0, %s6, %s4
  // Predicated region
  $region2: #{net_forward.20} parent=0 // pred_check
    _
  $region3: #{net_forward.20} parent=0 // pred_check_branch
    %9 = sbr.rel (0) target = $region5
  $region4: #{net_forward.20} parent=0 // pred_region
    _
  $region5: #{net_forward.20} parent=0 // pred_fallthru
    _
  // Predicated region
  $region6: #{net_forward.20} parent=0 // pred_check
    _
  $region7: #{net_forward.20} parent=0 // pred_check_branch
    %11 = sbr.rel (0) target = $region9
  $region8: #{net_forward.20} parent=0 // pred_region
    _
  $region9: #{net_forward.20} parent=0 // pred_fallthru
    _
  // Predicated region
  $region10: #{net_forward.20} parent=0 // pred_check
    _
  $region11: #{net_forward.20} parent=0 // pred_check_branch
    %13 = sbr.rel (0) target = $region13
  $region12: #{net_forward.20} parent=0 // pred_region
    _
  $region13: #{net_forward.20} parent=0 // pred_fallthru
    _
  %v15 = vld [vmem:[%s0] sm:$0xff]
  %v16 = vld [vmem:[%s0 + $0x8] sm:$0xff]
  %v17 = vld [vmem:[%s0 + $0x10] sm:$0xff]
  %v18 = vld [vmem:[%s1] sm:$0xf]
  %v19 = vld [vmem:[%s1 + $0x4] sm:$0xf]
  %v20 = vld [vmem:[%s1 + $0x8] sm:$0xf]
  %v21 = vld [vmem:[%s1 + $0xc] sm:$0xf]
  %v22 = vld [vmem:[%s1 + $0x10] sm:$0xf]
  %v23 = vld [vmem:[%s1 + $0x14] sm:$0xf]
  %v24 = vld [vmem:[%s1 + $0x18] sm:$0xf]
  %v25 = vld [vmem:[%s1 + $0x1c] sm:$0xf]
  %v26 = vld [vmem:[%s1 + $0x20] sm:$0xf]
  %v27 = vld [vmem:[%s1 + $0x24] sm:$0xf]
  %v28 = vld [vmem:[%s1 + $0x28] sm:$0xf]
  %v29 = vld [vmem:[%s1 + $0x2c] sm:$0xf]
  %v30 = vld [vmem:[%s1 + $0x30] sm:$0xf]
  %v31 = vld [vmem:[%s1 + $0x34] sm:$0xf]
  %v32 = vld [vmem:[%s1 + $0x38] sm:$0xf]
  %v33 = vld [vmem:[%s1 + $0x3c] sm:$0xf]
  %v34 = vld [vmem:[%s1 + $0x40] sm:$0xf]
  %v35 = vld [vmem:[%s1 + $0x44] sm:$0xf]
  %v36 = vld [vmem:[%s1 + $0x48] sm:$0xf]
  %v37 = vld [vmem:[%s1 + $0x4c] sm:$0xf]
  %v38 = vld [vmem:[%s1 + $0x50] sm:$0xf]
  %v39 = vld [vmem:[%s1 + $0x54] sm:$0xf]
  %v40 = vld [vmem:[%s1 + $0x58] sm:$0xf]
  %v41 = vld [vmem:[%s1 + $0x5c] sm:$0xf]
  %v42 = vld [vmem:[%s1 + $0x60] sm:$0xf]
  %v43 = vld [vmem:[%s1 + $0x64] sm:$0xf]
  %v44 = vld [vmem:[%s1 + $0x68] sm:$0xf]
  %v45 = vld [vmem:[%s2] sm:$0xff]
  %v46 = vld [vmem:[%s2 + $0x8] sm:$0xff]
  %v47 = vld [vmem:[%s2 + $0x10] sm:$0xff]
  %49 = vset.pattern.permute.xlu0 0
  %50 = vperm.xlu0 %49, %v45
  %v51 = vpop.permute.xlu0 %50
  %54 = vset.pattern.permute.xlu0 0
  %55 = vperm.xlu0 %54, %v46
  %v56 = vpop.permute.xlu0 %55
  %59 = vset.pattern.permute.xlu0 0
  %60 = vperm.xlu0 %59, %v47
  %v61 = vpop.permute.xlu0 %60
  %v66 = vunpack.c.l.b16 %v15
  %v67 = vunpack.c.h.b16 %v15
  %v68 = vunpack.c.l.b16 %v16
  %v69 = vunpack.c.h.b16 %v16
  %v70 = vunpack.c.l.b16 %v17
  %v71 = vunpack.c.h.b16 %v17
  %v72 = vpack.c.b16 %v68, %v66
  %v73 = vpack.c.b16 %v69, %v67
  %v74 = vpack.c.b16 %v70, %v70
  %v75 = vpack.c.b16 %v71, %v71
  %v105 = vunpack.c.l.b16 %v18
  %v106 = vunpack.c.l.b16 %v19
  %v107 = vunpack.c.l.b16 %v20
  %v108 = vunpack.c.l.b16 %v21
  %v109 = vunpack.c.l.b16 %v22
  %v110 = vunpack.c.l.b16 %v23
  %v111 = vunpack.c.l.b16 %v24
  %v112 = vunpack.c.l.b16 %v25
  %v113 = vunpack.c.l.b16 %v26
  %v114 = vunpack.c.l.b16 %v27
  %v115 = vunpack.c.l.b16 %v28
  %v116 = vunpack.c.l.b16 %v29
  %v117 = vunpack.c.l.b16 %v30
  %v118 = vunpack.c.l.b16 %v31
  %v119 = vunpack.c.l.b16 %v32
  %v120 = vunpack.c.l.b16 %v33
  %v121 = vunpack.c.l.b16 %v34
  %v122 = vunpack.c.l.b16 %v35
  %v123 = vunpack.c.l.b16 %v36
  %v124 = vunpack.c.l.b16 %v37
  %v125 = vunpack.c.l.b16 %v38
  %v126 = vunpack.c.l.b16 %v39
  %v127 = vunpack.c.l.b16 %v40
  %v128 = vunpack.c.l.b16 %v41
  %v129 = vunpack.c.l.b16 %v42
  %v130 = vunpack.c.l.b16 %v43
  %v131 = vunpack.c.l.b16 %v44
  %v132 = vpack.c.b16 %v106, %v105
  %v133 = vpack.c.b16 %v108, %v107
  %v134 = vpack.c.b16 %v110, %v109
  %v135 = vpack.c.b16 %v112, %v111
  %v136 = vpack.c.b16 %v114, %v113
  %v137 = vpack.c.b16 %v116, %v115
  %v138 = vpack.c.b16 %v118, %v117
  %v139 = vpack.c.b16 %v120, %v119
  %v140 = vpack.c.b16 %v122, %v121
  %v141 = vpack.c.b16 %v124, %v123
  %v142 = vpack.c.b16 %v126, %v125
  %v143 = vpack.c.b16 %v128, %v127
  %v144 = vpack.c.b16 %v130, %v129
  %v145 = vpack.c.b16 %v131, %v131
  %vm159 = vcmask 719872
  %v161 = vsel %vm159, %v73, 0
  %v164 = vsel %vm159, %v75, 0
  %vm166 = vcmask 1043456
  %v168 = vsel %vm166, %v145, 0
  %170 = vmatpush.bf16.msra.mxu0 %v139
  %171 = vmatpush.bf16.msra.mxu0 %v138
  %172 = vmatpush.bf16.msra.mxu0 %v137
  %173 = vmatpush.bf16.msra.mxu0 %v136
  %174 = vmatpush.bf16.msra.mxu0 %v135
  %175 = vmatpush.bf16.msra.mxu0 %v134
  %176 = vmatpush.bf16.msra.mxu0 %v133
  %177 = vmatpush.bf16.msra.mxu0 %v132
  %178 = vmatmul.bf16.gmra.mxu0 %v72
  %v179 = vpop.f32.mrf.mxu0
  %v180 = vadd.f32 %v51, %v179
  %v181 = vpop.f32.mrf.mxu0
  %v182 = vadd.f32 %v56, %v181
  %183 = vmatmul.bf16.gmra.mxu0 %v74
  %v184 = vpop.f32.mrf.mxu0
  %v185 = vadd.f32 %v61, %v184
  %v186 = vpop.f32.mrf.mxu0
  %187 = vdwg.mxu0
  %188 = vmatpush.bf16.msra.mxu0 0
  %189 = vmatpush.bf16.msra.mxu0 0
  %190 = vmatpush.bf16.msra.mxu0 %v168
  %191 = vmatpush.bf16.msra.mxu0 %v144
  %192 = vmatpush.bf16.msra.mxu0 %v143
  %193 = vmatpush.bf16.msra.mxu0 %v142
  %194 = vmatpush.bf16.msra.mxu0 %v141
  %195 = vmatpush.bf16.msra.mxu0 %v140
  %196 = vmatmul.bf16.gmra.mxu0 %v161
  %v197 = vpop.f32.mrf.mxu0
  %v198 = vadd.f32 %v180, %v197
  %v199 = vpop.f32.mrf.mxu0
  %v200 = vadd.f32 %v182, %v199
  %201 = vmatmul.bf16.gmra.mxu0 %v164
  %v202 = vpop.f32.mrf.mxu0
  %v203 = vadd.f32 %v185, %v202
  %v204 = vpop.f32.mrf.mxu0
  %205 = vdwg.mxu0
  %v206 = vpack.c.bf16 %v198, %v198
  %v207 = vpack.c.bf16 %v200, %v200
  %v208 = vpack.c.bf16 %v203, %v203
  %vm209 = vcmask 257024
  %210 = vst.msk [vmem:[%s3] sm:$0xf] %vm209, %v206
  %211 = vst.msk [vmem:[%s3 + $0x4] sm:$0xf] %vm209, %v207
  %212 = vst.msk [vmem:[%s3 + $0x8] sm:$0xf] %vm209, %v208
  // Predicated region
  $region14: #{net_forward.20} parent=0 // pred_check
    _
  $region15: #{net_forward.20} parent=0 // pred_check_branch
    %214 = sbr.rel (0) target = $region17
  $region16: #{net_forward.20} parent=0 // pred_region
    _
  $region17: #{net_forward.20} parent=0 // pred_fallthru
    _
  // Predicated region
  $region18: #{net_forward.20} parent=0 // pred_check
    _
  $region19: #{net_forward.20} parent=0 // pred_check_branch
    %216 = sbr.rel (0) target = $region21
  $region20: #{net_forward.20} parent=0 // pred_region
    _
  $region21: #{net_forward.20} parent=0 // pred_fallthru
    _

// kernel: net_forward.21
$region0: #{net_forward.21}
  #allocation0 [shape = 'u32[]', space=smem, size = 0x4, offset = 0x4, fixed_abs, tag = 'smem constant byte address 0x4 - core index']
  #allocation1 [shape = 'u32[72,128]{1,0:T(1,128)}', space=vmem, size = 0x9000, scoped, tag = 'internal scratch']
  %s0 = inlined_call_operand.vmem [shape: bf16[10,1408], index: 0, kind: input, shape index: {}]
  %s1 = inlined_call_operand.vmem [shape: bf16[1408,2], index: 1, kind: input, shape index: {}]
  %s2 = inlined_call_operand.vmem [shape: f32[10,1], index: 2, kind: input, shape index: {}]
  %s3 = inlined_call_operand.vmem [shape: f32[10,2], index: 3, kind: output, shape index: {}]
  %s4 = sld [smem:[#allocation0]]
  $region22: #{net_forward.21} parent=0
    _
  %s6 = ssub.s32 1, %s4
  %s7 = scalar_select 0, %s6, %s4
  // Predicated region
  $region2: #{net_forward.21} parent=0 // pred_check
    _
  $region3: #{net_forward.21} parent=0 // pred_check_branch
    %9 = sbr.rel (0) target = $region5
  $region4: #{net_forward.21} parent=0 // pred_region
    _
  $region5: #{net_forward.21} parent=0 // pred_fallthru
    _
  // Predicated region
  $region6: #{net_forward.21} parent=0 // pred_check
    _
  $region7: #{net_forward.21} parent=0 // pred_check_branch
    %11 = sbr.rel (0) target = $region9
  $region8: #{net_forward.21} parent=0 // pred_region
    _
  $region9: #{net_forward.21} parent=0 // pred_fallthru
    _
  // Predicated region
  $region10: #{net_forward.21} parent=0 // pred_check
    _
  $region11: #{net_forward.21} parent=0 // pred_check_branch
    %13 = sbr.rel (0) target = $region13
  $region12: #{net_forward.21} parent=0 // pred_region
    _
  $region13: #{net_forward.21} parent=0 // pred_fallthru
    _
  %v14 = vld [vmem:[%s0] sm:$0xff]
  %v15 = vld [vmem:[%s0 + $0x8] sm:$0xff]
  %v16 = vld [vmem:[%s0 + $0x10] sm:$0xff]
  %v17 = vld [vmem:[%s0 + $0x18] sm:$0xff]
  %v18 = vld [vmem:[%s0 + $0x20] sm:$0xff]
  %v19 = vld [vmem:[%s0 + $0x28] sm:$0xf]
  %v20 = vld [vmem:[%s0 + $0x2c] sm:$0x11]
  %v21 = vld [vmem:[%s0 + $0x34] sm:$0x11]
  %v22 = vld [vmem:[%s0 + $0x3c] sm:$0x11]
  %v23 = vld [vmem:[%s0 + $0x44] sm:$0x11]
  %v24 = vld [vmem:[%s0 + $0x4c] sm:$0x11]
  %v25 = vld [vmem:[%s0 + $0x54] sm:$0x1]
  %v26 = vld [vmem:[%s1] sm:$0xf]
  %v27 = vld [vmem:[%s1 + $0x4] sm:$0xf]
  %v28 = vld [vmem:[%s1 + $0x8] sm:$0xf]
  %v29 = vld [vmem:[%s1 + $0xc] sm:$0xf]
  %v30 = vld [vmem:[%s1 + $0x10] sm:$0xf]
  %v31 = vld [vmem:[%s1 + $0x14] sm:$0xf]
  %v32 = vld [vmem:[%s1 + $0x18] sm:$0xf]
  %v33 = vld [vmem:[%s1 + $0x1c] sm:$0xf]
  %v34 = vld [vmem:[%s1 + $0x20] sm:$0xf]
  %v35 = vld [vmem:[%s1 + $0x24] sm:$0xf]
  %v36 = vld [vmem:[%s1 + $0x28] sm:$0xf]
  %v37 = vld [vmem:[%s1 + $0x2c] sm:$0xf]
  %v38 = vld [vmem:[%s1 + $0x30] sm:$0xf]
  %v39 = vld [vmem:[%s1 + $0x34] sm:$0xf]
  %v40 = vld [vmem:[%s1 + $0x38] sm:$0xf]
  %v41 = vld [vmem:[%s1 + $0x3c] sm:$0xf]
  %v42 = vld [vmem:[%s1 + $0x40] sm:$0xf]
  %v43 = vld [vmem:[%s1 + $0x44] sm:$0xf]
  %v44 = vld [vmem:[%s1 + $0x48] sm:$0xf]
  %v45 = vld [vmem:[%s1 + $0x4c] sm:$0xf]
  %v46 = vld [vmem:[%s1 + $0x50] sm:$0xf]
  %v47 = vld [vmem:[%s1 + $0x54] sm:$0xf]
  %v48 = vld [vmem:[%s1 + $0x58] sm:$0xf]
  %v49 = vld [vmem:[%s1 + $0x5c] sm:$0xf]
  %v50 = vld [vmem:[%s1 + $0x60] sm:$0xf]
  %v51 = vld [vmem:[%s1 + $0x64] sm:$0xf]
  %v52 = vld [vmem:[%s1 + $0x68] sm:$0xf]
  %v53 = vld [vmem:[%s1 + $0x6c] sm:$0xf]
  %v54 = vld [vmem:[%s1 + $0x70] sm:$0xf]
  %v55 = vld [vmem:[%s1 + $0x74] sm:$0xf]
  %v56 = vld [vmem:[%s1 + $0x78] sm:$0xf]
  %v57 = vld [vmem:[%s1 + $0x7c] sm:$0xf]
  %v58 = vld [vmem:[%s1 + $0x80] sm:$0xf]
  %v59 = vld [vmem:[%s1 + $0x84] sm:$0xf]
  %v60 = vld [vmem:[%s1 + $0x88] sm:$0xf]
  %v61 = vld [vmem:[%s1 + $0x8c] sm:$0xf]
  %v62 = vld [vmem:[%s1 + $0x90] sm:$0xf]
  %v63 = vld [vmem:[%s1 + $0x94] sm:$0xf]
  %v64 = vld [vmem:[%s1 + $0x98] sm:$0xf]
  %v65 = vld [vmem:[%s1 + $0x9c] sm:$0xf]
  %v66 = vld [vmem:[%s1 + $0xa0] sm:$0xf]
  %v67 = vld [vmem:[%s1 + $0xa4] sm:$0xf]
  %v68 = vld [vmem:[%s1 + $0xa8] sm:$0xf]
  %v69 = vld [vmem:[%s1 + $0xac] sm:$0xf]
  %v70 = vld [vmem:[%s1 + $0xb0] sm:$0xf]
  %v71 = vld [vmem:[%s1 + $0xb4] sm:$0xf]
  %v72 = vld [vmem:[%s1 + $0xb8] sm:$0xf]
  %v73 = vld [vmem:[%s1 + $0xbc] sm:$0xf]
  %v74 = vld [vmem:[%s1 + $0xc0] sm:$0xf]
  %v75 = vld [vmem:[%s1 + $0xc4] sm:$0xf]
  %v76 = vld [vmem:[%s1 + $0xc8] sm:$0xf]
  %v77 = vld [vmem:[%s1 + $0xcc] sm:$0xf]
  %v78 = vld [vmem:[%s1 + $0xd0] sm:$0xf]
  %v79 = vld [vmem:[%s1 + $0xd4] sm:$0xf]
  %v80 = vld [vmem:[%s1 + $0xd8] sm:$0xf]
  %v81 = vld [vmem:[%s1 + $0xdc] sm:$0xf]
  %v82 = vld [vmem:[%s1 + $0xe0] sm:$0xf]
  %v83 = vld [vmem:[%s1 + $0xe4] sm:$0xf]
  %v84 = vld [vmem:[%s1 + $0xe8] sm:$0xf]
  %v85 = vld [vmem:[%s1 + $0xec] sm:$0xf]
  %v86 = vld [vmem:[%s1 + $0xf0] sm:$0xf]
  %v87 = vld [vmem:[%s1 + $0xf4] sm:$0xf]
  %v88 = vld [vmem:[%s1 + $0xf8] sm:$0xf]
  %v89 = vld [vmem:[%s1 + $0xfc] sm:$0xf]
  %v90 = vld [vmem:[%s1 + $0x100] sm:$0xf]
  %v91 = vld [vmem:[%s1 + $0x104] sm:$0xf]
  %v92 = vld [vmem:[%s1 + $0x108] sm:$0xf]
  %v93 = vld [vmem:[%s1 + $0x10c] sm:$0xf]
  %v94 = vld [vmem:[%s1 + $0x110] sm:$0xf]
  %v95 = vld [vmem:[%s1 + $0x114] sm:$0xf]
  %v96 = vld [vmem:[%s1 + $0x118] sm:$0xf]
  %v97 = vld [vmem:[%s1 + $0x11c] sm:$0xf]
  %v98 = vld [vmem:[%s1 + $0x120] sm:$0xf]
  %v99 = vld [vmem:[%s1 + $0x124] sm:$0xf]
  %v100 = vld [vmem:[%s1 + $0x128] sm:$0xf]
  %v101 = vld [vmem:[%s1 + $0x12c] sm:$0xf]
  %v102 = vld [vmem:[%s1 + $0x130] sm:$0xf]
  %v103 = vld [vmem:[%s1 + $0x134] sm:$0xf]
  %v104 = vld [vmem:[%s1 + $0x138] sm:$0xf]
  %v105 = vld [vmem:[%s1 + $0x13c] sm:$0xf]
  %v106 = vld [vmem:[%s1 + $0x140] sm:$0xf]
  %v107 = vld [vmem:[%s1 + $0x144] sm:$0xf]
  %v108 = vld [vmem:[%s1 + $0x148] sm:$0xf]
  %v109 = vld [vmem:[%s1 + $0x14c] sm:$0xf]
  %v110 = vld [vmem:[%s1 + $0x150] sm:$0xf]
  %v111 = vld [vmem:[%s1 + $0x154] sm:$0xf]
  %v112 = vld [vmem:[%s1 + $0x158] sm:$0xf]
  %v113 = vld [vmem:[%s1 + $0x15c] sm:$0xf]
  %v114 = vld [vmem:[%s1 + $0x160] sm:$0xf]
  %v115 = vld [vmem:[%s1 + $0x164] sm:$0xf]
  %v116 = vld [vmem:[%s1 + $0x168] sm:$0xf]
  %v117 = vld [vmem:[%s1 + $0x16c] sm:$0xf]
  %v118 = vld [vmem:[%s1 + $0x170] sm:$0xf]
  %v119 = vld [vmem:[%s1 + $0x174] sm:$0xf]
  %v120 = vld [vmem:[%s1 + $0x178] sm:$0xf]
  %v121 = vld [vmem:[%s1 + $0x17c] sm:$0xf]
  %v122 = vld [vmem:[%s1 + $0x180] sm:$0xf]
  %v123 = vld [vmem:[%s1 + $0x184] sm:$0xf]
  %v124 = vld [vmem:[%s1 + $0x188] sm:$0xf]
  %v125 = vld [vmem:[%s1 + $0x18c] sm:$0xf]
  %v126 = vld [vmem:[%s1 + $0x190] sm:$0xf]
  %v127 = vld [vmem:[%s1 + $0x194] sm:$0xf]
  %v128 = vld [vmem:[%s1 + $0x198] sm:$0xf]
  %v129 = vld [vmem:[%s1 + $0x19c] sm:$0xf]
  %v130 = vld [vmem:[%s1 + $0x1a0] sm:$0xf]
  %v131 = vld [vmem:[%s1 + $0x1a4] sm:$0xf]
  %v132 = vld [vmem:[%s1 + $0x1a8] sm:$0xf]
  %v133 = vld [vmem:[%s1 + $0x1ac] sm:$0xf]
  %v134 = vld [vmem:[%s1 + $0x1b0] sm:$0xf]
  %v135 = vld [vmem:[%s1 + $0x1b4] sm:$0xf]
  %v136 = vld [vmem:[%s1 + $0x1b8] sm:$0xf]
  %v137 = vld [vmem:[%s1 + $0x1bc] sm:$0xf]
  %v138 = vld [vmem:[%s1 + $0x1c0] sm:$0xf]
  %v139 = vld [vmem:[%s1 + $0x1c4] sm:$0xf]
  %v140 = vld [vmem:[%s1 + $0x1c8] sm:$0xf]
  %v141 = vld [vmem:[%s1 + $0x1cc] sm:$0xf]
  %v142 = vld [vmem:[%s1 + $0x1d0] sm:$0xf]
  %v143 = vld [vmem:[%s1 + $0x1d4] sm:$0xf]
  %v144 = vld [vmem:[%s1 + $0x1d8] sm:$0xf]
  %v145 = vld [vmem:[%s1 + $0x1dc] sm:$0xf]
  %v146 = vld [vmem:[%s1 + $0x1e0] sm:$0xf]
  %v147 = vld [vmem:[%s1 + $0x1e4] sm:$0xf]
  %v148 = vld [vmem:[%s1 + $0x1e8] sm:$0xf]
  %v149 = vld [vmem:[%s1 + $0x1ec] sm:$0xf]
  %v150 = vld [vmem:[%s1 + $0x1f0] sm:$0xf]
  %v151 = vld [vmem:[%s1 + $0x1f4] sm:$0xf]
  %v152 = vld [vmem:[%s1 + $0x1f8] sm:$0xf]
  %v153 = vld [vmem:[%s1 + $0x1fc] sm:$0xf]
  %v154 = vld [vmem:[%s1 + $0x200] sm:$0xf]
  %v155 = vld [vmem:[%s1 + $0x204] sm:$0xf]
  %v156 = vld [vmem:[%s1 + $0x208] sm:$0xf]
  %v157 = vld [vmem:[%s1 + $0x20c] sm:$0xf]
  %v158 = vld [vmem:[%s1 + $0x210] sm:$0xf]
  %v159 = vld [vmem:[%s1 + $0x214] sm:$0xf]
  %v160 = vld [vmem:[%s1 + $0x218] sm:$0xf]
  %v161 = vld [vmem:[%s1 + $0x21c] sm:$0xf]
  %v162 = vld [vmem:[%s1 + $0x220] sm:$0xf]
  %v163 = vld [vmem:[%s1 + $0x224] sm:$0xf]
  %v164 = vld [vmem:[%s1 + $0x228] sm:$0xf]
  %v165 = vld [vmem:[%s1 + $0x22c] sm:$0xf]
  %v166 = vld [vmem:[%s1 + $0x230] sm:$0xf]
  %v167 = vld [vmem:[%s1 + $0x234] sm:$0xf]
  %v168 = vld [vmem:[%s1 + $0x238] sm:$0xf]
  %v169 = vld [vmem:[%s1 + $0x23c] sm:$0xf]
  %v170 = vld [vmem:[%s1 + $0x240] sm:$0xf]
  %v171 = vld [vmem:[%s1 + $0x244] sm:$0xf]
  %v172 = vld [vmem:[%s1 + $0x248] sm:$0xf]
  %v173 = vld [vmem:[%s1 + $0x24c] sm:$0xf]
  %v174 = vld [vmem:[%s1 + $0x250] sm:$0xf]
  %v175 = vld [vmem:[%s1 + $0x254] sm:$0xf]
  %v176 = vld [vmem:[%s1 + $0x258] sm:$0xf]
  %v177 = vld [vmem:[%s1 + $0x25c] sm:$0xf]
  %v178 = vld [vmem:[%s1 + $0x260] sm:$0xf]
  %v179 = vld [vmem:[%s1 + $0x264] sm:$0xf]
  %v180 = vld [vmem:[%s1 + $0x268] sm:$0xf]
  %v181 = vld [vmem:[%s1 + $0x26c] sm:$0xf]
  %v182 = vld [vmem:[%s1 + $0x270] sm:$0xf]
  %v183 = vld [vmem:[%s1 + $0x274] sm:$0xf]
  %v184 = vld [vmem:[%s1 + $0x278] sm:$0xf]
  %v185 = vld [vmem:[%s1 + $0x27c] sm:$0xf]
  %v186 = vld [vmem:[%s1 + $0x280] sm:$0xf]
  %v187 = vld [vmem:[%s1 + $0x284] sm:$0xf]
  %v188 = vld [vmem:[%s1 + $0x288] sm:$0xf]
  %v189 = vld [vmem:[%s1 + $0x28c] sm:$0xf]
  %v190 = vld [vmem:[%s1 + $0x290] sm:$0xf]
  %v191 = vld [vmem:[%s1 + $0x294] sm:$0xf]
  %v192 = vld [vmem:[%s1 + $0x298] sm:$0xf]
  %v193 = vld [vmem:[%s1 + $0x29c] sm:$0xf]
  %v194 = vld [vmem:[%s1 + $0x2a0] sm:$0xf]
  %v195 = vld [vmem:[%s1 + $0x2a4] sm:$0xf]
  %v196 = vld [vmem:[%s1 + $0x2a8] sm:$0xf]
  %v197 = vld [vmem:[%s1 + $0x2ac] sm:$0xf]
  %v198 = vld [vmem:[%s1 + $0x2b0] sm:$0xf]
  %v199 = vld [vmem:[%s1 + $0x2b4] sm:$0xf]
  %v200 = vld [vmem:[%s1 + $0x2b8] sm:$0xf]
  %v201 = vld [vmem:[%s1 + $0x2bc] sm:$0xf]
  %v202 = vld [vmem:[%s2] sm:$0xff]
  %v203 = vld [vmem:[%s2 + $0x8] sm:$0x3]
  %205 = vset.pattern.permute.xlu0 0
  %206 = vperm.xlu0 %205, %v202
  %v207 = vpop.permute.xlu0 %206
  %210 = vset.pattern.permute.xlu0 0
  %211 = vperm.xlu0 %210, %v203
  %v212 = vpop.permute.xlu0 %211
  %v226 = vunpack.c.l.b16 %v14
  %v227 = vunpack.c.h.b16 %v14
  %v228 = vunpack.c.l.b16 %v15
  %v229 = vunpack.c.h.b16 %v15
  %v230 = vunpack.c.l.b16 %v16
  %v231 = vunpack.c.h.b16 %v16
  %v232 = vunpack.c.l.b16 %v17
  %v233 = vunpack.c.h.b16 %v17
  %v234 = vunpack.c.l.b16 %v18
  %v235 = vunpack.c.h.b16 %v18
  %v236 = vunpack.c.l.b16 %v19
  %v237 = vunpack.c.l.b16 %v20
  %v238 = vunpack.c.h.b16 %v20
  %v239 = vunpack.c.l.b16 %v21
  %v240 = vunpack.c.h.b16 %v21
  %v241 = vunpack.c.l.b16 %v22
  %v242 = vunpack.c.h.b16 %v22
  %v243 = vunpack.c.l.b16 %v23
  %v244 = vunpack.c.h.b16 %v23
  %v245 = vunpack.c.l.b16 %v24
  %v246 = vunpack.c.h.b16 %v24
  %v247 = vunpack.c.l.b16 %v25
  %v248 = vpack.c.b16 %v237, %v226
  %v249 = vpack.c.b16 %v238, %v227
  %v250 = vpack.c.b16 %v239, %v228
  %v251 = vpack.c.b16 %v240, %v229
  %v252 = vpack.c.b16 %v241, %v230
  %v253 = vpack.c.b16 %v242, %v231
  %v254 = vpack.c.b16 %v243, %v232
  %v255 = vpack.c.b16 %v244, %v233
  %v256 = vpack.c.b16 %v245, %v234
  %v257 = vpack.c.b16 %v246, %v235
  %v258 = vpack.c.b16 %v247, %v236
  %v446 = vunpack.c.l.b16 %v26
  %v447 = vunpack.c.l.b16 %v27
  %v448 = vunpack.c.l.b16 %v28
  %v449 = vunpack.c.l.b16 %v29
  %v450 = vunpack.c.l.b16 %v30
  %v451 = vunpack.c.l.b16 %v31
  %v452 = vunpack.c.l.b16 %v32
  %v453 = vunpack.c.l.b16 %v33
  %v454 = vunpack.c.l.b16 %v34
  %v455 = vunpack.c.l.b16 %v35
  %v456 = vunpack.c.l.b16 %v36
  %v457 = vunpack.c.l.b16 %v37
  %v458 = vunpack.c.l.b16 %v38
  %v459 = vunpack.c.l.b16 %v39
  %v460 = vunpack.c.l.b16 %v40
  %v461 = vunpack.c.l.b16 %v41
  %v462 = vunpack.c.l.b16 %v42
  %v463 = vunpack.c.l.b16 %v43
  %v464 = vunpack.c.l.b16 %v44
  %v465 = vunpack.c.l.b16 %v45
  %v466 = vunpack.c.l.b16 %v46
  %v467 = vunpack.c.l.b16 %v47
  %v468 = vunpack.c.l.b16 %v48
  %v469 = vunpack.c.l.b16 %v49
  %v470 = vunpack.c.l.b16 %v50
  %v471 = vunpack.c.l.b16 %v51
  %v472 = vunpack.c.l.b16 %v52
  %v473 = vunpack.c.l.b16 %v53
  %v474 = vunpack.c.l.b16 %v54
  %v475 = vunpack.c.l.b16 %v55
  %v476 = vunpack.c.l.b16 %v56
  %v477 = vunpack.c.l.b16 %v57
  %v478 = vunpack.c.l.b16 %v58
  %v479 = vunpack.c.l.b16 %v59
  %v480 = vunpack.c.l.b16 %v60
  %v481 = vunpack.c.l.b16 %v61
  %v482 = vunpack.c.l.b16 %v62
  %v483 = vunpack.c.l.b16 %v63
  %v484 = vunpack.c.l.b16 %v64
  %v485 = vunpack.c.l.b16 %v65
  %v486 = vunpack.c.l.b16 %v66
  %v487 = vunpack.c.l.b16 %v67
  %v488 = vunpack.c.l.b16 %v68
  %v489 = vunpack.c.l.b16 %v69
  %v490 = vunpack.c.l.b16 %v70
  %v491 = vunpack.c.l.b16 %v71
  %v492 = vunpack.c.l.b16 %v72
  %v493 = vunpack.c.l.b16 %v73
  %v494 = vunpack.c.l.b16 %v74
  %v495 = vunpack.c.l.b16 %v75
  %v496 = vunpack.c.l.b16 %v76
  %v497 = vunpack.c.l.b16 %v77
  %v498 = vunpack.c.l.b16 %v78
  %v499 = vunpack.c.l.b16 %v79
  %v500 = vunpack.c.l.b16 %v80
  %v501 = vunpack.c.l.b16 %v81
  %v502 = vunpack.c.l.b16 %v82
  %v503 = vunpack.c.l.b16 %v83
  %v504 = vunpack.c.l.b16 %v84
  %v505 = vunpack.c.l.b16 %v85
  %v506 = vunpack.c.l.b16 %v86
  %v507 = vunpack.c.l.b16 %v87
  %v508 = vunpack.c.l.b16 %v88
  %v509 = vunpack.c.l.b16 %v89
  %v510 = vunpack.c.l.b16 %v90
  %v511 = vunpack.c.l.b16 %v91
  %v512 = vunpack.c.l.b16 %v92
  %v513 = vunpack.c.l.b16 %v93
  %v514 = vunpack.c.l.b16 %v94
  %v515 = vunpack.c.l.b16 %v95
  %v516 = vunpack.c.l.b16 %v96
  %v517 = vunpack.c.l.b16 %v97
  %v518 = vunpack.c.l.b16 %v98
  %v519 = vunpack.c.l.b16 %v99
  %v520 = vunpack.c.l.b16 %v100
  %v521 = vunpack.c.l.b16 %v101
  %v522 = vunpack.c.l.b16 %v102
  %v523 = vunpack.c.l.b16 %v103
  %v524 = vunpack.c.l.b16 %v104
  %v525 = vunpack.c.l.b16 %v105
  %v526 = vunpack.c.l.b16 %v106
  %v527 = vunpack.c.l.b16 %v107
  %v528 = vunpack.c.l.b16 %v108
  %v529 = vunpack.c.l.b16 %v109
  %v530 = vunpack.c.l.b16 %v110
  %v531 = vunpack.c.l.b16 %v111
  %v532 = vunpack.c.l.b16 %v112
  %v533 = vunpack.c.l.b16 %v113
  %v534 = vunpack.c.l.b16 %v114
  %v535 = vunpack.c.l.b16 %v115
  %v536 = vunpack.c.l.b16 %v116
  %v537 = vunpack.c.l.b16 %v117
  %v538 = vunpack.c.l.b16 %v118
  %v539 = vunpack.c.l.b16 %v119
  %v540 = vunpack.c.l.b16 %v120
  %v541 = vunpack.c.l.b16 %v121
  %v542 = vunpack.c.l.b16 %v122
  %v543 = vunpack.c.l.b16 %v123
  %v544 = vunpack.c.l.b16 %v124
  %v545 = vunpack.c.l.b16 %v125
  %v546 = vunpack.c.l.b16 %v126
  %v547 = vunpack.c.l.b16 %v127
  %v548 = vunpack.c.l.b16 %v128
  %v549 = vunpack.c.l.b16 %v129
  %v550 = vunpack.c.l.b16 %v130
  %v551 = vunpack.c.l.b16 %v131
  %v552 = vunpack.c.l.b16 %v132
  %v553 = vunpack.c.l.b16 %v133
  %v554 = vunpack.c.l.b16 %v134
  %v555 = vunpack.c.l.b16 %v135
  %v556 = vunpack.c.l.b16 %v136
  %v557 = vunpack.c.l.b16 %v137
  %v558 = vunpack.c.l.b16 %v138
  %v559 = vunpack.c.l.b16 %v139
  %v560 = vunpack.c.l.b16 %v140
  %v561 = vunpack.c.l.b16 %v141
  %v562 = vunpack.c.l.b16 %v142
  %v563 = vunpack.c.l.b16 %v143
  %v564 = vunpack.c.l.b16 %v144
  %v565 = vunpack.c.l.b16 %v145
  %v566 = vunpack.c.l.b16 %v146
  %v567 = vunpack.c.l.b16 %v147
  %v568 = vunpack.c.l.b16 %v148
  %v569 = vunpack.c.l.b16 %v149
  %v570 = vunpack.c.l.b16 %v150
  %v571 = vunpack.c.l.b16 %v151
  %v572 = vunpack.c.l.b16 %v152
  %v573 = vunpack.c.l.b16 %v153
  %v574 = vunpack.c.l.b16 %v154
  %v575 = vunpack.c.l.b16 %v155
  %v576 = vunpack.c.l.b16 %v156
  %v577 = vunpack.c.l.b16 %v157
  %v578 = vunpack.c.l.b16 %v158
  %v579 = vunpack.c.l.b16 %v159
  %v580 = vunpack.c.l.b16 %v160
  %v581 = vunpack.c.l.b16 %v161
  %v582 = vunpack.c.l.b16 %v162
  %v583 = vunpack.c.l.b16 %v163
  %v584 = vunpack.c.l.b16 %v164
  %v585 = vunpack.c.l.b16 %v165
  %v586 = vunpack.c.l.b16 %v166
  %v587 = vunpack.c.l.b16 %v167
  %v588 = vunpack.c.l.b16 %v168
  %v589 = vunpack.c.l.b16 %v169
  %v590 = vunpack.c.l.b16 %v170
  %v591 = vunpack.c.l.b16 %v171
  %v592 = vunpack.c.l.b16 %v172
  %v593 = vunpack.c.l.b16 %v173
  %v594 = vunpack.c.l.b16 %v174
  %v595 = vunpack.c.l.b16 %v175
  %v596 = vunpack.c.l.b16 %v176
  %v597 = vunpack.c.l.b16 %v177
  %v598 = vunpack.c.l.b16 %v178
  %v599 = vunpack.c.l.b16 %v179
  %v600 = vunpack.c.l.b16 %v180
  %v601 = vunpack.c.l.b16 %v181
  %v602 = vunpack.c.l.b16 %v182
  %v603 = vunpack.c.l.b16 %v183
  %v604 = vunpack.c.l.b16 %v184
  %v605 = vunpack.c.l.b16 %v185
  %v606 = vunpack.c.l.b16 %v186
  %v607 = vunpack.c.l.b16 %v187
  %v608 = vunpack.c.l.b16 %v188
  %v609 = vunpack.c.l.b16 %v189
  %v610 = vunpack.c.l.b16 %v190
  %v611 = vunpack.c.l.b16 %v191
  %v612 = vunpack.c.l.b16 %v192
  %v613 = vunpack.c.l.b16 %v193
  %v614 = vunpack.c.l.b16 %v194
  %v615 = vunpack.c.l.b16 %v195
  %v616 = vunpack.c.l.b16 %v196
  %v617 = vunpack.c.l.b16 %v197
  %v618 = vunpack.c.l.b16 %v198
  %v619 = vunpack.c.l.b16 %v199
  %v620 = vunpack.c.l.b16 %v200
  %v621 = vunpack.c.l.b16 %v201
  %v622 = vpack.c.b16 %v447, %v446
  %v623 = vpack.c.b16 %v449, %v448
  %v624 = vpack.c.b16 %v451, %v450
  %v625 = vpack.c.b16 %v453, %v452
  %v626 = vpack.c.b16 %v455, %v454
  %v627 = vpack.c.b16 %v457, %v456
  %v628 = vpack.c.b16 %v459, %v458
  %v629 = vpack.c.b16 %v461, %v460
  %v630 = vpack.c.b16 %v463, %v462
  %v631 = vpack.c.b16 %v465, %v464
  %v632 = vpack.c.b16 %v467, %v466
  %v633 = vpack.c.b16 %v469, %v468
  %v634 = vpack.c.b16 %v471, %v470
  %v635 = vpack.c.b16 %v473, %v472
  %v636 = vpack.c.b16 %v475, %v474
  %v637 = vpack.c.b16 %v477, %v476
  %v638 = vpack.c.b16 %v479, %v478
  %v639 = vpack.c.b16 %v481, %v480
  %v640 = vpack.c.b16 %v483, %v482
  %v641 = vpack.c.b16 %v485, %v484
  %v642 = vpack.c.b16 %v487, %v486
  %v643 = vpack.c.b16 %v489, %v488
  %v644 = vpack.c.b16 %v491, %v490
  %v645 = vpack.c.b16 %v493, %v492
  %v646 = vpack.c.b16 %v495, %v494
  %v647 = vpack.c.b16 %v497, %v496
  %v648 = vpack.c.b16 %v499, %v498
  %v649 = vpack.c.b16 %v501, %v500
  %v650 = vpack.c.b16 %v503, %v502
  %v651 = vpack.c.b16 %v505, %v504
  %v652 = vpack.c.b16 %v507, %v506
  %v653 = vpack.c.b16 %v509, %v508
  %v654 = vpack.c.b16 %v511, %v510
  %v655 = vpack.c.b16 %v513, %v512
  %v656 = vpack.c.b16 %v515, %v514
  %v657 = vpack.c.b16 %v517, %v516
  %v658 = vpack.c.b16 %v519, %v518
  %v659 = vpack.c.b16 %v521, %v520
  %v660 = vpack.c.b16 %v523, %v522
  %v661 = vpack.c.b16 %v525, %v524
  %v662 = vpack.c.b16 %v527, %v526
  %v663 = vpack.c.b16 %v529, %v528
  %v664 = vpack.c.b16 %v531, %v530
  %v665 = vpack.c.b16 %v533, %v532
  %v666 = vpack.c.b16 %v535, %v534
  %v667 = vpack.c.b16 %v537, %v536
  %v668 = vpack.c.b16 %v539, %v538
  %v669 = vpack.c.b16 %v541, %v540
  %v670 = vpack.c.b16 %v543, %v542
  %v671 = vpack.c.b16 %v545, %v544
  %v672 = vpack.c.b16 %v547, %v546
  %v673 = vpack.c.b16 %v549, %v548
  %v674 = vpack.c.b16 %v551, %v550
  %v675 = vpack.c.b16 %v553, %v552
  %v676 = vpack.c.b16 %v555, %v554
  %v677 = vpack.c.b16 %v557, %v556
  %v678 = vpack.c.b16 %v559, %v558
  %v679 = vpack.c.b16 %v561, %v560
  %v680 = vpack.c.b16 %v563, %v562
  %v681 = vpack.c.b16 %v565, %v564
  %v682 = vpack.c.b16 %v567, %v566
  %v683 = vpack.c.b16 %v569, %v568
  %v684 = vpack.c.b16 %v571, %v570
  %v685 = vpack.c.b16 %v573, %v572
  %v686 = vpack.c.b16 %v575, %v574
  %v687 = vpack.c.b16 %v577, %v576
  %v688 = vpack.c.b16 %v579, %v578
  %v689 = vpack.c.b16 %v581, %v580
  %v690 = vpack.c.b16 %v583, %v582
  %v691 = vpack.c.b16 %v585, %v584
  %v692 = vpack.c.b16 %v587, %v586
  %v693 = vpack.c.b16 %v589, %v588
  %v694 = vpack.c.b16 %v591, %v590
  %v695 = vpack.c.b16 %v593, %v592
  %v696 = vpack.c.b16 %v595, %v594
  %v697 = vpack.c.b16 %v597, %v596
  %v698 = vpack.c.b16 %v599, %v598
  %v699 = vpack.c.b16 %v601, %v600
  %v700 = vpack.c.b16 %v603, %v602
  %v701 = vpack.c.b16 %v605, %v604
  %v702 = vpack.c.b16 %v607, %v606
  %v703 = vpack.c.b16 %v609, %v608
  %v704 = vpack.c.b16 %v611, %v610
  %v705 = vpack.c.b16 %v613, %v612
  %v706 = vpack.c.b16 %v615, %v614
  %v707 = vpack.c.b16 %v617, %v616
  %v708 = vpack.c.b16 %v619, %v618
  %v709 = vpack.c.b16 %v621, %v620
  %798 = vmatpush.bf16.msra.mxu0 %v629
  %799 = vmatpush.bf16.msra.mxu0 %v628
  %800 = vmatpush.bf16.msra.mxu0 %v627
  %801 = vmatpush.bf16.msra.mxu0 %v626
  %802 = vmatpush.bf16.msra.mxu0 %v625
  %803 = vmatpush.bf16.msra.mxu0 %v624
  %804 = vmatpush.bf16.msra.mxu0 %v623
  %805 = vmatpush.bf16.msra.mxu0 %v622
  %806 = vmatmul.bf16.gmra.mxu0 %v248
  %v807 = vpop.f32.mrf.mxu0
  %v808 = vadd.f32 %v207, %v807
  %v809 = vpop.f32.mrf.mxu0
  %v810 = vadd.f32 %v212, %v809
  %811 = vdwg.mxu0
  %812 = vmatpush.bf16.msra.mxu0 %v637
  %813 = vmatpush.bf16.msra.mxu0 %v636
  %814 = vmatpush.bf16.msra.mxu0 %v635
  %815 = vmatpush.bf16.msra.mxu0 %v634
  %816 = vmatpush.bf16.msra.mxu0 %v633
  %817 = vmatpush.bf16.msra.mxu0 %v632
  %818 = vmatpush.bf16.msra.mxu0 %v631
  %819 = vmatpush.bf16.msra.mxu0 %v630
  %820 = vmatmul.bf16.gmra.mxu0 %v249
  %v821 = vpop.f32.mrf.mxu0
  %v822 = vadd.f32 %v808, %v821
  %v823 = vpop.f32.mrf.mxu0
  %v824 = vadd.f32 %v810, %v823
  %825 = vdwg.mxu0
  %826 = vmatpush.bf16.msra.mxu0 %v645
  %827 = vmatpush.bf16.msra.mxu0 %v644
  %828 = vmatpush.bf16.msra.mxu0 %v643
  %829 = vmatpush.bf16.msra.mxu0 %v642
  %830 = vmatpush.bf16.msra.mxu0 %v641
  %831 = vmatpush.bf16.msra.mxu0 %v640
  %832 = vmatpush.bf16.msra.mxu0 %v639
  %833 = vmatpush.bf16.msra.mxu0 %v638
  %834 = vmatmul.bf16.gmra.mxu0 %v250
  %v835 = vpop.f32.mrf.mxu0
  %v836 = vadd.f32 %v822, %v835
  %v837 = vpop.f32.mrf.mxu0
  %v838 = vadd.f32 %v824, %v837
  %839 = vdwg.mxu0
  %840 = vmatpush.bf16.msra.mxu0 %v653
  %841 = vmatpush.bf16.msra.mxu0 %v652
  %842 = vmatpush.bf16.msra.mxu0 %v651
  %843 = vmatpush.bf16.msra.mxu0 %v650
  %844 = vmatpush.bf16.msra.mxu0 %v649
  %845 = vmatpush.bf16.msra.mxu0 %v648
  %846 = vmatpush.bf16.msra.mxu0 %v647
  %847 = vmatpush.bf16.msra.mxu0 %v646
  %848 = vmatmul.bf16.gmra.mxu0 %v251
  %v849 = vpop.f32.mrf.mxu0
  %v850 = vadd.f32 %v836, %v849
  %v851 = vpop.f32.mrf.mxu0
  %v852 = vadd.f32 %v838, %v851
  %853 = vdwg.mxu0
  %854 = vmatpush.bf16.msra.mxu0 %v661
  %855 = vmatpush.bf16.msra.mxu0 %v660
  %856 = vmatpush.bf16.msra.mxu0 %v659
  %857 = vmatpush.bf16.msra.mxu0 %v658
  %858 = vmatpush.bf16.msra.mxu0 %v657
  %859 = vmatpush.bf16.msra.mxu0 %v656
  %860 = vmatpush.bf16.msra.mxu0 %v655
  %861 = vmatpush.bf16.msra.mxu0 %v654
  %862 = vmatmul.bf16.gmra.mxu0 %v252
  %v863 = vpop.f32.mrf.mxu0
  %v864 = vadd.f32 %v850, %v863
  %v865 = vpop.f32.mrf.mxu0
  %v866 = vadd.f32 %v852, %v865
  %867 = vdwg.mxu0
  %868 = vmatpush.bf16.msra.mxu0 %v669
  %869 = vmatpush.bf16.msra.mxu0 %v668
  %870 = vmatpush.bf16.msra.mxu0 %v667
  %871 = vmatpush.bf16.msra.mxu0 %v666
  %872 = vmatpush.bf16.msra.mxu0 %v665
  %873 = vmatpush.bf16.msra.mxu0 %v664
  %874 = vmatpush.bf16.msra.mxu0 %v663
  %875 = vmatpush.bf16.msra.mxu0 %v662
  %876 = vmatmul.bf16.gmra.mxu0 %v253
  %v877 = vpop.f32.mrf.mxu0
  %v878 = vadd.f32 %v864, %v877
  %v879 = vpop.f32.mrf.mxu0
  %v880 = vadd.f32 %v866, %v879
  %881 = vdwg.mxu0
  %882 = vmatpush.bf16.msra.mxu0 %v677
  %883 = vmatpush.bf16.msra.mxu0 %v676
  %884 = vmatpush.bf16.msra.mxu0 %v675
  %885 = vmatpush.bf16.msra.mxu0 %v674
  %886 = vmatpush.bf16.msra.mxu0 %v673
  %887 = vmatpush.bf16.msra.mxu0 %v672
  %888 = vmatpush.bf16.msra.mxu0 %v671
  %889 = vmatpush.bf16.msra.mxu0 %v670
  %890 = vmatmul.bf16.gmra.mxu0 %v254
  %v891 = vpop.f32.mrf.mxu0
  %v892 = vadd.f32 %v878, %v891
  %v893 = vpop.f32.mrf.mxu0
  %v894 = vadd.f32 %v880, %v893
  %895 = vdwg.mxu0
  %896 = vmatpush.bf16.msra.mxu0 %v685
  %897 = vmatpush.bf16.msra.mxu0 %v684
  %898 = vmatpush.bf16.msra.mxu0 %v683
  %899 = vmatpush.bf16.msra.mxu0 %v682
  %900 = vmatpush.bf16.msra.mxu0 %v681
  %901 = vmatpush.bf16.msra.mxu0 %v680
  %902 = vmatpush.bf16.msra.mxu0 %v679
  %903 = vmatpush.bf16.msra.mxu0 %v678
  %904 = vmatmul.bf16.gmra.mxu0 %v255
  %v905 = vpop.f32.mrf.mxu0
  %v906 = vadd.f32 %v892, %v905
  %v907 = vpop.f32.mrf.mxu0
  %v908 = vadd.f32 %v894, %v907
  %909 = vdwg.mxu0
  %910 = vmatpush.bf16.msra.mxu0 %v693
  %911 = vmatpush.bf16.msra.mxu0 %v692
  %912 = vmatpush.bf16.msra.mxu0 %v691
  %913 = vmatpush.bf16.msra.mxu0 %v690
  %914 = vmatpush.bf16.msra.mxu0 %v689
  %915 = vmatpush.bf16.msra.mxu0 %v688
  %916 = vmatpush.bf16.msra.mxu0 %v687
  %917 = vmatpush.bf16.msra.mxu0 %v686
  %918 = vmatmul.bf16.gmra.mxu0 %v256
  %v919 = vpop.f32.mrf.mxu0
  %v920 = vadd.f32 %v906, %v919
  %v921 = vpop.f32.mrf.mxu0
  %v922 = vadd.f32 %v908, %v921
  %923 = vdwg.mxu0
  %924 = vmatpush.bf16.msra.mxu0 %v701
  %925 = vmatpush.bf16.msra.mxu0 %v700
  %926 = vmatpush.bf16.msra.mxu0 %v699
  %927 = vmatpush.bf16.msra.mxu0 %v698
  %928 = vmatpush.bf16.msra.mxu0 %v697
  %929 = vmatpush.bf16.msra.mxu0 %v696
  %930 = vmatpush.bf16.msra.mxu0 %v695
  %931 = vmatpush.bf16.msra.mxu0 %v694
  %932 = vmatmul.bf16.gmra.mxu0 %v257
  %v933 = vpop.f32.mrf.mxu0
  %v934 = vadd.f32 %v920, %v933
  %v935 = vpop.f32.mrf.mxu0
  %v936 = vadd.f32 %v922, %v935
  %937 = vdwg.mxu0
  %938 = vmatpush.bf16.msra.mxu0 %v709
  %939 = vmatpush.bf16.msra.mxu0 %v708
  %940 = vmatpush.bf16.msra.mxu0 %v707
  %941 = vmatpush.bf16.msra.mxu0 %v706
  %942 = vmatpush.bf16.msra.mxu0 %v705
  %943 = vmatpush.bf16.msra.mxu0 %v704
  %944 = vmatpush.bf16.msra.mxu0 %v703
  %945 = vmatpush.bf16.msra.mxu0 %v702
  %946 = vmatmul.bf16.gmra.mxu0 %v258
  %v947 = vpop.f32.mrf.mxu0
  %v948 = vadd.f32 %v934, %v947
  %v949 = vpop.f32.mrf.mxu0
  %v950 = vadd.f32 %v936, %v949
  %951 = vdwg.mxu0
  %vm952 = vcmask 15360
  %953 = vst.msk [vmem:[%s3] sm:$0xff] %vm952, %v948
  %vm954 = vcmask 9216
  %955 = vst.msk [vmem:[%s3 + $0x8] sm:$0x3] %vm954, %v950
  // Predicated region
  $region14: #{net_forward.21} parent=0 // pred_check
    _
  $region15: #{net_forward.21} parent=0 // pred_check_branch
    %957 = sbr.rel (0) target = $region17
  $region16: #{net_forward.21} parent=0 // pred_region
    _
  $region17: #{net_forward.21} parent=0 // pred_fallthru
    _
  // Predicated region
  $region18: #{net_forward.21} parent=0 // pred_check
    _
  $region19: #{net_forward.21} parent=0 // pred_check_branch
    %959 = sbr.rel (0) target = $region21
  $region20: #{net_forward.21} parent=0 // pred_region
    _
  $region21: #{net_forward.21} parent=0 // pred_fallthru
    _

</llo_original>
